<compile_context>
chip_gen: v7x
topology: tpu7x:2x2x1
jax: 0.10.0
libtpu: 0.0.40
codegen_flags: <defaults>
</compile_context>

<pallas_src>
import jax
import jax.numpy as jnp
from jax import lax
from jax.experimental import pallas as pl
from jax.experimental.pallas import tpu as pltpu


def graphsage_kernel(idx_ref, x_ref, w1_ref, b1_ref, w2a_ref, w2b_ref, b2_ref, o_ref):
    # Per grid step (a block of BB samples):
    #   idx_ref : (BB, 1, K*N) int32  flattened neighbor ids, col k*N+n = nbr(n, k)
    #   x_ref   : (BB, C, N)          input features, channels-first (N on lanes)
    #   w1_ref  : (C, C)     b1_ref : (C, 1)
    #   w2a_ref : (Co, C)    w2b_ref: (Co, C)    b2_ref: (Co, 1)
    #   o_ref   : (BB, Co, N)
    BB, C, N = x_ref.shape
    KN = idx_ref.shape[-1]
    K = KN // N

    w1 = w1_ref[...]
    b1 = b1_ref[...]
    w2a = w2a_ref[...]
    w2b = w2b_ref[...]
    b2 = b2_ref[...]

    # Hoisted out of the per-sample loop (JAX does not CSE broadcasts/iotas).
    row_iota = lax.broadcasted_iota(jnp.int32, (N, KN), 0)

    for bb in range(BB):                                       # BB small & static
        x = x_ref[bb].astype(jnp.float32)                      # (C, N)

        # ---- nn1: per-vertex 1x1 conv + bias + relu (commuted before gather) ----
        h = jnp.dot(w1, x, preferred_element_type=jnp.float32,
                    precision=lax.Precision.HIGHEST) + b1
        h = jnp.maximum(h, 0.0)                                # (C, N)

        # ---- fused neighbor gather: ONE bf16 one-hot matmul over all K slots ----
        # onehot[s, k*N+n] = (s == nbr(n, k)); exact 0/1 -> lossless in bf16.
        idx_row = idx_ref[bb]                                  # (1, K*N) int32
        onehot = (row_iota == idx_row).astype(jnp.bfloat16)    # (N, K*N)

        # Bit-faithful f32 gather from two bf16 halves, issued as a single MXU dot
        # (hi/lo stacked along sublanes -> one-hot RHS streamed once).
        h_hi = h.astype(jnp.bfloat16)
        h_lo = (h - h_hi.astype(jnp.float32)).astype(jnp.bfloat16)
        hs = jnp.concatenate([h_hi, h_lo], axis=0)             # (2C, N) bf16
        g2 = jnp.dot(hs, onehot, preferred_element_type=jnp.float32,
                     precision=lax.Precision.DEFAULT)           # (2C, K*N)
        g = g2[:C, :] + g2[C:, :]                               # (C, K*N) == h[:, nbr]

        # ---- max over the K neighbor slots (lane-aligned static slices) ---------
        agg = g[:, 0:N]
        for k in range(1, K):
            agg = jnp.maximum(agg, g[:, k * N:(k + 1) * N])     # (C, N)

        # ---- nn2: conv over cat([x, agg]) == W2a@x + W2b@agg (no concat copy) ---
        y = (jnp.dot(w2a, x, preferred_element_type=jnp.float32,
                     precision=lax.Precision.HIGHEST)
             + jnp.dot(w2b, agg, preferred_element_type=jnp.float32,
                       precision=lax.Precision.HIGHEST)
             + b2)
        o_ref[bb] = jnp.maximum(y, 0.0).astype(o_ref.dtype)


def graphsage_forward(x, edge_index, w1, b1, w2, b2):
    """x: (B, C, N, 1) float; edge_index: (2, B, N, K) int. Returns (B, Co, N, 1, 1)."""
    B, C, N, _ = x.shape
    K = edge_index.shape[-1]
    Co = w2.shape[0]
    assert w1.shape == (C, C) and w2.shape == (Co, 2 * C)
    assert N % 128 == 0, "vertex axis N must be a multiple of 128 (lane width)"

    # Channels-first already -> just drop the trailing singleton (no big transpose).
    x_cn = x.reshape(B, C, N)
    # Flatten neighbor ids so column k*N+n holds nbr(n, k): done once in XLA (tiny),
    # avoiding a sublane->lane reshape inside the kernel.
    idx_flat = jnp.transpose(edge_index[0], (0, 2, 1)).reshape(B, 1, K * N).astype(jnp.int32)
    b1c = b1.reshape(C, 1).astype(jnp.float32)
    b2c = b2.reshape(Co, 1).astype(jnp.float32)
    w1f = w1.astype(jnp.float32)
    w2a = w2[:, :C].astype(jnp.float32)                         # acts on x
    w2b = w2[:, C:].astype(jnp.float32)                         # acts on agg

    # Small batches: fold the whole batch into one grid step (per-step overhead
    # dominates at test scale). Large batches: one sample per step.
    BB = B if B <= 4 else 1
    assert B % BB == 0
    grid = (B // BB,)

    full = lambda shape: pl.BlockSpec(shape, lambda b: (0,) * len(shape))

    out = pl.pallas_call(
        graphsage_kernel,
        out_shape=jax.ShapeDtypeStruct((B, Co, N), x.dtype),
        grid_spec=pltpu.PrefetchScalarGridSpec(
            num_scalar_prefetch=0,
            grid=grid,
            in_specs=[
                pl.BlockSpec((BB, 1, K * N), lambda b: (b, 0, 0)),  # neighbor ids
                pl.BlockSpec((BB, C, N), lambda b: (b, 0, 0)),      # x
                full((C, C)),    # w1
                full((C, 1)),    # b1
                full((Co, C)),   # w2 (x half)
                full((Co, C)),   # w2 (agg half)
                full((Co, 1)),   # b2
            ],
            out_specs=pl.BlockSpec((BB, Co, N), lambda b: (b, 0, 0)),
        ),
        compiler_params=pltpu.CompilerParams(
            dimension_semantics=("parallel",),        # batch-block axis
            vmem_limit_bytes=16 * 1024 * 1024,        # working set << 1 MiB; fits v7x
        ),
    )(idx_flat, x_cn, w1f, b1c, w2a, w2b, b2c)

    return out.reshape(B, Co, N, 1, 1)


def _ref_graphsage(x, edge_index, w1, b1, w2, b2):
    """Literal PyTorch-order reference (gather -> conv -> relu -> max -> cat -> conv)."""
    xf = x[..., 0]                                            # (B, C, N)
    idx = edge_index[0]                                       # (B, N, K)
    x_j = jax.vmap(lambda xb, ib: xb[:, ib])(xf, idx)         # (B, C, N, K)
    h = jnp.einsum('oc,bcnk->bonk', w1, x_j) + b1[None, :, None, None]
    h = jnp.maximum(h, 0.0)
    hmax = jnp.max(h, axis=-1)                                # (B, C, N)
    cat = jnp.concatenate([xf, hmax], axis=1)                 # (B, 2C, N)
    y = jnp.einsum('oc,bcn->bon', w2, cat) + b2[None, :, None]
    y = jnp.maximum(y, 0.0)
    return y[..., None, None]                                 # (B, Co, N, 1, 1)


if __name__ == "__main__":
    # High precision for the f32 reference einsums; kernel dots set precision
    # explicitly so they do not depend on this global.
    jax.config.update("jax_default_matmul_precision", "highest")

    key = jax.random.PRNGKey(0)
    B, C_in, C_out, N, K = 2, 16, 32, 128, 8                  # N vertices, K neighbors

    ks = jax.random.split(key, 6)
    x = jax.random.normal(ks[0], (B, C_in, N, 1), jnp.float32)
    nbr = jax.random.randint(ks[1], (B, N, K), 0, N)
    center = jnp.broadcast_to(jnp.arange(N)[None, :, None], (B, N, K))
    edge_index = jnp.stack([nbr, center]).astype(jnp.int32)   # (2, B, N, K)

    w1 = jax.random.normal(ks[2], (C_in, C_in), jnp.float32) * 0.2
    b1 = jax.random.normal(ks[3], (C_in,), jnp.float32) * 0.1
    w2 = jax.random.normal(ks[4], (C_out, 2 * C_in), jnp.float32) * 0.2
    b2 = jax.random.normal(ks[5], (C_out,), jnp.float32) * 0.1

    out = graphsage_forward(x, edge_index, w1, b1, w2, b2)
    out = jax.block_until_ready(out)

    ref = _ref_graphsage(x, edge_index, w1, b1, w2, b2)
    assert out.shape == (B, C_out, N, 1, 1), out.shape
    err = float(jnp.max(jnp.abs(out - ref)))
    assert jnp.allclose(out, ref, atol=1e-3, rtol=1e-3), err

    print("KERNEL_OK")
</pallas_src>

<mosaic_0001>
module attributes {stable_mosaic.version = 11 : i64} {
  func.func @graphsage_kernel(%arg0: i32, %arg1: memref<2x1x1024xi32, #tpu.memory_space<vmem>>, %arg2: memref<2x16x128xf32, #tpu.memory_space<vmem>>, %arg3: memref<16x16xf32, #tpu.memory_space<vmem>>, %arg4: memref<16x1xf32, #tpu.memory_space<vmem>>, %arg5: memref<32x16xf32, #tpu.memory_space<vmem>>, %arg6: memref<32x16xf32, #tpu.memory_space<vmem>>, %arg7: memref<32x1xf32, #tpu.memory_space<vmem>>, %arg8: memref<2x32x128xf32, #tpu.memory_space<vmem>>) attributes {dimension_semantics = [#tpu.dimension_semantics<parallel>], iteration_bounds = array<i64: 1>, scalar_prefetch = 0 : i64, scratch_operands = 0 : i64, tpu.core_type = #tpu.core_type<tc>, window_params = [{transform_indices = @transform_0, window_bounds = array<i64: 2, 1, 1024>}, {transform_indices = @transform_1, window_bounds = array<i64: 2, 16, 128>}, {pipeline_mode = #tpu.pipeline_mode<synchronous>, transform_indices = @transform_2, window_bounds = array<i64: 16, 16>}, {pipeline_mode = #tpu.pipeline_mode<synchronous>, transform_indices = @transform_3, window_bounds = array<i64: 16, 1>}, {pipeline_mode = #tpu.pipeline_mode<synchronous>, transform_indices = @transform_4, window_bounds = array<i64: 32, 16>}, {pipeline_mode = #tpu.pipeline_mode<synchronous>, transform_indices = @transform_5, window_bounds = array<i64: 32, 16>}, {pipeline_mode = #tpu.pipeline_mode<synchronous>, transform_indices = @transform_6, window_bounds = array<i64: 32, 1>}, {transform_indices = @transform_7, window_bounds = array<i64: 2, 32, 128>}]} {
    %c0 = arith.constant 0 : index
    %c0_0 = arith.constant 0 : index
    %0 = vector.load %arg3[%c0, %c0_0] : memref<16x16xf32, #tpu.memory_space<vmem>>, vector<16x16xf32>
    %c0_1 = arith.constant 0 : index
    %c0_2 = arith.constant 0 : index
    %1 = vector.load %arg4[%c0_1, %c0_2] : memref<16x1xf32, #tpu.memory_space<vmem>>, vector<16x1xf32>
    %c0_3 = arith.constant 0 : index
    %c0_4 = arith.constant 0 : index
    %2 = vector.load %arg5[%c0_3, %c0_4] : memref<32x16xf32, #tpu.memory_space<vmem>>, vector<32x16xf32>
    %c0_5 = arith.constant 0 : index
    %c0_6 = arith.constant 0 : index
    %3 = vector.load %arg6[%c0_5, %c0_6] : memref<32x16xf32, #tpu.memory_space<vmem>>, vector<32x16xf32>
    %c0_7 = arith.constant 0 : index
    %c0_8 = arith.constant 0 : index
    %4 = vector.load %arg7[%c0_7, %c0_8] : memref<32x1xf32, #tpu.memory_space<vmem>>, vector<32x1xf32>
    %5 = tpu.iota {dimensions = array<i32: 0>} : vector<128x1024xi32>
    %c0_9 = arith.constant 0 : index
    %c0_10 = arith.constant 0 : index
    %c0_11 = arith.constant 0 : index
    %6 = vector.load %arg2[%c0_9, %c0_10, %c0_11] : memref<2x16x128xf32, #tpu.memory_space<vmem>>, vector<1x16x128xf32>
    %7 = vector.shape_cast %6 : vector<1x16x128xf32> to vector<16x128xf32>
    %cst = arith.constant dense<0.000000e+00> : vector<16x128xf32>
    %8 = tpu.matmul %0, %7, %cst {dimension_numbers = #tpu.dot_dimension_numbers<[1], [0], [0], [1], [0, 0, 1, 1], [], []>, precision = #tpu.contract_precision<fp32>} : vector<16x16xf32>, vector<16x128xf32>, vector<16x128xf32> -> vector<16x128xf32>
    %9 = vector.broadcast %1 : vector<16x1xf32> to vector<16x128xf32>
    %10 = arith.addf %8, %9 : vector<16x128xf32>
    %cst_12 = arith.constant 0.000000e+00 : f32
    %11 = vector.broadcast %cst_12 : f32 to vector<16x128xf32>
    %12 = arith.maximumf %10, %11 : vector<16x128xf32>
    %c0_13 = arith.constant 0 : index
    %c0_14 = arith.constant 0 : index
    %c0_15 = arith.constant 0 : index
    %13 = vector.load %arg1[%c0_13, %c0_14, %c0_15] : memref<2x1x1024xi32, #tpu.memory_space<vmem>>, vector<1x1x1024xi32>
    %14 = vector.shape_cast %13 : vector<1x1x1024xi32> to vector<1x1024xi32>
    %15 = vector.broadcast %14 : vector<1x1024xi32> to vector<128x1024xi32>
    %16 = arith.cmpi eq, %5, %15 : vector<128x1024xi32>
    %17 = arith.extui %16 : vector<128x1024xi1> to vector<128x1024xi32>
    %18 = arith.sitofp %17 : vector<128x1024xi32> to vector<128x1024xf32>
    %19 = arith.truncf %18 : vector<128x1024xf32> to vector<128x1024xbf16>
    %20 = arith.truncf %12 : vector<16x128xf32> to vector<16x128xbf16>
    %21 = arith.extf %20 : vector<16x128xbf16> to vector<16x128xf32>
    %22 = arith.subf %12, %21 : vector<16x128xf32>
    %23 = arith.truncf %22 : vector<16x128xf32> to vector<16x128xbf16>
    %24 = tpu.concatenate %20, %23 in 0 : vector<16x128xbf16>, vector<16x128xbf16> -> vector<32x128xbf16>
    %cst_16 = arith.constant dense<0.000000e+00> : vector<32x1024xf32>
    %25 = tpu.matmul %24, %19, %cst_16 {dimension_numbers = #tpu.dot_dimension_numbers<[1], [0], [0], [1], [0, 0, 1, 1], [], []>} : vector<32x128xbf16>, vector<128x1024xbf16>, vector<32x1024xf32> -> vector<32x1024xf32>
    %26 = vector.extract_strided_slice %25 {offsets = [0, 0], sizes = [16, 1024], strides = [1, 1]} : vector<32x1024xf32> to vector<16x1024xf32>
    %27 = vector.extract_strided_slice %25 {offsets = [16, 0], sizes = [16, 1024], strides = [1, 1]} : vector<32x1024xf32> to vector<16x1024xf32>
    %28 = arith.addf %26, %27 : vector<16x1024xf32>
    %29 = vector.extract_strided_slice %28 {offsets = [0, 0], sizes = [16, 128], strides = [1, 1]} : vector<16x1024xf32> to vector<16x128xf32>
    %30 = vector.extract_strided_slice %28 {offsets = [0, 128], sizes = [16, 128], strides = [1, 1]} : vector<16x1024xf32> to vector<16x128xf32>
    %31 = arith.maximumf %29, %30 : vector<16x128xf32>
    %32 = vector.extract_strided_slice %28 {offsets = [0, 256], sizes = [16, 128], strides = [1, 1]} : vector<16x1024xf32> to vector<16x128xf32>
    %33 = arith.maximumf %31, %32 : vector<16x128xf32>
    %34 = vector.extract_strided_slice %28 {offsets = [0, 384], sizes = [16, 128], strides = [1, 1]} : vector<16x1024xf32> to vector<16x128xf32>
    %35 = arith.maximumf %33, %34 : vector<16x128xf32>
    %36 = vector.extract_strided_slice %28 {offsets = [0, 512], sizes = [16, 128], strides = [1, 1]} : vector<16x1024xf32> to vector<16x128xf32>
    %37 = arith.maximumf %35, %36 : vector<16x128xf32>
    %38 = vector.extract_strided_slice %28 {offsets = [0, 640], sizes = [16, 128], strides = [1, 1]} : vector<16x1024xf32> to vector<16x128xf32>
    %39 = arith.maximumf %37, %38 : vector<16x128xf32>
    %40 = vector.extract_strided_slice %28 {offsets = [0, 768], sizes = [16, 128], strides = [1, 1]} : vector<16x1024xf32> to vector<16x128xf32>
    %41 = arith.maximumf %39, %40 : vector<16x128xf32>
    %42 = vector.extract_strided_slice %28 {offsets = [0, 896], sizes = [16, 128], strides = [1, 1]} : vector<16x1024xf32> to vector<16x128xf32>
    %43 = arith.maximumf %41, %42 : vector<16x128xf32>
    %cst_17 = arith.constant dense<0.000000e+00> : vector<32x128xf32>
    %44 = tpu.matmul %2, %7, %cst_17 {dimension_numbers = #tpu.dot_dimension_numbers<[1], [0], [0], [1], [0, 0, 1, 1], [], []>, precision = #tpu.contract_precision<fp32>} : vector<32x16xf32>, vector<16x128xf32>, vector<32x128xf32> -> vector<32x128xf32>
    %cst_18 = arith.constant dense<0.000000e+00> : vector<32x128xf32>
    %45 = tpu.matmul %3, %43, %cst_18 {dimension_numbers = #tpu.dot_dimension_numbers<[1], [0], [0], [1], [0, 0, 1, 1], [], []>, precision = #tpu.contract_precision<fp32>} : vector<32x16xf32>, vector<16x128xf32>, vector<32x128xf32> -> vector<32x128xf32>
    %46 = arith.addf %44, %45 : vector<32x128xf32>
    %47 = vector.broadcast %4 : vector<32x1xf32> to vector<32x128xf32>
    %48 = arith.addf %46, %47 : vector<32x128xf32>
    %cst_19 = arith.constant 0.000000e+00 : f32
    %49 = vector.broadcast %cst_19 : f32 to vector<32x128xf32>
    %50 = arith.maximumf %48, %49 : vector<32x128xf32>
    %c0_20 = arith.constant 0 : index
    %c0_21 = arith.constant 0 : index
    %c0_22 = arith.constant 0 : index
    %51 = vector.load %arg8[%c0_20, %c0_21, %c0_22] : memref<2x32x128xf32, #tpu.memory_space<vmem>>, vector<1x32x128xf32>
    %52 = vector.shape_cast %51 : vector<1x32x128xf32> to vector<32x128xf32>
    %53 = vector.shape_cast %50 : vector<32x128xf32> to vector<1x32x128xf32>
    tpu.vector_store %arg8[%c0_20, %c0_21, %c0_22], %53 {strides = array<i32>} : memref<2x32x128xf32, #tpu.memory_space<vmem>>, vector<1x32x128xf32>,
    %c1 = arith.constant 1 : index
    %c0_23 = arith.constant 0 : index
    %c0_24 = arith.constant 0 : index
    %54 = vector.load %arg2[%c1, %c0_23, %c0_24] : memref<2x16x128xf32, #tpu.memory_space<vmem>>, vector<1x16x128xf32>
    %55 = vector.shape_cast %54 : vector<1x16x128xf32> to vector<16x128xf32>
    %cst_25 = arith.constant dense<0.000000e+00> : vector<16x128xf32>
    %56 = tpu.matmul %0, %55, %cst_25 {dimension_numbers = #tpu.dot_dimension_numbers<[1], [0], [0], [1], [0, 0, 1, 1], [], []>, precision = #tpu.contract_precision<fp32>} : vector<16x16xf32>, vector<16x128xf32>, vector<16x128xf32> -> vector<16x128xf32>
    %57 = vector.broadcast %1 : vector<16x1xf32> to vector<16x128xf32>
    %58 = arith.addf %56, %57 : vector<16x128xf32>
    %cst_26 = arith.constant 0.000000e+00 : f32
    %59 = vector.broadcast %cst_26 : f32 to vector<16x128xf32>
    %60 = arith.maximumf %58, %59 : vector<16x128xf32>
    %c1_27 = arith.constant 1 : index
    %c0_28 = arith.constant 0 : index
    %c0_29 = arith.constant 0 : index
    %61 = vector.load %arg1[%c1_27, %c0_28, %c0_29] : memref<2x1x1024xi32, #tpu.memory_space<vmem>>, vector<1x1x1024xi32>
    %62 = vector.shape_cast %61 : vector<1x1x1024xi32> to vector<1x1024xi32>
    %63 = vector.broadcast %62 : vector<1x1024xi32> to vector<128x1024xi32>
    %64 = arith.cmpi eq, %5, %63 : vector<128x1024xi32>
    %65 = arith.extui %64 : vector<128x1024xi1> to vector<128x1024xi32>
    %66 = arith.sitofp %65 : vector<128x1024xi32> to vector<128x1024xf32>
    %67 = arith.truncf %66 : vector<128x1024xf32> to vector<128x1024xbf16>
    %68 = arith.truncf %60 : vector<16x128xf32> to vector<16x128xbf16>
    %69 = arith.extf %68 : vector<16x128xbf16> to vector<16x128xf32>
    %70 = arith.subf %60, %69 : vector<16x128xf32>
    %71 = arith.truncf %70 : vector<16x128xf32> to vector<16x128xbf16>
    %72 = tpu.concatenate %68, %71 in 0 : vector<16x128xbf16>, vector<16x128xbf16> -> vector<32x128xbf16>
    %cst_30 = arith.constant dense<0.000000e+00> : vector<32x1024xf32>
    %73 = tpu.matmul %72, %67, %cst_30 {dimension_numbers = #tpu.dot_dimension_numbers<[1], [0], [0], [1], [0, 0, 1, 1], [], []>} : vector<32x128xbf16>, vector<128x1024xbf16>, vector<32x1024xf32> -> vector<32x1024xf32>
    %74 = vector.extract_strided_slice %73 {offsets = [0, 0], sizes = [16, 1024], strides = [1, 1]} : vector<32x1024xf32> to vector<16x1024xf32>
    %75 = vector.extract_strided_slice %73 {offsets = [16, 0], sizes = [16, 1024], strides = [1, 1]} : vector<32x1024xf32> to vector<16x1024xf32>
    %76 = arith.addf %74, %75 : vector<16x1024xf32>
    %77 = vector.extract_strided_slice %76 {offsets = [0, 0], sizes = [16, 128], strides = [1, 1]} : vector<16x1024xf32> to vector<16x128xf32>
    %78 = vector.extract_strided_slice %76 {offsets = [0, 128], sizes = [16, 128], strides = [1, 1]} : vector<16x1024xf32> to vector<16x128xf32>
    %79 = arith.maximumf %77, %78 : vector<16x128xf32>
    %80 = vector.extract_strided_slice %76 {offsets = [0, 256], sizes = [16, 128], strides = [1, 1]} : vector<16x1024xf32> to vector<16x128xf32>
    %81 = arith.maximumf %79, %80 : vector<16x128xf32>
    %82 = vector.extract_strided_slice %76 {offsets = [0, 384], sizes = [16, 128], strides = [1, 1]} : vector<16x1024xf32> to vector<16x128xf32>
    %83 = arith.maximumf %81, %82 : vector<16x128xf32>
    %84 = vector.extract_strided_slice %76 {offsets = [0, 512], sizes = [16, 128], strides = [1, 1]} : vector<16x1024xf32> to vector<16x128xf32>
    %85 = arith.maximumf %83, %84 : vector<16x128xf32>
    %86 = vector.extract_strided_slice %76 {offsets = [0, 640], sizes = [16, 128], strides = [1, 1]} : vector<16x1024xf32> to vector<16x128xf32>
    %87 = arith.maximumf %85, %86 : vector<16x128xf32>
    %88 = vector.extract_strided_slice %76 {offsets = [0, 768], sizes = [16, 128], strides = [1, 1]} : vector<16x1024xf32> to vector<16x128xf32>
    %89 = arith.maximumf %87, %88 : vector<16x128xf32>
    %90 = vector.extract_strided_slice %76 {offsets = [0, 896], sizes = [16, 128], strides = [1, 1]} : vector<16x1024xf32> to vector<16x128xf32>
    %91 = arith.maximumf %89, %90 : vector<16x128xf32>
    %cst_31 = arith.constant dense<0.000000e+00> : vector<32x128xf32>
    %92 = tpu.matmul %2, %55, %cst_31 {dimension_numbers = #tpu.dot_dimension_numbers<[1], [0], [0], [1], [0, 0, 1, 1], [], []>, precision = #tpu.contract_precision<fp32>} : vector<32x16xf32>, vector<16x128xf32>, vector<32x128xf32> -> vector<32x128xf32>
    %cst_32 = arith.constant dense<0.000000e+00> : vector<32x128xf32>
    %93 = tpu.matmul %3, %91, %cst_32 {dimension_numbers = #tpu.dot_dimension_numbers<[1], [0], [0], [1], [0, 0, 1, 1], [], []>, precision = #tpu.contract_precision<fp32>} : vector<32x16xf32>, vector<16x128xf32>, vector<32x128xf32> -> vector<32x128xf32>
    %94 = arith.addf %92, %93 : vector<32x128xf32>
    %95 = vector.broadcast %4 : vector<32x1xf32> to vector<32x128xf32>
    %96 = arith.addf %94, %95 : vector<32x128xf32>
    %cst_33 = arith.constant 0.000000e+00 : f32
    %97 = vector.broadcast %cst_33 : f32 to vector<32x128xf32>
    %98 = arith.maximumf %96, %97 : vector<32x128xf32>
    %c1_34 = arith.constant 1 : index
    %c0_35 = arith.constant 0 : index
    %c0_36 = arith.constant 0 : index
    %99 = vector.load %arg8[%c1_34, %c0_35, %c0_36] : memref<2x32x128xf32, #tpu.memory_space<vmem>>, vector<1x32x128xf32>
    %100 = vector.shape_cast %99 : vector<1x32x128xf32> to vector<32x128xf32>
    %101 = vector.shape_cast %98 : vector<32x128xf32> to vector<1x32x128xf32>
    tpu.vector_store %arg8[%c1_34, %c0_35, %c0_36], %101 {strides = array<i32>} : memref<2x32x128xf32, #tpu.memory_space<vmem>>, vector<1x32x128xf32>,
    return
  }
  func.func @transform_0(%arg0: i32) -> (i32, i32, i32) {
    %c0_i32 = arith.constant 0 : i32
    %c0_i32_0 = arith.constant 0 : i32
    %c0_i32_1 = arith.constant 0 : i32
    return %arg0, %c0_i32, %c0_i32_0 : i32, i32, i32
  }
  func.func @transform_1(%arg0: i32) -> (i32, i32, i32) {
    %c0_i32 = arith.constant 0 : i32
    %c0_i32_0 = arith.constant 0 : i32
    %c0_i32_1 = arith.constant 0 : i32
    return %arg0, %c0_i32, %c0_i32_0 : i32, i32, i32
  }
  func.func @transform_2(%arg0: i32) -> (i32, i32) {
    %c0_i32 = arith.constant 0 : i32
    %c0_i32_0 = arith.constant 0 : i32
    %c0_i32_1 = arith.constant 0 : i32
    return %c0_i32, %c0_i32_0 : i32, i32
  }
  func.func @transform_3(%arg0: i32) -> (i32, i32) {
    %c0_i32 = arith.constant 0 : i32
    %c0_i32_0 = arith.constant 0 : i32
    %c0_i32_1 = arith.constant 0 : i32
    return %c0_i32, %c0_i32_0 : i32, i32
  }
  func.func @transform_4(%arg0: i32) -> (i32, i32) {
    %c0_i32 = arith.constant 0 : i32
    %c0_i32_0 = arith.constant 0 : i32
    %c0_i32_1 = arith.constant 0 : i32
    return %c0_i32, %c0_i32_0 : i32, i32
  }
  func.func @transform_5(%arg0: i32) -> (i32, i32) {
    %c0_i32 = arith.constant 0 : i32
    %c0_i32_0 = arith.constant 0 : i32
    %c0_i32_1 = arith.constant 0 : i32
    return %c0_i32, %c0_i32_0 : i32, i32
  }
  func.func @transform_6(%arg0: i32) -> (i32, i32) {
    %c0_i32 = arith.constant 0 : i32
    %c0_i32_0 = arith.constant 0 : i32
    %c0_i32_1 = arith.constant 0 : i32
    return %c0_i32, %c0_i32_0 : i32, i32
  }
  func.func @transform_7(%arg0: i32) -> (i32, i32, i32) {
    %c0_i32 = arith.constant 0 : i32
    %c0_i32_0 = arith.constant 0 : i32
    %c0_i32_1 = arith.constant 0 : i32
    return %arg0, %c0_i32, %c0_i32_0 : i32, i32, i32
  }
}

</mosaic_0001>

<llo_original>
// kernel: tpu_custom_call.1
$region0: #{tpu_custom_call.1}
  #allocation0 [shape = 'u32[]', space=smem, size = 0x4, offset = 0x4, fixed_abs, tag = 'smem constant byte address 0x4 - core index']
  #allocation1 [shape = 'u32[144,128]{1,0:T(1,128)}', space=vmem, size = 0x12000, scoped, tag = 'internal scratch']
  %s0 = inlined_call_operand.vmem [shape: s32[2,1,1024], index: 0, kind: input, shape index: {}]
  %s1 = inlined_call_operand.vmem [shape: f32[2,16,128], index: 1, kind: input, shape index: {}]
  %s2 = inlined_call_operand.vmem [shape: f32[16,16], index: 2, kind: input, shape index: {}]
  %s3 = inlined_call_operand.vmem [shape: f32[16,1], index: 3, kind: input, shape index: {}]
  %s4 = inlined_call_operand.vmem [shape: f32[32,16], index: 4, kind: input, shape index: {}]
  %s5 = inlined_call_operand.vmem [shape: f32[32,16], index: 5, kind: input, shape index: {}]
  %s6 = inlined_call_operand.vmem [shape: f32[32,1], index: 6, kind: input, shape index: {}]
  %s7 = inlined_call_operand.hbm [shape: f32[2,32,128], index: 7, kind: output, shape index: {}]
  %s8 = sld [smem:[#allocation0]]
  $region38: #{tpu_custom_call.1} parent=0
    _
  %s10 = ssub.s32 1, %s8
  %s11 = scalar_select 0, %s10, %s8
  $region1: #{tpu_custom_call.1} parent=0
    #allocation2 [shape = 'u8[32768]{0}', space=vmem, size = 0x8000, scoped, tag = 'output window, operand 0, single buffered']
    #allocation3 [shape = 's32[1]{0}', space=sflag, size = 0x4, scoped, tag = 'scoped memory for tpu_custom_call.1']
    %12 = vsyncpa [#allocation3], 0
    // Predicated region
    $region2: #{tpu_custom_call.1} parent=1 // pred_check
      _
    $region3: #{tpu_custom_call.1} parent=1 // pred_check_branch
      %14 = sbr.rel (0) target = $region5
    $region4: #{tpu_custom_call.1} parent=1 // pred_region
      _
    $region5: #{tpu_custom_call.1} parent=1 // pred_fallthru
      _
    // Predicated region
    $region6: #{tpu_custom_call.1} parent=1 // pred_check
      _
    $region7: #{tpu_custom_call.1} parent=1 // pred_check_branch
      %16 = sbr.rel (0) target = $region9
    $region8: #{tpu_custom_call.1} parent=1 // pred_region
      _
    $region9: #{tpu_custom_call.1} parent=1 // pred_fallthru
      _
    // Predicated region
    $region10: #{tpu_custom_call.1} parent=1 // pred_check
      _
    $region11: #{tpu_custom_call.1} parent=1 // pred_check_branch
      %18 = sbr.rel (0) target = $region13
    $region12: #{tpu_custom_call.1} parent=1 // pred_region
      _
    $region13: #{tpu_custom_call.1} parent=1 // pred_fallthru
      _
    // Predicated region
    $region14: #{tpu_custom_call.1} parent=1 // pred_check
      _
    $region15: #{tpu_custom_call.1} parent=1 // pred_check_branch
      %20 = sbr.rel (0) target = $region17
    $region16: #{tpu_custom_call.1} parent=1 // pred_region
      _
    $region17: #{tpu_custom_call.1} parent=1 // pred_fallthru
      _
    // Predicated region
    $region18: #{tpu_custom_call.1} parent=1 // pred_check
      _
    $region19: #{tpu_custom_call.1} parent=1 // pred_check_branch
      %22 = sbr.rel (0) target = $region21
    $region20: #{tpu_custom_call.1} parent=1 // pred_region
      _
    $region21: #{tpu_custom_call.1} parent=1 // pred_fallthru
      _
    // Predicated region
    $region22: #{tpu_custom_call.1} parent=1 // pred_check
      _
    $region23: #{tpu_custom_call.1} parent=1 // pred_check_branch
      %24 = sbr.rel (0) target = $region25
    $region24: #{tpu_custom_call.1} parent=1 // pred_region
      _
    $region25: #{tpu_custom_call.1} parent=1 // pred_fallthru
      _
    // Predicated region
    $region26: #{tpu_custom_call.1} parent=1 // pred_check
      _
    $region27: #{tpu_custom_call.1} parent=1 // pred_check_branch
      %26 = sbr.rel (0) target = $region29
    $region28: #{tpu_custom_call.1} parent=1 // pred_region
      _
    $region29: #{tpu_custom_call.1} parent=1 // pred_fallthru
      _
    %v28 = vld [vmem:[%s2] sm:$0xff]
    %v29 = vld [vmem:[%s2 + $0x8] sm:$0xff]
    %v30 = vld [vmem:[%s3] sm:$0xff]
    %v31 = vld [vmem:[%s3 + $0x8] sm:$0xff]
    %v32 = vld [vmem:[%s4] sm:$0xff]
    %v33 = vld [vmem:[%s4 + $0x8] sm:$0xff]
    %v34 = vld [vmem:[%s4 + $0x10] sm:$0xff]
    %v35 = vld [vmem:[%s4 + $0x18] sm:$0xff]
    %v36 = vld [vmem:[%s5] sm:$0xff]
    %v37 = vld [vmem:[%s5 + $0x8] sm:$0xff]
    %v38 = vld [vmem:[%s5 + $0x10] sm:$0xff]
    %v39 = vld [vmem:[%s5 + $0x18] sm:$0xff]
    %v40 = vld [vmem:[%s6] sm:$0xff]
    %v41 = vld [vmem:[%s6 + $0x8] sm:$0xff]
    %v42 = vld [vmem:[%s6 + $0x10] sm:$0xff]
    %v43 = vld [vmem:[%s6 + $0x18] sm:$0xff]
    %v44 = vlaneseq
    %v45 = vshrl.u32 %v44, 7
    %v46 = vadd.s32 %v45, 8
    %v47 = vadd.s32 %v45, 16
    %v48 = vadd.s32 %v45, 24
    %v49 = vadd.s32 %v45, 32
    %v50 = vadd.s32 %v45, 40
    %v51 = vadd.s32 %v45, 48
    %v52 = vadd.s32 %v45, 56
    %v53 = vadd.s32 %v45, 64
    %v54 = vadd.s32 %v45, 72
    %v55 = vadd.s32 %v45, 80
    %v56 = vadd.s32 %v45, 88
    %v57 = vadd.s32 %v45, 96
    %v58 = vadd.s32 %v45, 104
    %v59 = vadd.s32 %v45, 112
    %v60 = vadd.s32 %v45, 120
    %v61 = vld [vmem:[%s1] sm:$0xff]
    %v62 = vld [vmem:[%s1 + $0x8] sm:$0xff]
    %64 = vset.pattern.permute.xlu0 0
    %65 = vperm.xlu0 %64, %v30
    %v66 = vpop.permute.xlu0 %65
    %69 = vset.pattern.permute.xlu0 0
    %70 = vperm.xlu0 %69, %v31
    %v71 = vpop.permute.xlu0 %70
    %vm73 = vcmask 130048
    %v75 = vsel %vm73, %v28, 0
    %v78 = vsel %vm73, %v29, 0
    %80 = vmatprep.subr.mxu0 0.0
    %v81 = vand.u32 %v61, 4294901760
    %82 = vmatpush1.msra.mxu0 %v81
    %83 = vmatprep.subr.mxu0 0.0
    %v84 = vand.u32 %v62, 4294901760
    %85 = vmatpush1.msra.mxu0 %v84
    %86 = vmatprep.subr.mxu0 0.0
    %87 = vmatpush1.msra.mxu0 0.0
    %88 = vmatprep.subr.mxu0 0.0
    %89 = vmatpush1.msra.mxu0 0.0
    %90 = vmatprep.subr.mxu0 0.0
    %91 = vmatpush1.msra.mxu0 0.0
    %92 = vmatprep.subr.mxu0 0.0
    %93 = vmatpush1.msra.mxu0 0.0
    %94 = vmatprep.subr.mxu0 0.0
    %95 = vmatpush1.msra.mxu0 0.0
    %96 = vmatprep.subr.mxu0 0.0
    %97 = vmatpush1.msra.mxu0 0.0
    %98 = vmatprep.subr.mxu0 0.0
    %99 = vmatpush1.msra.mxu0 0.0
    %100 = vmatprep.subr.mxu0 0.0
    %101 = vmatpush1.msra.mxu0 0.0
    %102 = vmatprep.subr.mxu0 0.0
    %103 = vmatpush1.msra.mxu0 0.0
    %104 = vmatprep.subr.mxu0 0.0
    %105 = vmatpush1.msra.mxu0 0.0
    %106 = vmatprep.subr.mxu0 0.0
    %107 = vmatpush1.msra.mxu0 0.0
    %108 = vmatprep.subr.mxu0 0.0
    %109 = vmatpush1.msra.mxu0 0.0
    %110 = vmatprep.subr.mxu0 0.0
    %111 = vmatpush1.msra.mxu0 0.0
    %112 = vmatprep.subr.mxu0 0.0
    %113 = vmatpush1.msra.mxu0 0.0
    %114 = vmatprep.subr.mxu0 0.0
    %115 = vmatpush1.msra.mxu0 0.0
    %116 = vmatprep.subr.mxu0 0.0
    %117 = vmatpush1.msra.mxu0 0.0
    %118 = vmatprep.subr.mxu0 0.0
    %119 = vmatpush1.msra.mxu0 0.0
    %120 = vmatprep.subr.mxu0 0.0
    %121 = vmatpush1.msra.mxu0 0.0
    %122 = vmatprep.subr.mxu0 0.0
    %123 = vmatpush1.msra.mxu0 0.0
    %124 = vmatprep.subr.mxu0 0.0
    %125 = vmatpush1.msra.mxu0 0.0
    %126 = vmatprep.subr.mxu0 0.0
    %127 = vmatpush1.msra.mxu0 0.0
    %128 = vmatprep.subr.mxu0 0.0
    %129 = vmatpush1.msra.mxu0 0.0
    %130 = vmatprep.subr.mxu0 0.0
    %131 = vmatpush1.msra.mxu0 0.0
    %132 = vmatprep.subr.mxu0 0.0
    %133 = vmatpush1.msra.mxu0 0.0
    %134 = vmatprep.subr.mxu0 0.0
    %135 = vmatpush1.msra.mxu0 0.0
    %136 = vmatprep.subr.mxu0 0.0
    %137 = vmatpush1.msra.mxu0 0.0
    %138 = vmatprep.subr.mxu0 0.0
    %139 = vmatpush1.msra.mxu0 0.0
    %140 = vmatprep.subr.mxu0 0.0
    %141 = vmatpush1.msra.mxu0 0.0
    %142 = vmatprep.subr.mxu0 0.0
    %143 = vmatpush1.msra.mxu0 0.0
    %144 = vmatprep.subr.mxu0 0.0
    %145 = vmatpush1.msra.mxu0 0.0
    %146 = vmatprep.mubr.f32.mxu0 0.0
    %v147 = vand.u32 %v75, 4294901760
    %v148 = vsub.f32 %v75, %v147
    %v149 = vand.u32 %v148, 4294901760
    %v150 = vsub.f32 %v148, %v149
    %v151 = vand.u32 %v150, 4294901760
    %152 = vmatmul.mubr.f32.gmra.mrb[0].mxu0 %v151
    %v153 = vpop.f32.mrb[0].mxu0
    %v154 = vadd.f32 %v66, %v153
    %v155 = vpop.f32.mrb[0].mxu0
    %156 = vmatprep.mubr.f32.mxu0 0.0
    %v157 = vand.u32 %v78, 4294901760
    %v158 = vsub.f32 %v78, %v157
    %v159 = vand.u32 %v158, 4294901760
    %v160 = vsub.f32 %v158, %v159
    %v161 = vand.u32 %v160, 4294901760
    %162 = vmatmul.mubr.f32.gmra.mrb[0].mxu0 %v161
    %v163 = vpop.f32.mrb[0].mxu0
    %v164 = vadd.f32 %v71, %v163
    %v165 = vpop.f32.mrb[0].mxu0
    %166 = vdwg.mxu0
    %167 = vmatprep.subr.mxu0 0.0
    %v168 = vand.u32 %v61, 4294901760
    %v169 = vsub.f32 %v61, %v168
    %v170 = vand.u32 %v169, 4294901760
    %v171 = vsub.f32 %v169, %v170
    %v172 = vand.u32 %v171, 4294901760
    %173 = vmatpush1.msra.mxu0 %v172
    %174 = vmatprep.subr.mxu0 0.0
    %v175 = vand.u32 %v62, 4294901760
    %v176 = vsub.f32 %v62, %v175
    %v177 = vand.u32 %v176, 4294901760
    %v178 = vsub.f32 %v176, %v177
    %v179 = vand.u32 %v178, 4294901760
    %180 = vmatpush1.msra.mxu0 %v179
    %181 = vmatprep.subr.mxu0 0.0
    %182 = vmatpush1.msra.mxu0 0.0
    %183 = vmatprep.subr.mxu0 0.0
    %184 = vmatpush1.msra.mxu0 0.0
    %185 = vmatprep.subr.mxu0 0.0
    %186 = vmatpush1.msra.mxu0 0.0
    %187 = vmatprep.subr.mxu0 0.0
    %188 = vmatpush1.msra.mxu0 0.0
    %189 = vmatprep.subr.mxu0 0.0
    %190 = vmatpush1.msra.mxu0 0.0
    %191 = vmatprep.subr.mxu0 0.0
    %192 = vmatpush1.msra.mxu0 0.0
    %193 = vmatprep.subr.mxu0 0.0
    %194 = vmatpush1.msra.mxu0 0.0
    %195 = vmatprep.subr.mxu0 0.0
    %196 = vmatpush1.msra.mxu0 0.0
    %197 = vmatprep.subr.mxu0 0.0
    %198 = vmatpush1.msra.mxu0 0.0
    %199 = vmatprep.subr.mxu0 0.0
    %200 = vmatpush1.msra.mxu0 0.0
    %201 = vmatprep.subr.mxu0 0.0
    %202 = vmatpush1.msra.mxu0 0.0
    %203 = vmatprep.subr.mxu0 0.0
    %204 = vmatpush1.msra.mxu0 0.0
    %205 = vmatprep.subr.mxu0 0.0
    %206 = vmatpush1.msra.mxu0 0.0
    %207 = vmatprep.subr.mxu0 0.0
    %208 = vmatpush1.msra.mxu0 0.0
    %209 = vmatprep.subr.mxu0 0.0
    %210 = vmatpush1.msra.mxu0 0.0
    %211 = vmatprep.subr.mxu0 0.0
    %212 = vmatpush1.msra.mxu0 0.0
    %213 = vmatprep.subr.mxu0 0.0
    %214 = vmatpush1.msra.mxu0 0.0
    %215 = vmatprep.subr.mxu0 0.0
    %216 = vmatpush1.msra.mxu0 0.0
    %217 = vmatprep.subr.mxu0 0.0
    %218 = vmatpush1.msra.mxu0 0.0
    %219 = vmatprep.subr.mxu0 0.0
    %220 = vmatpush1.msra.mxu0 0.0
    %221 = vmatprep.subr.mxu0 0.0
    %222 = vmatpush1.msra.mxu0 0.0
    %223 = vmatprep.subr.mxu0 0.0
    %224 = vmatpush1.msra.mxu0 0.0
    %225 = vmatprep.subr.mxu0 0.0
    %226 = vmatpush1.msra.mxu0 0.0
    %227 = vmatprep.subr.mxu0 0.0
    %228 = vmatpush1.msra.mxu0 0.0
    %229 = vmatprep.subr.mxu0 0.0
    %230 = vmatpush1.msra.mxu0 0.0
    %231 = vmatprep.subr.mxu0 0.0
    %232 = vmatpush1.msra.mxu0 0.0
    %233 = vmatprep.subr.mxu0 0.0
    %234 = vmatpush1.msra.mxu0 0.0
    %235 = vmatprep.subr.mxu0 0.0
    %236 = vmatpush1.msra.mxu0 0.0
    %237 = vmatprep.subr.mxu0 0.0
    %238 = vmatpush1.msra.mxu0 0.0
    %239 = vmatprep.subr.mxu0 0.0
    %240 = vmatpush1.msra.mxu0 0.0
    %241 = vmatprep.mubr.f32.mxu0 0.0
    %v242 = vand.u32 %v75, 4294901760
    %243 = vmatmul.mubr.f32.gmra.mrb[0].mxu0 %v242
    %v244 = vpop.f32.mrb[0].mxu0
    %v245 = vadd.f32 %v154, %v244
    %v246 = vpop.f32.mrb[0].mxu0
    %247 = vmatprep.mubr.f32.mxu0 0.0
    %v248 = vand.u32 %v78, 4294901760
    %249 = vmatmul.mubr.f32.gmra.mrb[0].mxu0 %v248
    %v250 = vpop.f32.mrb[0].mxu0
    %v251 = vadd.f32 %v164, %v250
    %v252 = vpop.f32.mrb[0].mxu0
    %253 = vdwg.mxu0
    %254 = vmatprep.subr.mxu0 0.0
    %v255 = vand.u32 %v61, 4294901760
    %v256 = vsub.f32 %v61, %v255
    %257 = vmatpush1.msra.mxu0 %v256
    %258 = vmatprep.subr.mxu0 0.0
    %v259 = vand.u32 %v62, 4294901760
    %v260 = vsub.f32 %v62, %v259
    %261 = vmatpush1.msra.mxu0 %v260
    %262 = vmatprep.subr.mxu0 0.0
    %263 = vmatpush1.msra.mxu0 0.0
    %264 = vmatprep.subr.mxu0 0.0
    %265 = vmatpush1.msra.mxu0 0.0
    %266 = vmatprep.subr.mxu0 0.0
    %267 = vmatpush1.msra.mxu0 0.0
    %268 = vmatprep.subr.mxu0 0.0
    %269 = vmatpush1.msra.mxu0 0.0
    %270 = vmatprep.subr.mxu0 0.0
    %271 = vmatpush1.msra.mxu0 0.0
    %272 = vmatprep.subr.mxu0 0.0
    %273 = vmatpush1.msra.mxu0 0.0
    %274 = vmatprep.subr.mxu0 0.0
    %275 = vmatpush1.msra.mxu0 0.0
    %276 = vmatprep.subr.mxu0 0.0
    %277 = vmatpush1.msra.mxu0 0.0
    %278 = vmatprep.subr.mxu0 0.0
    %279 = vmatpush1.msra.mxu0 0.0
    %280 = vmatprep.subr.mxu0 0.0
    %281 = vmatpush1.msra.mxu0 0.0
    %282 = vmatprep.subr.mxu0 0.0
    %283 = vmatpush1.msra.mxu0 0.0
    %284 = vmatprep.subr.mxu0 0.0
    %285 = vmatpush1.msra.mxu0 0.0
    %286 = vmatprep.subr.mxu0 0.0
    %287 = vmatpush1.msra.mxu0 0.0
    %288 = vmatprep.subr.mxu0 0.0
    %289 = vmatpush1.msra.mxu0 0.0
    %290 = vmatprep.subr.mxu0 0.0
    %291 = vmatpush1.msra.mxu0 0.0
    %292 = vmatprep.subr.mxu0 0.0
    %293 = vmatpush1.msra.mxu0 0.0
    %294 = vmatprep.subr.mxu0 0.0
    %295 = vmatpush1.msra.mxu0 0.0
    %296 = vmatprep.subr.mxu0 0.0
    %297 = vmatpush1.msra.mxu0 0.0
    %298 = vmatprep.subr.mxu0 0.0
    %299 = vmatpush1.msra.mxu0 0.0
    %300 = vmatprep.subr.mxu0 0.0
    %301 = vmatpush1.msra.mxu0 0.0
    %302 = vmatprep.subr.mxu0 0.0
    %303 = vmatpush1.msra.mxu0 0.0
    %304 = vmatprep.subr.mxu0 0.0
    %305 = vmatpush1.msra.mxu0 0.0
    %306 = vmatprep.subr.mxu0 0.0
    %307 = vmatpush1.msra.mxu0 0.0
    %308 = vmatprep.subr.mxu0 0.0
    %309 = vmatpush1.msra.mxu0 0.0
    %310 = vmatprep.subr.mxu0 0.0
    %311 = vmatpush1.msra.mxu0 0.0
    %312 = vmatprep.subr.mxu0 0.0
    %313 = vmatpush1.msra.mxu0 0.0
    %314 = vmatprep.subr.mxu0 0.0
    %315 = vmatpush1.msra.mxu0 0.0
    %316 = vmatprep.subr.mxu0 0.0
    %317 = vmatpush1.msra.mxu0 0.0
    %318 = vmatprep.subr.mxu0 0.0
    %319 = vmatpush1.msra.mxu0 0.0
    %320 = vmatprep.subr.mxu0 0.0
    %321 = vmatpush1.msra.mxu0 0.0
    %322 = vmatprep.mubr.f32.mxu0 0.0
    %v323 = vand.u32 %v75, 4294901760
    %v324 = vsub.f32 %v75, %v323
    %325 = vmatmul.mubr.f32.gmra.mrb[0].mxu0 %v324
    %v326 = vpop.f32.mrb[0].mxu0
    %v327 = vadd.f32 %v245, %v326
    %v328 = vpop.f32.mrb[0].mxu0
    %329 = vmatprep.mubr.f32.mxu0 0.0
    %v330 = vand.u32 %v78, 4294901760
    %v331 = vsub.f32 %v78, %v330
    %332 = vmatmul.mubr.f32.gmra.mrb[0].mxu0 %v331
    %v333 = vpop.f32.mrb[0].mxu0
    %v334 = vadd.f32 %v251, %v333
    %v335 = vpop.f32.mrb[0].mxu0
    %336 = vdwg.mxu0
    %337 = vmatprep.subr.mxu0 0.0
    %v338 = vand.u32 %v61, 4294901760
    %339 = vmatpush1.msra.mxu0 %v338
    %340 = vmatprep.subr.mxu0 0.0
    %v341 = vand.u32 %v62, 4294901760
    %342 = vmatpush1.msra.mxu0 %v341
    %343 = vmatprep.subr.mxu0 0.0
    %344 = vmatpush1.msra.mxu0 0.0
    %345 = vmatprep.subr.mxu0 0.0
    %346 = vmatpush1.msra.mxu0 0.0
    %347 = vmatprep.subr.mxu0 0.0
    %348 = vmatpush1.msra.mxu0 0.0
    %349 = vmatprep.subr.mxu0 0.0
    %350 = vmatpush1.msra.mxu0 0.0
    %351 = vmatprep.subr.mxu0 0.0
    %352 = vmatpush1.msra.mxu0 0.0
    %353 = vmatprep.subr.mxu0 0.0
    %354 = vmatpush1.msra.mxu0 0.0
    %355 = vmatprep.subr.mxu0 0.0
    %356 = vmatpush1.msra.mxu0 0.0
    %357 = vmatprep.subr.mxu0 0.0
    %358 = vmatpush1.msra.mxu0 0.0
    %359 = vmatprep.subr.mxu0 0.0
    %360 = vmatpush1.msra.mxu0 0.0
    %361 = vmatprep.subr.mxu0 0.0
    %362 = vmatpush1.msra.mxu0 0.0
    %363 = vmatprep.subr.mxu0 0.0
    %364 = vmatpush1.msra.mxu0 0.0
    %365 = vmatprep.subr.mxu0 0.0
    %366 = vmatpush1.msra.mxu0 0.0
    %367 = vmatprep.subr.mxu0 0.0
    %368 = vmatpush1.msra.mxu0 0.0
    %369 = vmatprep.subr.mxu0 0.0
    %370 = vmatpush1.msra.mxu0 0.0
    %371 = vmatprep.subr.mxu0 0.0
    %372 = vmatpush1.msra.mxu0 0.0
    %373 = vmatprep.subr.mxu0 0.0
    %374 = vmatpush1.msra.mxu0 0.0
    %375 = vmatprep.subr.mxu0 0.0
    %376 = vmatpush1.msra.mxu0 0.0
    %377 = vmatprep.subr.mxu0 0.0
    %378 = vmatpush1.msra.mxu0 0.0
    %379 = vmatprep.subr.mxu0 0.0
    %380 = vmatpush1.msra.mxu0 0.0
    %381 = vmatprep.subr.mxu0 0.0
    %382 = vmatpush1.msra.mxu0 0.0
    %383 = vmatprep.subr.mxu0 0.0
    %384 = vmatpush1.msra.mxu0 0.0
    %385 = vmatprep.subr.mxu0 0.0
    %386 = vmatpush1.msra.mxu0 0.0
    %387 = vmatprep.subr.mxu0 0.0
    %388 = vmatpush1.msra.mxu0 0.0
    %389 = vmatprep.subr.mxu0 0.0
    %390 = vmatpush1.msra.mxu0 0.0
    %391 = vmatprep.subr.mxu0 0.0
    %392 = vmatpush1.msra.mxu0 0.0
    %393 = vmatprep.subr.mxu0 0.0
    %394 = vmatpush1.msra.mxu0 0.0
    %395 = vmatprep.subr.mxu0 0.0
    %396 = vmatpush1.msra.mxu0 0.0
    %397 = vmatprep.subr.mxu0 0.0
    %398 = vmatpush1.msra.mxu0 0.0
    %399 = vmatprep.subr.mxu0 0.0
    %400 = vmatpush1.msra.mxu0 0.0
    %401 = vmatprep.subr.mxu0 0.0
    %402 = vmatpush1.msra.mxu0 0.0
    %403 = vmatprep.mubr.f32.mxu0 0.0
    %v404 = vand.u32 %v75, 4294901760
    %v405 = vsub.f32 %v75, %v404
    %v406 = vand.u32 %v405, 4294901760
    %407 = vmatmul.mubr.f32.gmra.mrb[0].mxu0 %v406
    %v408 = vpop.f32.mrb[0].mxu0
    %v409 = vadd.f32 %v327, %v408
    %v410 = vpop.f32.mrb[0].mxu0
    %411 = vmatprep.mubr.f32.mxu0 0.0
    %v412 = vand.u32 %v78, 4294901760
    %v413 = vsub.f32 %v78, %v412
    %v414 = vand.u32 %v413, 4294901760
    %415 = vmatmul.mubr.f32.gmra.mrb[0].mxu0 %v414
    %v416 = vpop.f32.mrb[0].mxu0
    %v417 = vadd.f32 %v334, %v416
    %v418 = vpop.f32.mrb[0].mxu0
    %419 = vdwg.mxu0
    %420 = vmatprep.subr.mxu0 0.0
    %v421 = vand.u32 %v61, 4294901760
    %v422 = vsub.f32 %v61, %v421
    %v423 = vand.u32 %v422, 4294901760
    %424 = vmatpush1.msra.mxu0 %v423
    %425 = vmatprep.subr.mxu0 0.0
    %v426 = vand.u32 %v62, 4294901760
    %v427 = vsub.f32 %v62, %v426
    %v428 = vand.u32 %v427, 4294901760
    %429 = vmatpush1.msra.mxu0 %v428
    %430 = vmatprep.subr.mxu0 0.0
    %431 = vmatpush1.msra.mxu0 0.0
    %432 = vmatprep.subr.mxu0 0.0
    %433 = vmatpush1.msra.mxu0 0.0
    %434 = vmatprep.subr.mxu0 0.0
    %435 = vmatpush1.msra.mxu0 0.0
    %436 = vmatprep.subr.mxu0 0.0
    %437 = vmatpush1.msra.mxu0 0.0
    %438 = vmatprep.subr.mxu0 0.0
    %439 = vmatpush1.msra.mxu0 0.0
    %440 = vmatprep.subr.mxu0 0.0
    %441 = vmatpush1.msra.mxu0 0.0
    %442 = vmatprep.subr.mxu0 0.0
    %443 = vmatpush1.msra.mxu0 0.0
    %444 = vmatprep.subr.mxu0 0.0
    %445 = vmatpush1.msra.mxu0 0.0
    %446 = vmatprep.subr.mxu0 0.0
    %447 = vmatpush1.msra.mxu0 0.0
    %448 = vmatprep.subr.mxu0 0.0
    %449 = vmatpush1.msra.mxu0 0.0
    %450 = vmatprep.subr.mxu0 0.0
    %451 = vmatpush1.msra.mxu0 0.0
    %452 = vmatprep.subr.mxu0 0.0
    %453 = vmatpush1.msra.mxu0 0.0
    %454 = vmatprep.subr.mxu0 0.0
    %455 = vmatpush1.msra.mxu0 0.0
    %456 = vmatprep.subr.mxu0 0.0
    %457 = vmatpush1.msra.mxu0 0.0
    %458 = vmatprep.subr.mxu0 0.0
    %459 = vmatpush1.msra.mxu0 0.0
    %460 = vmatprep.subr.mxu0 0.0
    %461 = vmatpush1.msra.mxu0 0.0
    %462 = vmatprep.subr.mxu0 0.0
    %463 = vmatpush1.msra.mxu0 0.0
    %464 = vmatprep.subr.mxu0 0.0
    %465 = vmatpush1.msra.mxu0 0.0
    %466 = vmatprep.subr.mxu0 0.0
    %467 = vmatpush1.msra.mxu0 0.0
    %468 = vmatprep.subr.mxu0 0.0
    %469 = vmatpush1.msra.mxu0 0.0
    %470 = vmatprep.subr.mxu0 0.0
    %471 = vmatpush1.msra.mxu0 0.0
    %472 = vmatprep.subr.mxu0 0.0
    %473 = vmatpush1.msra.mxu0 0.0
    %474 = vmatprep.subr.mxu0 0.0
    %475 = vmatpush1.msra.mxu0 0.0
    %476 = vmatprep.subr.mxu0 0.0
    %477 = vmatpush1.msra.mxu0 0.0
    %478 = vmatprep.subr.mxu0 0.0
    %479 = vmatpush1.msra.mxu0 0.0
    %480 = vmatprep.subr.mxu0 0.0
    %481 = vmatpush1.msra.mxu0 0.0
    %482 = vmatprep.subr.mxu0 0.0
    %483 = vmatpush1.msra.mxu0 0.0
    %484 = vmatprep.subr.mxu0 0.0
    %485 = vmatpush1.msra.mxu0 0.0
    %486 = vmatprep.subr.mxu0 0.0
    %487 = vmatpush1.msra.mxu0 0.0
    %488 = vmatprep.subr.mxu0 0.0
    %489 = vmatpush1.msra.mxu0 0.0
    %490 = vmatprep.mubr.f32.mxu0 0.0
    %v491 = vand.u32 %v75, 4294901760
    %492 = vmatmul.mubr.f32.gmra.mrb[0].mxu0 %v491
    %v493 = vpop.f32.mrb[0].mxu0
    %v494 = vadd.f32 %v409, %v493
    %v495 = vpop.f32.mrb[0].mxu0
    %496 = vmatprep.mubr.f32.mxu0 0.0
    %v497 = vand.u32 %v78, 4294901760
    %498 = vmatmul.mubr.f32.gmra.mrb[0].mxu0 %v497
    %v499 = vpop.f32.mrb[0].mxu0
    %v500 = vadd.f32 %v417, %v499
    %v501 = vpop.f32.mrb[0].mxu0
    %502 = vdwg.mxu0
    %503 = vmatprep.subr.mxu0 0.0
    %v504 = vand.u32 %v61, 4294901760
    %505 = vmatpush1.msra.mxu0 %v504
    %506 = vmatprep.subr.mxu0 0.0
    %v507 = vand.u32 %v62, 4294901760
    %508 = vmatpush1.msra.mxu0 %v507
    %509 = vmatprep.subr.mxu0 0.0
    %510 = vmatpush1.msra.mxu0 0.0
    %511 = vmatprep.subr.mxu0 0.0
    %512 = vmatpush1.msra.mxu0 0.0
    %513 = vmatprep.subr.mxu0 0.0
    %514 = vmatpush1.msra.mxu0 0.0
    %515 = vmatprep.subr.mxu0 0.0
    %516 = vmatpush1.msra.mxu0 0.0
    %517 = vmatprep.subr.mxu0 0.0
    %518 = vmatpush1.msra.mxu0 0.0
    %519 = vmatprep.subr.mxu0 0.0
    %520 = vmatpush1.msra.mxu0 0.0
    %521 = vmatprep.subr.mxu0 0.0
    %522 = vmatpush1.msra.mxu0 0.0
    %523 = vmatprep.subr.mxu0 0.0
    %524 = vmatpush1.msra.mxu0 0.0
    %525 = vmatprep.subr.mxu0 0.0
    %526 = vmatpush1.msra.mxu0 0.0
    %527 = vmatprep.subr.mxu0 0.0
    %528 = vmatpush1.msra.mxu0 0.0
    %529 = vmatprep.subr.mxu0 0.0
    %530 = vmatpush1.msra.mxu0 0.0
    %531 = vmatprep.subr.mxu0 0.0
    %532 = vmatpush1.msra.mxu0 0.0
    %533 = vmatprep.subr.mxu0 0.0
    %534 = vmatpush1.msra.mxu0 0.0
    %535 = vmatprep.subr.mxu0 0.0
    %536 = vmatpush1.msra.mxu0 0.0
    %537 = vmatprep.subr.mxu0 0.0
    %538 = vmatpush1.msra.mxu0 0.0
    %539 = vmatprep.subr.mxu0 0.0
    %540 = vmatpush1.msra.mxu0 0.0
    %541 = vmatprep.subr.mxu0 0.0
    %542 = vmatpush1.msra.mxu0 0.0
    %543 = vmatprep.subr.mxu0 0.0
    %544 = vmatpush1.msra.mxu0 0.0
    %545 = vmatprep.subr.mxu0 0.0
    %546 = vmatpush1.msra.mxu0 0.0
    %547 = vmatprep.subr.mxu0 0.0
    %548 = vmatpush1.msra.mxu0 0.0
    %549 = vmatprep.subr.mxu0 0.0
    %550 = vmatpush1.msra.mxu0 0.0
    %551 = vmatprep.subr.mxu0 0.0
    %552 = vmatpush1.msra.mxu0 0.0
    %553 = vmatprep.subr.mxu0 0.0
    %554 = vmatpush1.msra.mxu0 0.0
    %555 = vmatprep.subr.mxu0 0.0
    %556 = vmatpush1.msra.mxu0 0.0
    %557 = vmatprep.subr.mxu0 0.0
    %558 = vmatpush1.msra.mxu0 0.0
    %559 = vmatprep.subr.mxu0 0.0
    %560 = vmatpush1.msra.mxu0 0.0
    %561 = vmatprep.subr.mxu0 0.0
    %562 = vmatpush1.msra.mxu0 0.0
    %563 = vmatprep.subr.mxu0 0.0
    %564 = vmatpush1.msra.mxu0 0.0
    %565 = vmatprep.subr.mxu0 0.0
    %566 = vmatpush1.msra.mxu0 0.0
    %567 = vmatprep.subr.mxu0 0.0
    %568 = vmatpush1.msra.mxu0 0.0
    %569 = vmatprep.mubr.f32.mxu0 0.0
    %v570 = vand.u32 %v75, 4294901760
    %571 = vmatmul.mubr.f32.gmra.mrb[0].mxu0 %v570
    %v572 = vpop.f32.mrb[0].mxu0
    %v573 = vadd.f32 %v494, %v572
    %v574 = vpop.f32.mrb[0].mxu0
    %575 = vmatprep.mubr.f32.mxu0 0.0
    %v576 = vand.u32 %v78, 4294901760
    %577 = vmatmul.mubr.f32.gmra.mrb[0].mxu0 %v576
    %v578 = vpop.f32.mrb[0].mxu0
    %v579 = vadd.f32 %v500, %v578
    %v580 = vpop.f32.mrb[0].mxu0
    %581 = vdwg.mxu0
    %v582 = vmax.f32 %v573, 0.0
    %v583 = vmax.f32 %v579, 0.0
    %v584 = vld [vmem:[%s0] sm:$0xff]
    %v585 = vlaneseq
    %v586 = vshrl.u32 %v585, 7
    %v587 = vsub.s32 0, %v586
    %v588 = vrot.slane %v584, %v587
    %v589 = vlaneseq
    %v590 = vshrl.u32 %v589, 7
    %v591 = vsub.s32 1, %v590
    %v592 = vrot.slane %v584, %v591
    %v593 = vlaneseq
    %v594 = vshrl.u32 %v593, 7
    %v595 = vsub.s32 2, %v594
    %v596 = vrot.slane %v584, %v595
    %v597 = vlaneseq
    %v598 = vshrl.u32 %v597, 7
    %v599 = vsub.s32 3, %v598
    %v600 = vrot.slane %v584, %v599
    %v601 = vlaneseq
    %v602 = vshrl.u32 %v601, 7
    %v603 = vsub.s32 4, %v602
    %v604 = vrot.slane %v584, %v603
    %v605 = vlaneseq
    %v606 = vshrl.u32 %v605, 7
    %v607 = vsub.s32 5, %v606
    %v608 = vrot.slane %v584, %v607
    %v609 = vlaneseq
    %v610 = vshrl.u32 %v609, 7
    %v611 = vsub.s32 6, %v610
    %v612 = vrot.slane %v584, %v611
    %v613 = vlaneseq
    %v614 = vshrl.u32 %v613, 7
    %v615 = vsub.s32 7, %v614
    %v616 = vrot.slane %v584, %v615
    %vm617 = vcmp.eq.s32.totalorder %v45, %v588
    %vm618 = vcmp.eq.s32.totalorder %v45, %v592
    %vm619 = vcmp.eq.s32.totalorder %v45, %v596
    %vm620 = vcmp.eq.s32.totalorder %v45, %v600
    %vm621 = vcmp.eq.s32.totalorder %v45, %v604
    %vm622 = vcmp.eq.s32.totalorder %v45, %v608
    %vm623 = vcmp.eq.s32.totalorder %v45, %v612
    %vm624 = vcmp.eq.s32.totalorder %v45, %v616
    %vm625 = vcmp.eq.s32.totalorder %v46, %v588
    %vm626 = vcmp.eq.s32.totalorder %v46, %v592
    %vm627 = vcmp.eq.s32.totalorder %v46, %v596
    %vm628 = vcmp.eq.s32.totalorder %v46, %v600
    %vm629 = vcmp.eq.s32.totalorder %v46, %v604
    %vm630 = vcmp.eq.s32.totalorder %v46, %v608
    %vm631 = vcmp.eq.s32.totalorder %v46, %v612
    %vm632 = vcmp.eq.s32.totalorder %v46, %v616
    %vm633 = vcmp.eq.s32.totalorder %v47, %v588
    %vm634 = vcmp.eq.s32.totalorder %v47, %v592
    %vm635 = vcmp.eq.s32.totalorder %v47, %v596
    %vm636 = vcmp.eq.s32.totalorder %v47, %v600
    %vm637 = vcmp.eq.s32.totalorder %v47, %v604
    %vm638 = vcmp.eq.s32.totalorder %v47, %v608
    %vm639 = vcmp.eq.s32.totalorder %v47, %v612
    %vm640 = vcmp.eq.s32.totalorder %v47, %v616
    %vm641 = vcmp.eq.s32.totalorder %v48, %v588
    %vm642 = vcmp.eq.s32.totalorder %v48, %v592
    %vm643 = vcmp.eq.s32.totalorder %v48, %v596
    %vm644 = vcmp.eq.s32.totalorder %v48, %v600
    %vm645 = vcmp.eq.s32.totalorder %v48, %v604
    %vm646 = vcmp.eq.s32.totalorder %v48, %v608
    %vm647 = vcmp.eq.s32.totalorder %v48, %v612
    %vm648 = vcmp.eq.s32.totalorder %v48, %v616
    %vm649 = vcmp.eq.s32.totalorder %v49, %v588
    %vm650 = vcmp.eq.s32.totalorder %v49, %v592
    %vm651 = vcmp.eq.s32.totalorder %v49, %v596
    %vm652 = vcmp.eq.s32.totalorder %v49, %v600
    %vm653 = vcmp.eq.s32.totalorder %v49, %v604
    %vm654 = vcmp.eq.s32.totalorder %v49, %v608
    %vm655 = vcmp.eq.s32.totalorder %v49, %v612
    %vm656 = vcmp.eq.s32.totalorder %v49, %v616
    %vm657 = vcmp.eq.s32.totalorder %v50, %v588
    %vm658 = vcmp.eq.s32.totalorder %v50, %v592
    %vm659 = vcmp.eq.s32.totalorder %v50, %v596
    %vm660 = vcmp.eq.s32.totalorder %v50, %v600
    %vm661 = vcmp.eq.s32.totalorder %v50, %v604
    %vm662 = vcmp.eq.s32.totalorder %v50, %v608
    %vm663 = vcmp.eq.s32.totalorder %v50, %v612
    %vm664 = vcmp.eq.s32.totalorder %v50, %v616
    %vm665 = vcmp.eq.s32.totalorder %v51, %v588
    %vm666 = vcmp.eq.s32.totalorder %v51, %v592
    %vm667 = vcmp.eq.s32.totalorder %v51, %v596
    %vm668 = vcmp.eq.s32.totalorder %v51, %v600
    %vm669 = vcmp.eq.s32.totalorder %v51, %v604
    %vm670 = vcmp.eq.s32.totalorder %v51, %v608
    %vm671 = vcmp.eq.s32.totalorder %v51, %v612
    %vm672 = vcmp.eq.s32.totalorder %v51, %v616
    %vm673 = vcmp.eq.s32.totalorder %v52, %v588
    %vm674 = vcmp.eq.s32.totalorder %v52, %v592
    %vm675 = vcmp.eq.s32.totalorder %v52, %v596
    %vm676 = vcmp.eq.s32.totalorder %v52, %v600
    %vm677 = vcmp.eq.s32.totalorder %v52, %v604
    %vm678 = vcmp.eq.s32.totalorder %v52, %v608
    %vm679 = vcmp.eq.s32.totalorder %v52, %v612
    %vm680 = vcmp.eq.s32.totalorder %v52, %v616
    %vm681 = vcmp.eq.s32.totalorder %v53, %v588
    %vm682 = vcmp.eq.s32.totalorder %v53, %v592
    %vm683 = vcmp.eq.s32.totalorder %v53, %v596
    %vm684 = vcmp.eq.s32.totalorder %v53, %v600
    %vm685 = vcmp.eq.s32.totalorder %v53, %v604
    %vm686 = vcmp.eq.s32.totalorder %v53, %v608
    %vm687 = vcmp.eq.s32.totalorder %v53, %v612
    %vm688 = vcmp.eq.s32.totalorder %v53, %v616
    %vm689 = vcmp.eq.s32.totalorder %v54, %v588
    %vm690 = vcmp.eq.s32.totalorder %v54, %v592
    %vm691 = vcmp.eq.s32.totalorder %v54, %v596
    %vm692 = vcmp.eq.s32.totalorder %v54, %v600
    %vm693 = vcmp.eq.s32.totalorder %v54, %v604
    %vm694 = vcmp.eq.s32.totalorder %v54, %v608
    %vm695 = vcmp.eq.s32.totalorder %v54, %v612
    %vm696 = vcmp.eq.s32.totalorder %v54, %v616
    %vm697 = vcmp.eq.s32.totalorder %v55, %v588
    %vm698 = vcmp.eq.s32.totalorder %v55, %v592
    %vm699 = vcmp.eq.s32.totalorder %v55, %v596
    %vm700 = vcmp.eq.s32.totalorder %v55, %v600
    %vm701 = vcmp.eq.s32.totalorder %v55, %v604
    %vm702 = vcmp.eq.s32.totalorder %v55, %v608
    %vm703 = vcmp.eq.s32.totalorder %v55, %v612
    %vm704 = vcmp.eq.s32.totalorder %v55, %v616
    %vm705 = vcmp.eq.s32.totalorder %v56, %v588
    %vm706 = vcmp.eq.s32.totalorder %v56, %v592
    %vm707 = vcmp.eq.s32.totalorder %v56, %v596
    %vm708 = vcmp.eq.s32.totalorder %v56, %v600
    %vm709 = vcmp.eq.s32.totalorder %v56, %v604
    %vm710 = vcmp.eq.s32.totalorder %v56, %v608
    %vm711 = vcmp.eq.s32.totalorder %v56, %v612
    %vm712 = vcmp.eq.s32.totalorder %v56, %v616
    %vm713 = vcmp.eq.s32.totalorder %v57, %v588
    %vm714 = vcmp.eq.s32.totalorder %v57, %v592
    %vm715 = vcmp.eq.s32.totalorder %v57, %v596
    %vm716 = vcmp.eq.s32.totalorder %v57, %v600
    %vm717 = vcmp.eq.s32.totalorder %v57, %v604
    %vm718 = vcmp.eq.s32.totalorder %v57, %v608
    %vm719 = vcmp.eq.s32.totalorder %v57, %v612
    %vm720 = vcmp.eq.s32.totalorder %v57, %v616
    %vm721 = vcmp.eq.s32.totalorder %v58, %v588
    %vm722 = vcmp.eq.s32.totalorder %v58, %v592
    %vm723 = vcmp.eq.s32.totalorder %v58, %v596
    %vm724 = vcmp.eq.s32.totalorder %v58, %v600
    %vm725 = vcmp.eq.s32.totalorder %v58, %v604
    %vm726 = vcmp.eq.s32.totalorder %v58, %v608
    %vm727 = vcmp.eq.s32.totalorder %v58, %v612
    %vm728 = vcmp.eq.s32.totalorder %v58, %v616
    %vm729 = vcmp.eq.s32.totalorder %v59, %v588
    %vm730 = vcmp.eq.s32.totalorder %v59, %v592
    %vm731 = vcmp.eq.s32.totalorder %v59, %v596
    %vm732 = vcmp.eq.s32.totalorder %v59, %v600
    %vm733 = vcmp.eq.s32.totalorder %v59, %v604
    %vm734 = vcmp.eq.s32.totalorder %v59, %v608
    %vm735 = vcmp.eq.s32.totalorder %v59, %v612
    %vm736 = vcmp.eq.s32.totalorder %v59, %v616
    %vm737 = vcmp.eq.s32.totalorder %v60, %v588
    %vm738 = vcmp.eq.s32.totalorder %v60, %v592
    %vm739 = vcmp.eq.s32.totalorder %v60, %v596
    %vm740 = vcmp.eq.s32.totalorder %v60, %v600
    %vm741 = vcmp.eq.s32.totalorder %v60, %v604
    %vm742 = vcmp.eq.s32.totalorder %v60, %v608
    %vm743 = vcmp.eq.s32.totalorder %v60, %v612
    %vm744 = vcmp.eq.s32.totalorder %v60, %v616
    %v745 = vsel %vm617, 1, 0
    %v746 = vsel %vm618, 1, 0
    %v747 = vsel %vm619, 1, 0
    %v748 = vsel %vm620, 1, 0
    %v749 = vsel %vm621, 1, 0
    %v750 = vsel %vm622, 1, 0
    %v751 = vsel %vm623, 1, 0
    %v752 = vsel %vm624, 1, 0
    %v753 = vsel %vm625, 1, 0
    %v754 = vsel %vm626, 1, 0
    %v755 = vsel %vm627, 1, 0
    %v756 = vsel %vm628, 1, 0
    %v757 = vsel %vm629, 1, 0
    %v758 = vsel %vm630, 1, 0
    %v759 = vsel %vm631, 1, 0
    %v760 = vsel %vm632, 1, 0
    %v761 = vsel %vm633, 1, 0
    %v762 = vsel %vm634, 1, 0
    %v763 = vsel %vm635, 1, 0
    %v764 = vsel %vm636, 1, 0
    %v765 = vsel %vm637, 1, 0
    %v766 = vsel %vm638, 1, 0
    %v767 = vsel %vm639, 1, 0
    %v768 = vsel %vm640, 1, 0
    %v769 = vsel %vm641, 1, 0
    %v770 = vsel %vm642, 1, 0
    %v771 = vsel %vm643, 1, 0
    %v772 = vsel %vm644, 1, 0
    %v773 = vsel %vm645, 1, 0
    %v774 = vsel %vm646, 1, 0
    %v775 = vsel %vm647, 1, 0
    %v776 = vsel %vm648, 1, 0
    %v777 = vsel %vm649, 1, 0
    %v778 = vsel %vm650, 1, 0
    %v779 = vsel %vm651, 1, 0
    %v780 = vsel %vm652, 1, 0
    %v781 = vsel %vm653, 1, 0
    %v782 = vsel %vm654, 1, 0
    %v783 = vsel %vm655, 1, 0
    %v784 = vsel %vm656, 1, 0
    %v785 = vsel %vm657, 1, 0
    %v786 = vsel %vm658, 1, 0
    %v787 = vsel %vm659, 1, 0
    %v788 = vsel %vm660, 1, 0
    %v789 = vsel %vm661, 1, 0
    %v790 = vsel %vm662, 1, 0
    %v791 = vsel %vm663, 1, 0
    %v792 = vsel %vm664, 1, 0
    %v793 = vsel %vm665, 1, 0
    %v794 = vsel %vm666, 1, 0
    %v795 = vsel %vm667, 1, 0
    %v796 = vsel %vm668, 1, 0
    %v797 = vsel %vm669, 1, 0
    %v798 = vsel %vm670, 1, 0
    %v799 = vsel %vm671, 1, 0
    %v800 = vsel %vm672, 1, 0
    %v801 = vsel %vm673, 1, 0
    %v802 = vsel %vm674, 1, 0
    %v803 = vsel %vm675, 1, 0
    %v804 = vsel %vm676, 1, 0
    %v805 = vsel %vm677, 1, 0
    %v806 = vsel %vm678, 1, 0
    %v807 = vsel %vm679, 1, 0
    %v808 = vsel %vm680, 1, 0
    %v809 = vsel %vm681, 1, 0
    %v810 = vsel %vm682, 1, 0
    %v811 = vsel %vm683, 1, 0
    %v812 = vsel %vm684, 1, 0
    %v813 = vsel %vm685, 1, 0
    %v814 = vsel %vm686, 1, 0
    %v815 = vsel %vm687, 1, 0
    %v816 = vsel %vm688, 1, 0
    %v817 = vsel %vm689, 1, 0
    %v818 = vsel %vm690, 1, 0
    %v819 = vsel %vm691, 1, 0
    %v820 = vsel %vm692, 1, 0
    %v821 = vsel %vm693, 1, 0
    %v822 = vsel %vm694, 1, 0
    %v823 = vsel %vm695, 1, 0
    %v824 = vsel %vm696, 1, 0
    %v825 = vsel %vm697, 1, 0
    %v826 = vsel %vm698, 1, 0
    %v827 = vsel %vm699, 1, 0
    %v828 = vsel %vm700, 1, 0
    %v829 = vsel %vm701, 1, 0
    %v830 = vsel %vm702, 1, 0
    %v831 = vsel %vm703, 1, 0
    %v832 = vsel %vm704, 1, 0
    %v833 = vsel %vm705, 1, 0
    %v834 = vsel %vm706, 1, 0
    %v835 = vsel %vm707, 1, 0
    %v836 = vsel %vm708, 1, 0
    %v837 = vsel %vm709, 1, 0
    %v838 = vsel %vm710, 1, 0
    %v839 = vsel %vm711, 1, 0
    %v840 = vsel %vm712, 1, 0
    %v841 = vsel %vm713, 1, 0
    %v842 = vsel %vm714, 1, 0
    %v843 = vsel %vm715, 1, 0
    %v844 = vsel %vm716, 1, 0
    %v845 = vsel %vm717, 1, 0
    %v846 = vsel %vm718, 1, 0
    %v847 = vsel %vm719, 1, 0
    %v848 = vsel %vm720, 1, 0
    %v849 = vsel %vm721, 1, 0
    %v850 = vsel %vm722, 1, 0
    %v851 = vsel %vm723, 1, 0
    %v852 = vsel %vm724, 1, 0
    %v853 = vsel %vm725, 1, 0
    %v854 = vsel %vm726, 1, 0
    %v855 = vsel %vm727, 1, 0
    %v856 = vsel %vm728, 1, 0
    %v857 = vsel %vm729, 1, 0
    %v858 = vsel %vm730, 1, 0
    %v859 = vsel %vm731, 1, 0
    %v860 = vsel %vm732, 1, 0
    %v861 = vsel %vm733, 1, 0
    %v862 = vsel %vm734, 1, 0
    %v863 = vsel %vm735, 1, 0
    %v864 = vsel %vm736, 1, 0
    %v865 = vsel %vm737, 1, 0
    %v866 = vsel %vm738, 1, 0
    %v867 = vsel %vm739, 1, 0
    %v868 = vsel %vm740, 1, 0
    %v869 = vsel %vm741, 1, 0
    %v870 = vsel %vm742, 1, 0
    %v871 = vsel %vm743, 1, 0
    %v872 = vsel %vm744, 1, 0
    %v873 = vcvt.s32.f32 %v745
    %v874 = vcvt.s32.f32 %v746
    %v875 = vcvt.s32.f32 %v747
    %v876 = vcvt.s32.f32 %v748
    %v877 = vcvt.s32.f32 %v749
    %v878 = vcvt.s32.f32 %v750
    %v879 = vcvt.s32.f32 %v751
    %v880 = vcvt.s32.f32 %v752
    %v881 = vcvt.s32.f32 %v753
    %v882 = vcvt.s32.f32 %v754
    %v883 = vcvt.s32.f32 %v755
    %v884 = vcvt.s32.f32 %v756
    %v885 = vcvt.s32.f32 %v757
    %v886 = vcvt.s32.f32 %v758
    %v887 = vcvt.s32.f32 %v759
    %v888 = vcvt.s32.f32 %v760
    %v889 = vcvt.s32.f32 %v761
    %v890 = vcvt.s32.f32 %v762
    %v891 = vcvt.s32.f32 %v763
    %v892 = vcvt.s32.f32 %v764
    %v893 = vcvt.s32.f32 %v765
    %v894 = vcvt.s32.f32 %v766
    %v895 = vcvt.s32.f32 %v767
    %v896 = vcvt.s32.f32 %v768
    %v897 = vcvt.s32.f32 %v769
    %v898 = vcvt.s32.f32 %v770
    %v899 = vcvt.s32.f32 %v771
    %v900 = vcvt.s32.f32 %v772
    %v901 = vcvt.s32.f32 %v773
    %v902 = vcvt.s32.f32 %v774
    %v903 = vcvt.s32.f32 %v775
    %v904 = vcvt.s32.f32 %v776
    %v905 = vcvt.s32.f32 %v777
    %v906 = vcvt.s32.f32 %v778
    %v907 = vcvt.s32.f32 %v779
    %v908 = vcvt.s32.f32 %v780
    %v909 = vcvt.s32.f32 %v781
    %v910 = vcvt.s32.f32 %v782
    %v911 = vcvt.s32.f32 %v783
    %v912 = vcvt.s32.f32 %v784
    %v913 = vcvt.s32.f32 %v785
    %v914 = vcvt.s32.f32 %v786
    %v915 = vcvt.s32.f32 %v787
    %v916 = vcvt.s32.f32 %v788
    %v917 = vcvt.s32.f32 %v789
    %v918 = vcvt.s32.f32 %v790
    %v919 = vcvt.s32.f32 %v791
    %v920 = vcvt.s32.f32 %v792
    %v921 = vcvt.s32.f32 %v793
    %v922 = vcvt.s32.f32 %v794
    %v923 = vcvt.s32.f32 %v795
    %v924 = vcvt.s32.f32 %v796
    %v925 = vcvt.s32.f32 %v797
    %v926 = vcvt.s32.f32 %v798
    %v927 = vcvt.s32.f32 %v799
    %v928 = vcvt.s32.f32 %v800
    %v929 = vcvt.s32.f32 %v801
    %v930 = vcvt.s32.f32 %v802
    %v931 = vcvt.s32.f32 %v803
    %v932 = vcvt.s32.f32 %v804
    %v933 = vcvt.s32.f32 %v805
    %v934 = vcvt.s32.f32 %v806
    %v935 = vcvt.s32.f32 %v807
    %v936 = vcvt.s32.f32 %v808
    %v937 = vcvt.s32.f32 %v809
    %v938 = vcvt.s32.f32 %v810
    %v939 = vcvt.s32.f32 %v811
    %v940 = vcvt.s32.f32 %v812
    %v941 = vcvt.s32.f32 %v813
    %v942 = vcvt.s32.f32 %v814
    %v943 = vcvt.s32.f32 %v815
    %v944 = vcvt.s32.f32 %v816
    %v945 = vcvt.s32.f32 %v817
    %v946 = vcvt.s32.f32 %v818
    %v947 = vcvt.s32.f32 %v819
    %v948 = vcvt.s32.f32 %v820
    %v949 = vcvt.s32.f32 %v821
    %v950 = vcvt.s32.f32 %v822
    %v951 = vcvt.s32.f32 %v823
    %v952 = vcvt.s32.f32 %v824
    %v953 = vcvt.s32.f32 %v825
    %v954 = vcvt.s32.f32 %v826
    %v955 = vcvt.s32.f32 %v827
    %v956 = vcvt.s32.f32 %v828
    %v957 = vcvt.s32.f32 %v829
    %v958 = vcvt.s32.f32 %v830
    %v959 = vcvt.s32.f32 %v831
    %v960 = vcvt.s32.f32 %v832
    %v961 = vcvt.s32.f32 %v833
    %v962 = vcvt.s32.f32 %v834
    %v963 = vcvt.s32.f32 %v835
    %v964 = vcvt.s32.f32 %v836
    %v965 = vcvt.s32.f32 %v837
    %v966 = vcvt.s32.f32 %v838
    %v967 = vcvt.s32.f32 %v839
    %v968 = vcvt.s32.f32 %v840
    %v969 = vcvt.s32.f32 %v841
    %v970 = vcvt.s32.f32 %v842
    %v971 = vcvt.s32.f32 %v843
    %v972 = vcvt.s32.f32 %v844
    %v973 = vcvt.s32.f32 %v845
    %v974 = vcvt.s32.f32 %v846
    %v975 = vcvt.s32.f32 %v847
    %v976 = vcvt.s32.f32 %v848
    %v977 = vcvt.s32.f32 %v849
    %v978 = vcvt.s32.f32 %v850
    %v979 = vcvt.s32.f32 %v851
    %v980 = vcvt.s32.f32 %v852
    %v981 = vcvt.s32.f32 %v853
    %v982 = vcvt.s32.f32 %v854
    %v983 = vcvt.s32.f32 %v855
    %v984 = vcvt.s32.f32 %v856
    %v985 = vcvt.s32.f32 %v857
    %v986 = vcvt.s32.f32 %v858
    %v987 = vcvt.s32.f32 %v859
    %v988 = vcvt.s32.f32 %v860
    %v989 = vcvt.s32.f32 %v861
    %v990 = vcvt.s32.f32 %v862
    %v991 = vcvt.s32.f32 %v863
    %v992 = vcvt.s32.f32 %v864
    %v993 = vcvt.s32.f32 %v865
    %v994 = vcvt.s32.f32 %v866
    %v995 = vcvt.s32.f32 %v867
    %v996 = vcvt.s32.f32 %v868
    %v997 = vcvt.s32.f32 %v869
    %v998 = vcvt.s32.f32 %v870
    %v999 = vcvt.s32.f32 %v871
    %v1000 = vcvt.s32.f32 %v872
    %v1001 = vpack.c.bf16 %v881, %v873
    %v1002 = vpack.c.bf16 %v882, %v874
    %v1003 = vpack.c.bf16 %v883, %v875
    %v1004 = vpack.c.bf16 %v884, %v876
    %v1005 = vpack.c.bf16 %v885, %v877
    %v1006 = vpack.c.bf16 %v886, %v878
    %v1007 = vpack.c.bf16 %v887, %v879
    %v1008 = vpack.c.bf16 %v888, %v880
    %v1009 = vpack.c.bf16 %v897, %v889
    %v1010 = vpack.c.bf16 %v898, %v890
    %v1011 = vpack.c.bf16 %v899, %v891
    %v1012 = vpack.c.bf16 %v900, %v892
    %v1013 = vpack.c.bf16 %v901, %v893
    %v1014 = vpack.c.bf16 %v902, %v894
    %v1015 = vpack.c.bf16 %v903, %v895
    %v1016 = vpack.c.bf16 %v904, %v896
    %v1017 = vpack.c.bf16 %v913, %v905
    %v1018 = vpack.c.bf16 %v914, %v906
    %v1019 = vpack.c.bf16 %v915, %v907
    %v1020 = vpack.c.bf16 %v916, %v908
    %v1021 = vpack.c.bf16 %v917, %v909
    %v1022 = vpack.c.bf16 %v918, %v910
    %v1023 = vpack.c.bf16 %v919, %v911
    %v1024 = vpack.c.bf16 %v920, %v912
    %v1025 = vpack.c.bf16 %v929, %v921
    %v1026 = vpack.c.bf16 %v930, %v922
    %v1027 = vpack.c.bf16 %v931, %v923
    %v1028 = vpack.c.bf16 %v932, %v924
    %v1029 = vpack.c.bf16 %v933, %v925
    %v1030 = vpack.c.bf16 %v934, %v926
    %v1031 = vpack.c.bf16 %v935, %v927
    %v1032 = vpack.c.bf16 %v936, %v928
    %v1033 = vpack.c.bf16 %v945, %v937
    %v1034 = vpack.c.bf16 %v946, %v938
    %v1035 = vpack.c.bf16 %v947, %v939
    %v1036 = vpack.c.bf16 %v948, %v940
    %v1037 = vpack.c.bf16 %v949, %v941
    %v1038 = vpack.c.bf16 %v950, %v942
    %v1039 = vpack.c.bf16 %v951, %v943
    %v1040 = vpack.c.bf16 %v952, %v944
    %v1041 = vpack.c.bf16 %v961, %v953
    %v1042 = vpack.c.bf16 %v962, %v954
    %v1043 = vpack.c.bf16 %v963, %v955
    %v1044 = vpack.c.bf16 %v964, %v956
    %v1045 = vpack.c.bf16 %v965, %v957
    %v1046 = vpack.c.bf16 %v966, %v958
    %v1047 = vpack.c.bf16 %v967, %v959
    %v1048 = vpack.c.bf16 %v968, %v960
    %v1049 = vpack.c.bf16 %v977, %v969
    %v1050 = vpack.c.bf16 %v978, %v970
    %v1051 = vpack.c.bf16 %v979, %v971
    %v1052 = vpack.c.bf16 %v980, %v972
    %v1053 = vpack.c.bf16 %v981, %v973
    %v1054 = vpack.c.bf16 %v982, %v974
    %v1055 = vpack.c.bf16 %v983, %v975
    %v1056 = vpack.c.bf16 %v984, %v976
    %v1057 = vpack.c.bf16 %v993, %v985
    %v1058 = vpack.c.bf16 %v994, %v986
    %v1059 = vpack.c.bf16 %v995, %v987
    %v1060 = vpack.c.bf16 %v996, %v988
    %v1061 = vpack.c.bf16 %v997, %v989
    %v1062 = vpack.c.bf16 %v998, %v990
    %v1063 = vpack.c.bf16 %v999, %v991
    %v1064 = vpack.c.bf16 %v1000, %v992
    %v1065 = vpack.c.bf16 %v583, %v582
    %v1066 = vunpack.c.l.bf16 %v1065
    %v1067 = vunpack.c.h.bf16 %v1065
    %v1068 = vsub.f32 %v582, %v1066
    %v1069 = vsub.f32 %v583, %v1067
    %v1070 = vpack.c.bf16 %v1069, %v1068
    %1071 = vmatprep.subr.bf16.mxu0 %v1002
    %1072 = vmatpush1.bf16.msra.mxu0 %v1001
    %1073 = vmatprep.subr.bf16.mxu0 %v1010
    %1074 = vmatpush1.bf16.msra.mxu0 %v1009
    %1075 = vmatprep.subr.bf16.mxu0 %v1018
    %1076 = vmatpush1.bf16.msra.mxu0 %v1017
    %1077 = vmatprep.subr.bf16.mxu0 %v1026
    %1078 = vmatpush1.bf16.msra.mxu0 %v1025
    %1079 = vmatprep.subr.bf16.mxu0 %v1034
    %1080 = vmatpush1.bf16.msra.mxu0 %v1033
    %1081 = vmatprep.subr.bf16.mxu0 %v1042
    %1082 = vmatpush1.bf16.msra.mxu0 %v1041
    %1083 = vmatprep.subr.bf16.mxu0 %v1050
    %1084 = vmatpush1.bf16.msra.mxu0 %v1049
    %1085 = vmatprep.subr.bf16.mxu0 %v1058
    %1086 = vmatpush1.bf16.msra.mxu0 %v1057
    %1087 = vmatprep.subr.bf16.mxu0 0
    %1088 = vmatpush1.bf16.msra.mxu0 0
    %1089 = vmatprep.subr.bf16.mxu0 0
    %1090 = vmatpush1.bf16.msra.mxu0 0
    %1091 = vmatprep.subr.bf16.mxu0 0
    %1092 = vmatpush1.bf16.msra.mxu0 0
    %1093 = vmatprep.subr.bf16.mxu0 0
    %1094 = vmatpush1.bf16.msra.mxu0 0
    %1095 = vmatprep.subr.bf16.mxu0 0
    %1096 = vmatpush1.bf16.msra.mxu0 0
    %1097 = vmatprep.subr.bf16.mxu0 0
    %1098 = vmatpush1.bf16.msra.mxu0 0
    %1099 = vmatprep.subr.bf16.mxu0 0
    %1100 = vmatpush1.bf16.msra.mxu0 0
    %1101 = vmatprep.subr.bf16.mxu0 0
    %1102 = vmatpush1.bf16.msra.mxu0 0
    %1103 = vmatprep.mubr.bf16.mxu0 0
    %1104 = vmatmul.mubr.bf16.gmra.mrb[0].mxu0 %v1065
    %v1105 = vpop.f32.mrb[0].mxu0
    %v1106 = vadd.f32 0.0, %v1105
    %v1107 = vpop.f32.mrb[0].mxu0
    %v1108 = vadd.f32 0.0, %v1107
    %v1109 = vpop.f32.mrb[0].mxu0
    %v1110 = vadd.f32 0.0, %v1109
    %v1111 = vpop.f32.mrb[0].mxu0
    %v1112 = vadd.f32 0.0, %v1111
    %1113 = vmatprep.mubr.bf16.mxu0 0
    %1114 = vmatmul.mubr.bf16.gmra.mrb[0].mxu0 %v1070
    %v1115 = vpop.f32.mrb[0].mxu0
    %v1116 = vadd.f32 0.0, %v1115
    %v1117 = vpop.f32.mrb[0].mxu0
    %v1118 = vadd.f32 0.0, %v1117
    %v1119 = vpop.f32.mrb[0].mxu0
    %v1120 = vadd.f32 0.0, %v1119
    %v1121 = vpop.f32.mrb[0].mxu0
    %v1122 = vadd.f32 0.0, %v1121
    %1123 = vdwg.mxu0
    %1124 = vmatprep.subr.bf16.mxu0 %v1004
    %1125 = vmatpush1.bf16.msra.mxu0 %v1003
    %1126 = vmatprep.subr.bf16.mxu0 %v1012
    %1127 = vmatpush1.bf16.msra.mxu0 %v1011
    %1128 = vmatprep.subr.bf16.mxu0 %v1020
    %1129 = vmatpush1.bf16.msra.mxu0 %v1019
    %1130 = vmatprep.subr.bf16.mxu0 %v1028
    %1131 = vmatpush1.bf16.msra.mxu0 %v1027
    %1132 = vmatprep.subr.bf16.mxu0 %v1036
    %1133 = vmatpush1.bf16.msra.mxu0 %v1035
    %1134 = vmatprep.subr.bf16.mxu0 %v1044
    %1135 = vmatpush1.bf16.msra.mxu0 %v1043
    %1136 = vmatprep.subr.bf16.mxu0 %v1052
    %1137 = vmatpush1.bf16.msra.mxu0 %v1051
    %1138 = vmatprep.subr.bf16.mxu0 %v1060
    %1139 = vmatpush1.bf16.msra.mxu0 %v1059
    %1140 = vmatprep.subr.bf16.mxu0 0
    %1141 = vmatpush1.bf16.msra.mxu0 0
    %1142 = vmatprep.subr.bf16.mxu0 0
    %1143 = vmatpush1.bf16.msra.mxu0 0
    %1144 = vmatprep.subr.bf16.mxu0 0
    %1145 = vmatpush1.bf16.msra.mxu0 0
    %1146 = vmatprep.subr.bf16.mxu0 0
    %1147 = vmatpush1.bf16.msra.mxu0 0
    %1148 = vmatprep.subr.bf16.mxu0 0
    %1149 = vmatpush1.bf16.msra.mxu0 0
    %1150 = vmatprep.subr.bf16.mxu0 0
    %1151 = vmatpush1.bf16.msra.mxu0 0
    %1152 = vmatprep.subr.bf16.mxu0 0
    %1153 = vmatpush1.bf16.msra.mxu0 0
    %1154 = vmatprep.subr.bf16.mxu0 0
    %1155 = vmatpush1.bf16.msra.mxu0 0
    %1156 = vmatprep.mubr.bf16.mxu0 0
    %1157 = vmatmul.mubr.bf16.gmra.mrb[0].mxu0 %v1065
    %v1158 = vpop.f32.mrb[0].mxu0
    %v1159 = vadd.f32 0.0, %v1158
    %v1160 = vpop.f32.mrb[0].mxu0
    %v1161 = vadd.f32 0.0, %v1160
    %v1162 = vpop.f32.mrb[0].mxu0
    %v1163 = vadd.f32 0.0, %v1162
    %v1164 = vpop.f32.mrb[0].mxu0
    %v1165 = vadd.f32 0.0, %v1164
    %1166 = vmatprep.mubr.bf16.mxu0 0
    %1167 = vmatmul.mubr.bf16.gmra.mrb[0].mxu0 %v1070
    %v1168 = vpop.f32.mrb[0].mxu0
    %v1169 = vadd.f32 0.0, %v1168
    %v1170 = vpop.f32.mrb[0].mxu0
    %v1171 = vadd.f32 0.0, %v1170
    %v1172 = vpop.f32.mrb[0].mxu0
    %v1173 = vadd.f32 0.0, %v1172
    %v1174 = vpop.f32.mrb[0].mxu0
    %v1175 = vadd.f32 0.0, %v1174
    %1176 = vdwg.mxu0
    %1177 = vmatprep.subr.bf16.mxu0 %v1006
    %1178 = vmatpush1.bf16.msra.mxu0 %v1005
    %1179 = vmatprep.subr.bf16.mxu0 %v1014
    %1180 = vmatpush1.bf16.msra.mxu0 %v1013
    %1181 = vmatprep.subr.bf16.mxu0 %v1022
    %1182 = vmatpush1.bf16.msra.mxu0 %v1021
    %1183 = vmatprep.subr.bf16.mxu0 %v1030
    %1184 = vmatpush1.bf16.msra.mxu0 %v1029
    %1185 = vmatprep.subr.bf16.mxu0 %v1038
    %1186 = vmatpush1.bf16.msra.mxu0 %v1037
    %1187 = vmatprep.subr.bf16.mxu0 %v1046
    %1188 = vmatpush1.bf16.msra.mxu0 %v1045
    %1189 = vmatprep.subr.bf16.mxu0 %v1054
    %1190 = vmatpush1.bf16.msra.mxu0 %v1053
    %1191 = vmatprep.subr.bf16.mxu0 %v1062
    %1192 = vmatpush1.bf16.msra.mxu0 %v1061
    %1193 = vmatprep.subr.bf16.mxu0 0
    %1194 = vmatpush1.bf16.msra.mxu0 0
    %1195 = vmatprep.subr.bf16.mxu0 0
    %1196 = vmatpush1.bf16.msra.mxu0 0
    %1197 = vmatprep.subr.bf16.mxu0 0
    %1198 = vmatpush1.bf16.msra.mxu0 0
    %1199 = vmatprep.subr.bf16.mxu0 0
    %1200 = vmatpush1.bf16.msra.mxu0 0
    %1201 = vmatprep.subr.bf16.mxu0 0
    %1202 = vmatpush1.bf16.msra.mxu0 0
    %1203 = vmatprep.subr.bf16.mxu0 0
    %1204 = vmatpush1.bf16.msra.mxu0 0
    %1205 = vmatprep.subr.bf16.mxu0 0
    %1206 = vmatpush1.bf16.msra.mxu0 0
    %1207 = vmatprep.subr.bf16.mxu0 0
    %1208 = vmatpush1.bf16.msra.mxu0 0
    %1209 = vmatprep.mubr.bf16.mxu0 0
    %1210 = vmatmul.mubr.bf16.gmra.mrb[0].mxu0 %v1065
    %v1211 = vpop.f32.mrb[0].mxu0
    %v1212 = vadd.f32 0.0, %v1211
    %v1213 = vpop.f32.mrb[0].mxu0
    %v1214 = vadd.f32 0.0, %v1213
    %v1215 = vpop.f32.mrb[0].mxu0
    %v1216 = vadd.f32 0.0, %v1215
    %v1217 = vpop.f32.mrb[0].mxu0
    %v1218 = vadd.f32 0.0, %v1217
    %1219 = vmatprep.mubr.bf16.mxu0 0
    %1220 = vmatmul.mubr.bf16.gmra.mrb[0].mxu0 %v1070
    %v1221 = vpop.f32.mrb[0].mxu0
    %v1222 = vadd.f32 0.0, %v1221
    %v1223 = vpop.f32.mrb[0].mxu0
    %v1224 = vadd.f32 0.0, %v1223
    %v1225 = vpop.f32.mrb[0].mxu0
    %v1226 = vadd.f32 0.0, %v1225
    %v1227 = vpop.f32.mrb[0].mxu0
    %v1228 = vadd.f32 0.0, %v1227
    %1229 = vdwg.mxu0
    %1230 = vmatprep.subr.bf16.mxu0 %v1008
    %1231 = vmatpush1.bf16.msra.mxu0 %v1007
    %1232 = vmatprep.subr.bf16.mxu0 %v1016
    %1233 = vmatpush1.bf16.msra.mxu0 %v1015
    %1234 = vmatprep.subr.bf16.mxu0 %v1024
    %1235 = vmatpush1.bf16.msra.mxu0 %v1023
    %1236 = vmatprep.subr.bf16.mxu0 %v1032
    %1237 = vmatpush1.bf16.msra.mxu0 %v1031
    %1238 = vmatprep.subr.bf16.mxu0 %v1040
    %1239 = vmatpush1.bf16.msra.mxu0 %v1039
    %1240 = vmatprep.subr.bf16.mxu0 %v1048
    %1241 = vmatpush1.bf16.msra.mxu0 %v1047
    %1242 = vmatprep.subr.bf16.mxu0 %v1056
    %1243 = vmatpush1.bf16.msra.mxu0 %v1055
    %1244 = vmatprep.subr.bf16.mxu0 %v1064
    %1245 = vmatpush1.bf16.msra.mxu0 %v1063
    %1246 = vmatprep.subr.bf16.mxu0 0
    %1247 = vmatpush1.bf16.msra.mxu0 0
    %1248 = vmatprep.subr.bf16.mxu0 0
    %1249 = vmatpush1.bf16.msra.mxu0 0
    %1250 = vmatprep.subr.bf16.mxu0 0
    %1251 = vmatpush1.bf16.msra.mxu0 0
    %1252 = vmatprep.subr.bf16.mxu0 0
    %1253 = vmatpush1.bf16.msra.mxu0 0
    %1254 = vmatprep.subr.bf16.mxu0 0
    %1255 = vmatpush1.bf16.msra.mxu0 0
    %1256 = vmatprep.subr.bf16.mxu0 0
    %1257 = vmatpush1.bf16.msra.mxu0 0
    %1258 = vmatprep.subr.bf16.mxu0 0
    %1259 = vmatpush1.bf16.msra.mxu0 0
    %1260 = vmatprep.subr.bf16.mxu0 0
    %1261 = vmatpush1.bf16.msra.mxu0 0
    %1262 = vmatprep.mubr.bf16.mxu0 0
    %1263 = vmatmul.mubr.bf16.gmra.mrb[0].mxu0 %v1065
    %v1264 = vpop.f32.mrb[0].mxu0
    %v1265 = vadd.f32 0.0, %v1264
    %v1266 = vpop.f32.mrb[0].mxu0
    %v1267 = vadd.f32 0.0, %v1266
    %v1268 = vpop.f32.mrb[0].mxu0
    %v1269 = vadd.f32 0.0, %v1268
    %v1270 = vpop.f32.mrb[0].mxu0
    %v1271 = vadd.f32 0.0, %v1270
    %1272 = vmatprep.mubr.bf16.mxu0 0
    %1273 = vmatmul.mubr.bf16.gmra.mrb[0].mxu0 %v1070
    %v1274 = vpop.f32.mrb[0].mxu0
    %v1275 = vadd.f32 0.0, %v1274
    %v1276 = vpop.f32.mrb[0].mxu0
    %v1277 = vadd.f32 0.0, %v1276
    %v1278 = vpop.f32.mrb[0].mxu0
    %v1279 = vadd.f32 0.0, %v1278
    %v1280 = vpop.f32.mrb[0].mxu0
    %v1281 = vadd.f32 0.0, %v1280
    %1282 = vdwg.mxu0
    %v1283 = vadd.f32 %v1106, %v1116
    %v1284 = vadd.f32 %v1108, %v1118
    %v1285 = vadd.f32 %v1159, %v1169
    %v1286 = vadd.f32 %v1161, %v1171
    %v1287 = vadd.f32 %v1212, %v1222
    %v1288 = vadd.f32 %v1214, %v1224
    %v1289 = vadd.f32 %v1265, %v1275
    %v1290 = vadd.f32 %v1267, %v1277
    %v1291 = vadd.f32 %v1110, %v1120
    %v1292 = vadd.f32 %v1112, %v1122
    %v1293 = vadd.f32 %v1163, %v1173
    %v1294 = vadd.f32 %v1165, %v1175
    %v1295 = vadd.f32 %v1216, %v1226
    %v1296 = vadd.f32 %v1218, %v1228
    %v1297 = vadd.f32 %v1269, %v1279
    %v1298 = vadd.f32 %v1271, %v1281
    %v1299 = vmax.f32 %v1283, %v1284
    %v1300 = vmax.f32 %v1291, %v1292
    %v1301 = vmax.f32 %v1299, %v1285
    %v1302 = vmax.f32 %v1300, %v1293
    %v1303 = vmax.f32 %v1301, %v1286
    %v1304 = vmax.f32 %v1302, %v1294
    %v1305 = vmax.f32 %v1303, %v1287
    %v1306 = vmax.f32 %v1304, %v1295
    %v1307 = vmax.f32 %v1305, %v1288
    %v1308 = vmax.f32 %v1306, %v1296
    %v1309 = vmax.f32 %v1307, %v1289
    %v1310 = vmax.f32 %v1308, %v1297
    %v1311 = vmax.f32 %v1309, %v1290
    %v1312 = vmax.f32 %v1310, %v1298
    %v1314 = vsel %vm73, %v36, 0
    %v1317 = vsel %vm73, %v37, 0
    %v1320 = vsel %vm73, %v38, 0
    %v1323 = vsel %vm73, %v39, 0
    %1325 = vmatprep.subr.mxu0 0.0
    %v1326 = vand.u32 %v1311, 4294901760
    %1327 = vmatpush1.msra.mxu0 %v1326
    %1328 = vmatprep.subr.mxu0 0.0
    %v1329 = vand.u32 %v1312, 4294901760
    %1330 = vmatpush1.msra.mxu0 %v1329
    %1331 = vmatprep.subr.mxu0 0.0
    %1332 = vmatpush1.msra.mxu0 0.0
    %1333 = vmatprep.subr.mxu0 0.0
    %1334 = vmatpush1.msra.mxu0 0.0
    %1335 = vmatprep.subr.mxu0 0.0
    %1336 = vmatpush1.msra.mxu0 0.0
    %1337 = vmatprep.subr.mxu0 0.0
    %1338 = vmatpush1.msra.mxu0 0.0
    %1339 = vmatprep.subr.mxu0 0.0
    %1340 = vmatpush1.msra.mxu0 0.0
    %1341 = vmatprep.subr.mxu0 0.0
    %1342 = vmatpush1.msra.mxu0 0.0
    %1343 = vmatprep.subr.mxu0 0.0
    %1344 = vmatpush1.msra.mxu0 0.0
    %1345 = vmatprep.subr.mxu0 0.0
    %1346 = vmatpush1.msra.mxu0 0.0
    %1347 = vmatprep.subr.mxu0 0.0
    %1348 = vmatpush1.msra.mxu0 0.0
    %1349 = vmatprep.subr.mxu0 0.0
    %1350 = vmatpush1.msra.mxu0 0.0
    %1351 = vmatprep.subr.mxu0 0.0
    %1352 = vmatpush1.msra.mxu0 0.0
    %1353 = vmatprep.subr.mxu0 0.0
    %1354 = vmatpush1.msra.mxu0 0.0
    %1355 = vmatprep.subr.mxu0 0.0
    %1356 = vmatpush1.msra.mxu0 0.0
    %1357 = vmatprep.subr.mxu0 0.0
    %1358 = vmatpush1.msra.mxu0 0.0
    %1359 = vmatprep.subr.mxu0 0.0
    %1360 = vmatpush1.msra.mxu0 0.0
    %1361 = vmatprep.subr.mxu0 0.0
    %1362 = vmatpush1.msra.mxu0 0.0
    %1363 = vmatprep.subr.mxu0 0.0
    %1364 = vmatpush1.msra.mxu0 0.0
    %1365 = vmatprep.subr.mxu0 0.0
    %1366 = vmatpush1.msra.mxu0 0.0
    %1367 = vmatprep.subr.mxu0 0.0
    %1368 = vmatpush1.msra.mxu0 0.0
    %1369 = vmatprep.subr.mxu0 0.0
    %1370 = vmatpush1.msra.mxu0 0.0
    %1371 = vmatprep.subr.mxu0 0.0
    %1372 = vmatpush1.msra.mxu0 0.0
    %1373 = vmatprep.subr.mxu0 0.0
    %1374 = vmatpush1.msra.mxu0 0.0
    %1375 = vmatprep.subr.mxu0 0.0
    %1376 = vmatpush1.msra.mxu0 0.0
    %1377 = vmatprep.subr.mxu0 0.0
    %1378 = vmatpush1.msra.mxu0 0.0
    %1379 = vmatprep.subr.mxu0 0.0
    %1380 = vmatpush1.msra.mxu0 0.0
    %1381 = vmatprep.subr.mxu0 0.0
    %1382 = vmatpush1.msra.mxu0 0.0
    %1383 = vmatprep.subr.mxu0 0.0
    %1384 = vmatpush1.msra.mxu0 0.0
    %1385 = vmatprep.subr.mxu0 0.0
    %1386 = vmatpush1.msra.mxu0 0.0
    %1387 = vmatprep.subr.mxu0 0.0
    %1388 = vmatpush1.msra.mxu0 0.0
    %1389 = vmatprep.subr.mxu0 0.0
    %1390 = vmatpush1.msra.mxu0 0.0
    %1391 = vmatprep.mubr.f32.mxu0 0.0
    %v1392 = vand.u32 %v1314, 4294901760
    %v1393 = vsub.f32 %v1314, %v1392
    %v1394 = vand.u32 %v1393, 4294901760
    %v1395 = vsub.f32 %v1393, %v1394
    %v1396 = vand.u32 %v1395, 4294901760
    %1397 = vmatmul.mubr.f32.gmra.mrb[0].mxu0 %v1396
    %v1398 = vpop.f32.mrb[0].mxu0
    %v1399 = vadd.f32 0.0, %v1398
    %v1400 = vpop.f32.mrb[0].mxu0
    %1401 = vmatprep.mubr.f32.mxu0 0.0
    %v1402 = vand.u32 %v1317, 4294901760
    %v1403 = vsub.f32 %v1317, %v1402
    %v1404 = vand.u32 %v1403, 4294901760
    %v1405 = vsub.f32 %v1403, %v1404
    %v1406 = vand.u32 %v1405, 4294901760
    %1407 = vmatmul.mubr.f32.gmra.mrb[0].mxu0 %v1406
    %v1408 = vpop.f32.mrb[0].mxu0
    %v1409 = vadd.f32 0.0, %v1408
    %v1410 = vpop.f32.mrb[0].mxu0
    %1411 = vmatprep.mubr.f32.mxu0 0.0
    %v1412 = vand.u32 %v1320, 4294901760
    %v1413 = vsub.f32 %v1320, %v1412
    %v1414 = vand.u32 %v1413, 4294901760
    %v1415 = vsub.f32 %v1413, %v1414
    %v1416 = vand.u32 %v1415, 4294901760
    %1417 = vmatmul.mubr.f32.gmra.mrb[0].mxu0 %v1416
    %v1418 = vpop.f32.mrb[0].mxu0
    %v1419 = vadd.f32 0.0, %v1418
    %v1420 = vpop.f32.mrb[0].mxu0
    %1421 = vmatprep.mubr.f32.mxu0 0.0
    %v1422 = vand.u32 %v1323, 4294901760
    %v1423 = vsub.f32 %v1323, %v1422
    %v1424 = vand.u32 %v1423, 4294901760
    %v1425 = vsub.f32 %v1423, %v1424
    %v1426 = vand.u32 %v1425, 4294901760
    %1427 = vmatmul.mubr.f32.gmra.mrb[0].mxu0 %v1426
    %v1428 = vpop.f32.mrb[0].mxu0
    %v1429 = vadd.f32 0.0, %v1428
    %v1430 = vpop.f32.mrb[0].mxu0
    %1431 = vdwg.mxu0
    %1432 = vmatprep.subr.mxu0 0.0
    %v1433 = vand.u32 %v1311, 4294901760
    %v1434 = vsub.f32 %v1311, %v1433
    %v1435 = vand.u32 %v1434, 4294901760
    %v1436 = vsub.f32 %v1434, %v1435
    %v1437 = vand.u32 %v1436, 4294901760
    %1438 = vmatpush1.msra.mxu0 %v1437
    %1439 = vmatprep.subr.mxu0 0.0
    %v1440 = vand.u32 %v1312, 4294901760
    %v1441 = vsub.f32 %v1312, %v1440
    %v1442 = vand.u32 %v1441, 4294901760
    %v1443 = vsub.f32 %v1441, %v1442
    %v1444 = vand.u32 %v1443, 4294901760
    %1445 = vmatpush1.msra.mxu0 %v1444
    %1446 = vmatprep.subr.mxu0 0.0
    %1447 = vmatpush1.msra.mxu0 0.0
    %1448 = vmatprep.subr.mxu0 0.0
    %1449 = vmatpush1.msra.mxu0 0.0
    %1450 = vmatprep.subr.mxu0 0.0
    %1451 = vmatpush1.msra.mxu0 0.0
    %1452 = vmatprep.subr.mxu0 0.0
    %1453 = vmatpush1.msra.mxu0 0.0
    %1454 = vmatprep.subr.mxu0 0.0
    %1455 = vmatpush1.msra.mxu0 0.0
    %1456 = vmatprep.subr.mxu0 0.0
    %1457 = vmatpush1.msra.mxu0 0.0
    %1458 = vmatprep.subr.mxu0 0.0
    %1459 = vmatpush1.msra.mxu0 0.0
    %1460 = vmatprep.subr.mxu0 0.0
    %1461 = vmatpush1.msra.mxu0 0.0
    %1462 = vmatprep.subr.mxu0 0.0
    %1463 = vmatpush1.msra.mxu0 0.0
    %1464 = vmatprep.subr.mxu0 0.0
    %1465 = vmatpush1.msra.mxu0 0.0
    %1466 = vmatprep.subr.mxu0 0.0
    %1467 = vmatpush1.msra.mxu0 0.0
    %1468 = vmatprep.subr.mxu0 0.0
    %1469 = vmatpush1.msra.mxu0 0.0
    %1470 = vmatprep.subr.mxu0 0.0
    %1471 = vmatpush1.msra.mxu0 0.0
    %1472 = vmatprep.subr.mxu0 0.0
    %1473 = vmatpush1.msra.mxu0 0.0
    %1474 = vmatprep.subr.mxu0 0.0
    %1475 = vmatpush1.msra.mxu0 0.0
    %1476 = vmatprep.subr.mxu0 0.0
    %1477 = vmatpush1.msra.mxu0 0.0
    %1478 = vmatprep.subr.mxu0 0.0
    %1479 = vmatpush1.msra.mxu0 0.0
    %1480 = vmatprep.subr.mxu0 0.0
    %1481 = vmatpush1.msra.mxu0 0.0
    %1482 = vmatprep.subr.mxu0 0.0
    %1483 = vmatpush1.msra.mxu0 0.0
    %1484 = vmatprep.subr.mxu0 0.0
    %1485 = vmatpush1.msra.mxu0 0.0
    %1486 = vmatprep.subr.mxu0 0.0
    %1487 = vmatpush1.msra.mxu0 0.0
    %1488 = vmatprep.subr.mxu0 0.0
    %1489 = vmatpush1.msra.mxu0 0.0
    %1490 = vmatprep.subr.mxu0 0.0
    %1491 = vmatpush1.msra.mxu0 0.0
    %1492 = vmatprep.subr.mxu0 0.0
    %1493 = vmatpush1.msra.mxu0 0.0
    %1494 = vmatprep.subr.mxu0 0.0
    %1495 = vmatpush1.msra.mxu0 0.0
    %1496 = vmatprep.subr.mxu0 0.0
    %1497 = vmatpush1.msra.mxu0 0.0
    %1498 = vmatprep.subr.mxu0 0.0
    %1499 = vmatpush1.msra.mxu0 0.0
    %1500 = vmatprep.subr.mxu0 0.0
    %1501 = vmatpush1.msra.mxu0 0.0
    %1502 = vmatprep.subr.mxu0 0.0
    %1503 = vmatpush1.msra.mxu0 0.0
    %1504 = vmatprep.subr.mxu0 0.0
    %1505 = vmatpush1.msra.mxu0 0.0
    %1506 = vmatprep.mubr.f32.mxu0 0.0
    %v1507 = vand.u32 %v1314, 4294901760
    %1508 = vmatmul.mubr.f32.gmra.mrb[0].mxu0 %v1507
    %v1509 = vpop.f32.mrb[0].mxu0
    %v1510 = vadd.f32 %v1399, %v1509
    %v1511 = vpop.f32.mrb[0].mxu0
    %1512 = vmatprep.mubr.f32.mxu0 0.0
    %v1513 = vand.u32 %v1317, 4294901760
    %1514 = vmatmul.mubr.f32.gmra.mrb[0].mxu0 %v1513
    %v1515 = vpop.f32.mrb[0].mxu0
    %v1516 = vadd.f32 %v1409, %v1515
    %v1517 = vpop.f32.mrb[0].mxu0
    %1518 = vmatprep.mubr.f32.mxu0 0.0
    %v1519 = vand.u32 %v1320, 4294901760
    %1520 = vmatmul.mubr.f32.gmra.mrb[0].mxu0 %v1519
    %v1521 = vpop.f32.mrb[0].mxu0
    %v1522 = vadd.f32 %v1419, %v1521
    %v1523 = vpop.f32.mrb[0].mxu0
    %1524 = vmatprep.mubr.f32.mxu0 0.0
    %v1525 = vand.u32 %v1323, 4294901760
    %1526 = vmatmul.mubr.f32.gmra.mrb[0].mxu0 %v1525
    %v1527 = vpop.f32.mrb[0].mxu0
    %v1528 = vadd.f32 %v1429, %v1527
    %v1529 = vpop.f32.mrb[0].mxu0
    %1530 = vdwg.mxu0
    %1531 = vmatprep.subr.mxu0 0.0
    %v1532 = vand.u32 %v1311, 4294901760
    %v1533 = vsub.f32 %v1311, %v1532
    %1534 = vmatpush1.msra.mxu0 %v1533
    %1535 = vmatprep.subr.mxu0 0.0
    %v1536 = vand.u32 %v1312, 4294901760
    %v1537 = vsub.f32 %v1312, %v1536
    %1538 = vmatpush1.msra.mxu0 %v1537
    %1539 = vmatprep.subr.mxu0 0.0
    %1540 = vmatpush1.msra.mxu0 0.0
    %1541 = vmatprep.subr.mxu0 0.0
    %1542 = vmatpush1.msra.mxu0 0.0
    %1543 = vmatprep.subr.mxu0 0.0
    %1544 = vmatpush1.msra.mxu0 0.0
    %1545 = vmatprep.subr.mxu0 0.0
    %1546 = vmatpush1.msra.mxu0 0.0
    %1547 = vmatprep.subr.mxu0 0.0
    %1548 = vmatpush1.msra.mxu0 0.0
    %1549 = vmatprep.subr.mxu0 0.0
    %1550 = vmatpush1.msra.mxu0 0.0
    %1551 = vmatprep.subr.mxu0 0.0
    %1552 = vmatpush1.msra.mxu0 0.0
    %1553 = vmatprep.subr.mxu0 0.0
    %1554 = vmatpush1.msra.mxu0 0.0
    %1555 = vmatprep.subr.mxu0 0.0
    %1556 = vmatpush1.msra.mxu0 0.0
    %1557 = vmatprep.subr.mxu0 0.0
    %1558 = vmatpush1.msra.mxu0 0.0
    %1559 = vmatprep.subr.mxu0 0.0
    %1560 = vmatpush1.msra.mxu0 0.0
    %1561 = vmatprep.subr.mxu0 0.0
    %1562 = vmatpush1.msra.mxu0 0.0
    %1563 = vmatprep.subr.mxu0 0.0
    %1564 = vmatpush1.msra.mxu0 0.0
    %1565 = vmatprep.subr.mxu0 0.0
    %1566 = vmatpush1.msra.mxu0 0.0
    %1567 = vmatprep.subr.mxu0 0.0
    %1568 = vmatpush1.msra.mxu0 0.0
    %1569 = vmatprep.subr.mxu0 0.0
    %1570 = vmatpush1.msra.mxu0 0.0
    %1571 = vmatprep.subr.mxu0 0.0
    %1572 = vmatpush1.msra.mxu0 0.0
    %1573 = vmatprep.subr.mxu0 0.0
    %1574 = vmatpush1.msra.mxu0 0.0
    %1575 = vmatprep.subr.mxu0 0.0
    %1576 = vmatpush1.msra.mxu0 0.0
    %1577 = vmatprep.subr.mxu0 0.0
    %1578 = vmatpush1.msra.mxu0 0.0
    %1579 = vmatprep.subr.mxu0 0.0
    %1580 = vmatpush1.msra.mxu0 0.0
    %1581 = vmatprep.subr.mxu0 0.0
    %1582 = vmatpush1.msra.mxu0 0.0
    %1583 = vmatprep.subr.mxu0 0.0
    %1584 = vmatpush1.msra.mxu0 0.0
    %1585 = vmatprep.subr.mxu0 0.0
    %1586 = vmatpush1.msra.mxu0 0.0
    %1587 = vmatprep.subr.mxu0 0.0
    %1588 = vmatpush1.msra.mxu0 0.0
    %1589 = vmatprep.subr.mxu0 0.0
    %1590 = vmatpush1.msra.mxu0 0.0
    %1591 = vmatprep.subr.mxu0 0.0
    %1592 = vmatpush1.msra.mxu0 0.0
    %1593 = vmatprep.subr.mxu0 0.0
    %1594 = vmatpush1.msra.mxu0 0.0
    %1595 = vmatprep.subr.mxu0 0.0
    %1596 = vmatpush1.msra.mxu0 0.0
    %1597 = vmatprep.subr.mxu0 0.0
    %1598 = vmatpush1.msra.mxu0 0.0
    %1599 = vmatprep.mubr.f32.mxu0 0.0
    %v1600 = vand.u32 %v1314, 4294901760
    %v1601 = vsub.f32 %v1314, %v1600
    %1602 = vmatmul.mubr.f32.gmra.mrb[0].mxu0 %v1601
    %v1603 = vpop.f32.mrb[0].mxu0
    %v1604 = vadd.f32 %v1510, %v1603
    %v1605 = vpop.f32.mrb[0].mxu0
    %1606 = vmatprep.mubr.f32.mxu0 0.0
    %v1607 = vand.u32 %v1317, 4294901760
    %v1608 = vsub.f32 %v1317, %v1607
    %1609 = vmatmul.mubr.f32.gmra.mrb[0].mxu0 %v1608
    %v1610 = vpop.f32.mrb[0].mxu0
    %v1611 = vadd.f32 %v1516, %v1610
    %v1612 = vpop.f32.mrb[0].mxu0
    %1613 = vmatprep.mubr.f32.mxu0 0.0
    %v1614 = vand.u32 %v1320, 4294901760
    %v1615 = vsub.f32 %v1320, %v1614
    %1616 = vmatmul.mubr.f32.gmra.mrb[0].mxu0 %v1615
    %v1617 = vpop.f32.mrb[0].mxu0
    %v1618 = vadd.f32 %v1522, %v1617
    %v1619 = vpop.f32.mrb[0].mxu0
    %1620 = vmatprep.mubr.f32.mxu0 0.0
    %v1621 = vand.u32 %v1323, 4294901760
    %v1622 = vsub.f32 %v1323, %v1621
    %1623 = vmatmul.mubr.f32.gmra.mrb[0].mxu0 %v1622
    %v1624 = vpop.f32.mrb[0].mxu0
    %v1625 = vadd.f32 %v1528, %v1624
    %v1626 = vpop.f32.mrb[0].mxu0
    %1627 = vdwg.mxu0
    %1628 = vmatprep.subr.mxu0 0.0
    %v1629 = vand.u32 %v1311, 4294901760
    %1630 = vmatpush1.msra.mxu0 %v1629
    %1631 = vmatprep.subr.mxu0 0.0
    %v1632 = vand.u32 %v1312, 4294901760
    %1633 = vmatpush1.msra.mxu0 %v1632
    %1634 = vmatprep.subr.mxu0 0.0
    %1635 = vmatpush1.msra.mxu0 0.0
    %1636 = vmatprep.subr.mxu0 0.0
    %1637 = vmatpush1.msra.mxu0 0.0
    %1638 = vmatprep.subr.mxu0 0.0
    %1639 = vmatpush1.msra.mxu0 0.0
    %1640 = vmatprep.subr.mxu0 0.0
    %1641 = vmatpush1.msra.mxu0 0.0
    %1642 = vmatprep.subr.mxu0 0.0
    %1643 = vmatpush1.msra.mxu0 0.0
    %1644 = vmatprep.subr.mxu0 0.0
    %1645 = vmatpush1.msra.mxu0 0.0
    %1646 = vmatprep.subr.mxu0 0.0
    %1647 = vmatpush1.msra.mxu0 0.0
    %1648 = vmatprep.subr.mxu0 0.0
    %1649 = vmatpush1.msra.mxu0 0.0
    %1650 = vmatprep.subr.mxu0 0.0
    %1651 = vmatpush1.msra.mxu0 0.0
    %1652 = vmatprep.subr.mxu0 0.0
    %1653 = vmatpush1.msra.mxu0 0.0
    %1654 = vmatprep.subr.mxu0 0.0
    %1655 = vmatpush1.msra.mxu0 0.0
    %1656 = vmatprep.subr.mxu0 0.0
    %1657 = vmatpush1.msra.mxu0 0.0
    %1658 = vmatprep.subr.mxu0 0.0
    %1659 = vmatpush1.msra.mxu0 0.0
    %1660 = vmatprep.subr.mxu0 0.0
    %1661 = vmatpush1.msra.mxu0 0.0
    %1662 = vmatprep.subr.mxu0 0.0
    %1663 = vmatpush1.msra.mxu0 0.0
    %1664 = vmatprep.subr.mxu0 0.0
    %1665 = vmatpush1.msra.mxu0 0.0
    %1666 = vmatprep.subr.mxu0 0.0
    %1667 = vmatpush1.msra.mxu0 0.0
    %1668 = vmatprep.subr.mxu0 0.0
    %1669 = vmatpush1.msra.mxu0 0.0
    %1670 = vmatprep.subr.mxu0 0.0
    %1671 = vmatpush1.msra.mxu0 0.0
    %1672 = vmatprep.subr.mxu0 0.0
    %1673 = vmatpush1.msra.mxu0 0.0
    %1674 = vmatprep.subr.mxu0 0.0
    %1675 = vmatpush1.msra.mxu0 0.0
    %1676 = vmatprep.subr.mxu0 0.0
    %1677 = vmatpush1.msra.mxu0 0.0
    %1678 = vmatprep.subr.mxu0 0.0
    %1679 = vmatpush1.msra.mxu0 0.0
    %1680 = vmatprep.subr.mxu0 0.0
    %1681 = vmatpush1.msra.mxu0 0.0
    %1682 = vmatprep.subr.mxu0 0.0
    %1683 = vmatpush1.msra.mxu0 0.0
    %1684 = vmatprep.subr.mxu0 0.0
    %1685 = vmatpush1.msra.mxu0 0.0
    %1686 = vmatprep.subr.mxu0 0.0
    %1687 = vmatpush1.msra.mxu0 0.0
    %1688 = vmatprep.subr.mxu0 0.0
    %1689 = vmatpush1.msra.mxu0 0.0
    %1690 = vmatprep.subr.mxu0 0.0
    %1691 = vmatpush1.msra.mxu0 0.0
    %1692 = vmatprep.subr.mxu0 0.0
    %1693 = vmatpush1.msra.mxu0 0.0
    %1694 = vmatprep.mubr.f32.mxu0 0.0
    %v1695 = vand.u32 %v1314, 4294901760
    %v1696 = vsub.f32 %v1314, %v1695
    %v1697 = vand.u32 %v1696, 4294901760
    %1698 = vmatmul.mubr.f32.gmra.mrb[0].mxu0 %v1697
    %v1699 = vpop.f32.mrb[0].mxu0
    %v1700 = vadd.f32 %v1604, %v1699
    %v1701 = vpop.f32.mrb[0].mxu0
    %1702 = vmatprep.mubr.f32.mxu0 0.0
    %v1703 = vand.u32 %v1317, 4294901760
    %v1704 = vsub.f32 %v1317, %v1703
    %v1705 = vand.u32 %v1704, 4294901760
    %1706 = vmatmul.mubr.f32.gmra.mrb[0].mxu0 %v1705
    %v1707 = vpop.f32.mrb[0].mxu0
    %v1708 = vadd.f32 %v1611, %v1707
    %v1709 = vpop.f32.mrb[0].mxu0
    %1710 = vmatprep.mubr.f32.mxu0 0.0
    %v1711 = vand.u32 %v1320, 4294901760
    %v1712 = vsub.f32 %v1320, %v1711
    %v1713 = vand.u32 %v1712, 4294901760
    %1714 = vmatmul.mubr.f32.gmra.mrb[0].mxu0 %v1713
    %v1715 = vpop.f32.mrb[0].mxu0
    %v1716 = vadd.f32 %v1618, %v1715
    %v1717 = vpop.f32.mrb[0].mxu0
    %1718 = vmatprep.mubr.f32.mxu0 0.0
    %v1719 = vand.u32 %v1323, 4294901760
    %v1720 = vsub.f32 %v1323, %v1719
    %v1721 = vand.u32 %v1720, 4294901760
    %1722 = vmatmul.mubr.f32.gmra.mrb[0].mxu0 %v1721
    %v1723 = vpop.f32.mrb[0].mxu0
    %v1724 = vadd.f32 %v1625, %v1723
    %v1725 = vpop.f32.mrb[0].mxu0
    %1726 = vdwg.mxu0
    %1727 = vmatprep.subr.mxu0 0.0
    %v1728 = vand.u32 %v1311, 4294901760
    %v1729 = vsub.f32 %v1311, %v1728
    %v1730 = vand.u32 %v1729, 4294901760
    %1731 = vmatpush1.msra.mxu0 %v1730
    %1732 = vmatprep.subr.mxu0 0.0
    %v1733 = vand.u32 %v1312, 4294901760
    %v1734 = vsub.f32 %v1312, %v1733
    %v1735 = vand.u32 %v1734, 4294901760
    %1736 = vmatpush1.msra.mxu0 %v1735
    %1737 = vmatprep.subr.mxu0 0.0
    %1738 = vmatpush1.msra.mxu0 0.0
    %1739 = vmatprep.subr.mxu0 0.0
    %1740 = vmatpush1.msra.mxu0 0.0
    %1741 = vmatprep.subr.mxu0 0.0
    %1742 = vmatpush1.msra.mxu0 0.0
    %1743 = vmatprep.subr.mxu0 0.0
    %1744 = vmatpush1.msra.mxu0 0.0
    %1745 = vmatprep.subr.mxu0 0.0
    %1746 = vmatpush1.msra.mxu0 0.0
    %1747 = vmatprep.subr.mxu0 0.0
    %1748 = vmatpush1.msra.mxu0 0.0
    %1749 = vmatprep.subr.mxu0 0.0
    %1750 = vmatpush1.msra.mxu0 0.0
    %1751 = vmatprep.subr.mxu0 0.0
    %1752 = vmatpush1.msra.mxu0 0.0
    %1753 = vmatprep.subr.mxu0 0.0
    %1754 = vmatpush1.msra.mxu0 0.0
    %1755 = vmatprep.subr.mxu0 0.0
    %1756 = vmatpush1.msra.mxu0 0.0
    %1757 = vmatprep.subr.mxu0 0.0
    %1758 = vmatpush1.msra.mxu0 0.0
    %1759 = vmatprep.subr.mxu0 0.0
    %1760 = vmatpush1.msra.mxu0 0.0
    %1761 = vmatprep.subr.mxu0 0.0
    %1762 = vmatpush1.msra.mxu0 0.0
    %1763 = vmatprep.subr.mxu0 0.0
    %1764 = vmatpush1.msra.mxu0 0.0
    %1765 = vmatprep.subr.mxu0 0.0
    %1766 = vmatpush1.msra.mxu0 0.0
    %1767 = vmatprep.subr.mxu0 0.0
    %1768 = vmatpush1.msra.mxu0 0.0
    %1769 = vmatprep.subr.mxu0 0.0
    %1770 = vmatpush1.msra.mxu0 0.0
    %1771 = vmatprep.subr.mxu0 0.0
    %1772 = vmatpush1.msra.mxu0 0.0
    %1773 = vmatprep.subr.mxu0 0.0
    %1774 = vmatpush1.msra.mxu0 0.0
    %1775 = vmatprep.subr.mxu0 0.0
    %1776 = vmatpush1.msra.mxu0 0.0
    %1777 = vmatprep.subr.mxu0 0.0
    %1778 = vmatpush1.msra.mxu0 0.0
    %1779 = vmatprep.subr.mxu0 0.0
    %1780 = vmatpush1.msra.mxu0 0.0
    %1781 = vmatprep.subr.mxu0 0.0
    %1782 = vmatpush1.msra.mxu0 0.0
    %1783 = vmatprep.subr.mxu0 0.0
    %1784 = vmatpush1.msra.mxu0 0.0
    %1785 = vmatprep.subr.mxu0 0.0
    %1786 = vmatpush1.msra.mxu0 0.0
    %1787 = vmatprep.subr.mxu0 0.0
    %1788 = vmatpush1.msra.mxu0 0.0
    %1789 = vmatprep.subr.mxu0 0.0
    %1790 = vmatpush1.msra.mxu0 0.0
    %1791 = vmatprep.subr.mxu0 0.0
    %1792 = vmatpush1.msra.mxu0 0.0
    %1793 = vmatprep.subr.mxu0 0.0
    %1794 = vmatpush1.msra.mxu0 0.0
    %1795 = vmatprep.subr.mxu0 0.0
    %1796 = vmatpush1.msra.mxu0 0.0
    %1797 = vmatprep.mubr.f32.mxu0 0.0
    %v1798 = vand.u32 %v1314, 4294901760
    %1799 = vmatmul.mubr.f32.gmra.mrb[0].mxu0 %v1798
    %v1800 = vpop.f32.mrb[0].mxu0
    %v1801 = vadd.f32 %v1700, %v1800
    %v1802 = vpop.f32.mrb[0].mxu0
    %1803 = vmatprep.mubr.f32.mxu0 0.0
    %v1804 = vand.u32 %v1317, 4294901760
    %1805 = vmatmul.mubr.f32.gmra.mrb[0].mxu0 %v1804
    %v1806 = vpop.f32.mrb[0].mxu0
    %v1807 = vadd.f32 %v1708, %v1806
    %v1808 = vpop.f32.mrb[0].mxu0
    %1809 = vmatprep.mubr.f32.mxu0 0.0
    %v1810 = vand.u32 %v1320, 4294901760
    %1811 = vmatmul.mubr.f32.gmra.mrb[0].mxu0 %v1810
    %v1812 = vpop.f32.mrb[0].mxu0
    %v1813 = vadd.f32 %v1716, %v1812
    %v1814 = vpop.f32.mrb[0].mxu0
    %1815 = vmatprep.mubr.f32.mxu0 0.0
    %v1816 = vand.u32 %v1323, 4294901760
    %1817 = vmatmul.mubr.f32.gmra.mrb[0].mxu0 %v1816
    %v1818 = vpop.f32.mrb[0].mxu0
    %v1819 = vadd.f32 %v1724, %v1818
    %v1820 = vpop.f32.mrb[0].mxu0
    %1821 = vdwg.mxu0
    %1822 = vmatprep.subr.mxu0 0.0
    %v1823 = vand.u32 %v1311, 4294901760
    %1824 = vmatpush1.msra.mxu0 %v1823
    %1825 = vmatprep.subr.mxu0 0.0
    %v1826 = vand.u32 %v1312, 4294901760
    %1827 = vmatpush1.msra.mxu0 %v1826
    %1828 = vmatprep.subr.mxu0 0.0
    %1829 = vmatpush1.msra.mxu0 0.0
    %1830 = vmatprep.subr.mxu0 0.0
    %1831 = vmatpush1.msra.mxu0 0.0
    %1832 = vmatprep.subr.mxu0 0.0
    %1833 = vmatpush1.msra.mxu0 0.0
    %1834 = vmatprep.subr.mxu0 0.0
    %1835 = vmatpush1.msra.mxu0 0.0
    %1836 = vmatprep.subr.mxu0 0.0
    %1837 = vmatpush1.msra.mxu0 0.0
    %1838 = vmatprep.subr.mxu0 0.0
    %1839 = vmatpush1.msra.mxu0 0.0
    %1840 = vmatprep.subr.mxu0 0.0
    %1841 = vmatpush1.msra.mxu0 0.0
    %1842 = vmatprep.subr.mxu0 0.0
    %1843 = vmatpush1.msra.mxu0 0.0
    %1844 = vmatprep.subr.mxu0 0.0
    %1845 = vmatpush1.msra.mxu0 0.0
    %1846 = vmatprep.subr.mxu0 0.0
    %1847 = vmatpush1.msra.mxu0 0.0
    %1848 = vmatprep.subr.mxu0 0.0
    %1849 = vmatpush1.msra.mxu0 0.0
    %1850 = vmatprep.subr.mxu0 0.0
    %1851 = vmatpush1.msra.mxu0 0.0
    %1852 = vmatprep.subr.mxu0 0.0
    %1853 = vmatpush1.msra.mxu0 0.0
    %1854 = vmatprep.subr.mxu0 0.0
    %1855 = vmatpush1.msra.mxu0 0.0
    %1856 = vmatprep.subr.mxu0 0.0
    %1857 = vmatpush1.msra.mxu0 0.0
    %1858 = vmatprep.subr.mxu0 0.0
    %1859 = vmatpush1.msra.mxu0 0.0
    %1860 = vmatprep.subr.mxu0 0.0
    %1861 = vmatpush1.msra.mxu0 0.0
    %1862 = vmatprep.subr.mxu0 0.0
    %1863 = vmatpush1.msra.mxu0 0.0
    %1864 = vmatprep.subr.mxu0 0.0
    %1865 = vmatpush1.msra.mxu0 0.0
    %1866 = vmatprep.subr.mxu0 0.0
    %1867 = vmatpush1.msra.mxu0 0.0
    %1868 = vmatprep.subr.mxu0 0.0
    %1869 = vmatpush1.msra.mxu0 0.0
    %1870 = vmatprep.subr.mxu0 0.0
    %1871 = vmatpush1.msra.mxu0 0.0
    %1872 = vmatprep.subr.mxu0 0.0
    %1873 = vmatpush1.msra.mxu0 0.0
    %1874 = vmatprep.subr.mxu0 0.0
    %1875 = vmatpush1.msra.mxu0 0.0
    %1876 = vmatprep.subr.mxu0 0.0
    %1877 = vmatpush1.msra.mxu0 0.0
    %1878 = vmatprep.subr.mxu0 0.0
    %1879 = vmatpush1.msra.mxu0 0.0
    %1880 = vmatprep.subr.mxu0 0.0
    %1881 = vmatpush1.msra.mxu0 0.0
    %1882 = vmatprep.subr.mxu0 0.0
    %1883 = vmatpush1.msra.mxu0 0.0
    %1884 = vmatprep.subr.mxu0 0.0
    %1885 = vmatpush1.msra.mxu0 0.0
    %1886 = vmatprep.subr.mxu0 0.0
    %1887 = vmatpush1.msra.mxu0 0.0
    %1888 = vmatprep.mubr.f32.mxu0 0.0
    %v1889 = vand.u32 %v1314, 4294901760
    %1890 = vmatmul.mubr.f32.gmra.mrb[0].mxu0 %v1889
    %v1891 = vpop.f32.mrb[0].mxu0
    %v1892 = vadd.f32 %v1801, %v1891
    %v1893 = vpop.f32.mrb[0].mxu0
    %1894 = vmatprep.mubr.f32.mxu0 0.0
    %v1895 = vand.u32 %v1317, 4294901760
    %1896 = vmatmul.mubr.f32.gmra.mrb[0].mxu0 %v1895
    %v1897 = vpop.f32.mrb[0].mxu0
    %v1898 = vadd.f32 %v1807, %v1897
    %v1899 = vpop.f32.mrb[0].mxu0
    %1900 = vmatprep.mubr.f32.mxu0 0.0
    %v1901 = vand.u32 %v1320, 4294901760
    %1902 = vmatmul.mubr.f32.gmra.mrb[0].mxu0 %v1901
    %v1903 = vpop.f32.mrb[0].mxu0
    %v1904 = vadd.f32 %v1813, %v1903
    %v1905 = vpop.f32.mrb[0].mxu0
    %1906 = vmatprep.mubr.f32.mxu0 0.0
    %v1907 = vand.u32 %v1323, 4294901760
    %1908 = vmatmul.mubr.f32.gmra.mrb[0].mxu0 %v1907
    %v1909 = vpop.f32.mrb[0].mxu0
    %v1910 = vadd.f32 %v1819, %v1909
    %v1911 = vpop.f32.mrb[0].mxu0
    %1912 = vdwg.mxu0
    %v1914 = vsel %vm73, %v32, 0
    %v1917 = vsel %vm73, %v33, 0
    %v1920 = vsel %vm73, %v34, 0
    %v1923 = vsel %vm73, %v35, 0
    %1925 = vmatprep.subr.mxu0 0.0
    %v1926 = vand.u32 %v61, 4294901760
    %1927 = vmatpush1.msra.mxu0 %v1926
    %1928 = vmatprep.subr.mxu0 0.0
    %v1929 = vand.u32 %v62, 4294901760
    %1930 = vmatpush1.msra.mxu0 %v1929
    %1931 = vmatprep.subr.mxu0 0.0
    %1932 = vmatpush1.msra.mxu0 0.0
    %1933 = vmatprep.subr.mxu0 0.0
    %1934 = vmatpush1.msra.mxu0 0.0
    %1935 = vmatprep.subr.mxu0 0.0
    %1936 = vmatpush1.msra.mxu0 0.0
    %1937 = vmatprep.subr.mxu0 0.0
    %1938 = vmatpush1.msra.mxu0 0.0
    %1939 = vmatprep.subr.mxu0 0.0
    %1940 = vmatpush1.msra.mxu0 0.0
    %1941 = vmatprep.subr.mxu0 0.0
    %1942 = vmatpush1.msra.mxu0 0.0
    %1943 = vmatprep.subr.mxu0 0.0
    %1944 = vmatpush1.msra.mxu0 0.0
    %1945 = vmatprep.subr.mxu0 0.0
    %1946 = vmatpush1.msra.mxu0 0.0
    %1947 = vmatprep.subr.mxu0 0.0
    %1948 = vmatpush1.msra.mxu0 0.0
    %1949 = vmatprep.subr.mxu0 0.0
    %1950 = vmatpush1.msra.mxu0 0.0
    %1951 = vmatprep.subr.mxu0 0.0
    %1952 = vmatpush1.msra.mxu0 0.0
    %1953 = vmatprep.subr.mxu0 0.0
    %1954 = vmatpush1.msra.mxu0 0.0
    %1955 = vmatprep.subr.mxu0 0.0
    %1956 = vmatpush1.msra.mxu0 0.0
    %1957 = vmatprep.subr.mxu0 0.0
    %1958 = vmatpush1.msra.mxu0 0.0
    %1959 = vmatprep.subr.mxu0 0.0
    %1960 = vmatpush1.msra.mxu0 0.0
    %1961 = vmatprep.subr.mxu0 0.0
    %1962 = vmatpush1.msra.mxu0 0.0
    %1963 = vmatprep.subr.mxu0 0.0
    %1964 = vmatpush1.msra.mxu0 0.0
    %1965 = vmatprep.subr.mxu0 0.0
    %1966 = vmatpush1.msra.mxu0 0.0
    %1967 = vmatprep.subr.mxu0 0.0
    %1968 = vmatpush1.msra.mxu0 0.0
    %1969 = vmatprep.subr.mxu0 0.0
    %1970 = vmatpush1.msra.mxu0 0.0
    %1971 = vmatprep.subr.mxu0 0.0
    %1972 = vmatpush1.msra.mxu0 0.0
    %1973 = vmatprep.subr.mxu0 0.0
    %1974 = vmatpush1.msra.mxu0 0.0
    %1975 = vmatprep.subr.mxu0 0.0
    %1976 = vmatpush1.msra.mxu0 0.0
    %1977 = vmatprep.subr.mxu0 0.0
    %1978 = vmatpush1.msra.mxu0 0.0
    %1979 = vmatprep.subr.mxu0 0.0
    %1980 = vmatpush1.msra.mxu0 0.0
    %1981 = vmatprep.subr.mxu0 0.0
    %1982 = vmatpush1.msra.mxu0 0.0
    %1983 = vmatprep.subr.mxu0 0.0
    %1984 = vmatpush1.msra.mxu0 0.0
    %1985 = vmatprep.subr.mxu0 0.0
    %1986 = vmatpush1.msra.mxu0 0.0
    %1987 = vmatprep.subr.mxu0 0.0
    %1988 = vmatpush1.msra.mxu0 0.0
    %1989 = vmatprep.subr.mxu0 0.0
    %1990 = vmatpush1.msra.mxu0 0.0
    %1991 = vmatprep.mubr.f32.mxu0 0.0
    %v1992 = vand.u32 %v1914, 4294901760
    %v1993 = vsub.f32 %v1914, %v1992
    %v1994 = vand.u32 %v1993, 4294901760
    %v1995 = vsub.f32 %v1993, %v1994
    %v1996 = vand.u32 %v1995, 4294901760
    %1997 = vmatmul.mubr.f32.gmra.mrb[0].mxu0 %v1996
    %v1998 = vpop.f32.mrb[0].mxu0
    %v1999 = vadd.f32 %v1892, %v1998
    %v2000 = vpop.f32.mrb[0].mxu0
    %2001 = vmatprep.mubr.f32.mxu0 0.0
    %v2002 = vand.u32 %v1917, 4294901760
    %v2003 = vsub.f32 %v1917, %v2002
    %v2004 = vand.u32 %v2003, 4294901760
    %v2005 = vsub.f32 %v2003, %v2004
    %v2006 = vand.u32 %v2005, 4294901760
    %2007 = vmatmul.mubr.f32.gmra.mrb[0].mxu0 %v2006
    %v2008 = vpop.f32.mrb[0].mxu0
    %v2009 = vadd.f32 %v1898, %v2008
    %v2010 = vpop.f32.mrb[0].mxu0
    %2011 = vmatprep.mubr.f32.mxu0 0.0
    %v2012 = vand.u32 %v1920, 4294901760
    %v2013 = vsub.f32 %v1920, %v2012
    %v2014 = vand.u32 %v2013, 4294901760
    %v2015 = vsub.f32 %v2013, %v2014
    %v2016 = vand.u32 %v2015, 4294901760
    %2017 = vmatmul.mubr.f32.gmra.mrb[0].mxu0 %v2016
    %v2018 = vpop.f32.mrb[0].mxu0
    %v2019 = vadd.f32 %v1904, %v2018
    %v2020 = vpop.f32.mrb[0].mxu0
    %2021 = vmatprep.mubr.f32.mxu0 0.0
    %v2022 = vand.u32 %v1923, 4294901760
    %v2023 = vsub.f32 %v1923, %v2022
    %v2024 = vand.u32 %v2023, 4294901760
    %v2025 = vsub.f32 %v2023, %v2024
    %v2026 = vand.u32 %v2025, 4294901760
    %2027 = vmatmul.mubr.f32.gmra.mrb[0].mxu0 %v2026
    %v2028 = vpop.f32.mrb[0].mxu0
    %v2029 = vadd.f32 %v1910, %v2028
    %v2030 = vpop.f32.mrb[0].mxu0
    %2031 = vdwg.mxu0
    %2032 = vmatprep.subr.mxu0 0.0
    %v2033 = vand.u32 %v61, 4294901760
    %v2034 = vsub.f32 %v61, %v2033
    %v2035 = vand.u32 %v2034, 4294901760
    %v2036 = vsub.f32 %v2034, %v2035
    %v2037 = vand.u32 %v2036, 4294901760
    %2038 = vmatpush1.msra.mxu0 %v2037
    %2039 = vmatprep.subr.mxu0 0.0
    %v2040 = vand.u32 %v62, 4294901760
    %v2041 = vsub.f32 %v62, %v2040
    %v2042 = vand.u32 %v2041, 4294901760
    %v2043 = vsub.f32 %v2041, %v2042
    %v2044 = vand.u32 %v2043, 4294901760
    %2045 = vmatpush1.msra.mxu0 %v2044
    %2046 = vmatprep.subr.mxu0 0.0
    %2047 = vmatpush1.msra.mxu0 0.0
    %2048 = vmatprep.subr.mxu0 0.0
    %2049 = vmatpush1.msra.mxu0 0.0
    %2050 = vmatprep.subr.mxu0 0.0
    %2051 = vmatpush1.msra.mxu0 0.0
    %2052 = vmatprep.subr.mxu0 0.0
    %2053 = vmatpush1.msra.mxu0 0.0
    %2054 = vmatprep.subr.mxu0 0.0
    %2055 = vmatpush1.msra.mxu0 0.0
    %2056 = vmatprep.subr.mxu0 0.0
    %2057 = vmatpush1.msra.mxu0 0.0
    %2058 = vmatprep.subr.mxu0 0.0
    %2059 = vmatpush1.msra.mxu0 0.0
    %2060 = vmatprep.subr.mxu0 0.0
    %2061 = vmatpush1.msra.mxu0 0.0
    %2062 = vmatprep.subr.mxu0 0.0
    %2063 = vmatpush1.msra.mxu0 0.0
    %2064 = vmatprep.subr.mxu0 0.0
    %2065 = vmatpush1.msra.mxu0 0.0
    %2066 = vmatprep.subr.mxu0 0.0
    %2067 = vmatpush1.msra.mxu0 0.0
    %2068 = vmatprep.subr.mxu0 0.0
    %2069 = vmatpush1.msra.mxu0 0.0
    %2070 = vmatprep.subr.mxu0 0.0
    %2071 = vmatpush1.msra.mxu0 0.0
    %2072 = vmatprep.subr.mxu0 0.0
    %2073 = vmatpush1.msra.mxu0 0.0
    %2074 = vmatprep.subr.mxu0 0.0
    %2075 = vmatpush1.msra.mxu0 0.0
    %2076 = vmatprep.subr.mxu0 0.0
    %2077 = vmatpush1.msra.mxu0 0.0
    %2078 = vmatprep.subr.mxu0 0.0
    %2079 = vmatpush1.msra.mxu0 0.0
    %2080 = vmatprep.subr.mxu0 0.0
    %2081 = vmatpush1.msra.mxu0 0.0
    %2082 = vmatprep.subr.mxu0 0.0
    %2083 = vmatpush1.msra.mxu0 0.0
    %2084 = vmatprep.subr.mxu0 0.0
    %2085 = vmatpush1.msra.mxu0 0.0
    %2086 = vmatprep.subr.mxu0 0.0
    %2087 = vmatpush1.msra.mxu0 0.0
    %2088 = vmatprep.subr.mxu0 0.0
    %2089 = vmatpush1.msra.mxu0 0.0
    %2090 = vmatprep.subr.mxu0 0.0
    %2091 = vmatpush1.msra.mxu0 0.0
    %2092 = vmatprep.subr.mxu0 0.0
    %2093 = vmatpush1.msra.mxu0 0.0
    %2094 = vmatprep.subr.mxu0 0.0
    %2095 = vmatpush1.msra.mxu0 0.0
    %2096 = vmatprep.subr.mxu0 0.0
    %2097 = vmatpush1.msra.mxu0 0.0
    %2098 = vmatprep.subr.mxu0 0.0
    %2099 = vmatpush1.msra.mxu0 0.0
    %2100 = vmatprep.subr.mxu0 0.0
    %2101 = vmatpush1.msra.mxu0 0.0
    %2102 = vmatprep.subr.mxu0 0.0
    %2103 = vmatpush1.msra.mxu0 0.0
    %2104 = vmatprep.subr.mxu0 0.0
    %2105 = vmatpush1.msra.mxu0 0.0
    %2106 = vmatprep.mubr.f32.mxu0 0.0
    %v2107 = vand.u32 %v1914, 4294901760
    %2108 = vmatmul.mubr.f32.gmra.mrb[0].mxu0 %v2107
    %v2109 = vpop.f32.mrb[0].mxu0
    %v2110 = vadd.f32 %v1999, %v2109
    %v2111 = vpop.f32.mrb[0].mxu0
    %2112 = vmatprep.mubr.f32.mxu0 0.0
    %v2113 = vand.u32 %v1917, 4294901760
    %2114 = vmatmul.mubr.f32.gmra.mrb[0].mxu0 %v2113
    %v2115 = vpop.f32.mrb[0].mxu0
    %v2116 = vadd.f32 %v2009, %v2115
    %v2117 = vpop.f32.mrb[0].mxu0
    %2118 = vmatprep.mubr.f32.mxu0 0.0
    %v2119 = vand.u32 %v1920, 4294901760
    %2120 = vmatmul.mubr.f32.gmra.mrb[0].mxu0 %v2119
    %v2121 = vpop.f32.mrb[0].mxu0
    %v2122 = vadd.f32 %v2019, %v2121
    %v2123 = vpop.f32.mrb[0].mxu0
    %2124 = vmatprep.mubr.f32.mxu0 0.0
    %v2125 = vand.u32 %v1923, 4294901760
    %2126 = vmatmul.mubr.f32.gmra.mrb[0].mxu0 %v2125
    %v2127 = vpop.f32.mrb[0].mxu0
    %v2128 = vadd.f32 %v2029, %v2127
    %v2129 = vpop.f32.mrb[0].mxu0
    %2130 = vdwg.mxu0
    %2131 = vmatprep.subr.mxu0 0.0
    %v2132 = vand.u32 %v61, 4294901760
    %v2133 = vsub.f32 %v61, %v2132
    %2134 = vmatpush1.msra.mxu0 %v2133
    %2135 = vmatprep.subr.mxu0 0.0
    %v2136 = vand.u32 %v62, 4294901760
    %v2137 = vsub.f32 %v62, %v2136
    %2138 = vmatpush1.msra.mxu0 %v2137
    %2139 = vmatprep.subr.mxu0 0.0
    %2140 = vmatpush1.msra.mxu0 0.0
    %2141 = vmatprep.subr.mxu0 0.0
    %2142 = vmatpush1.msra.mxu0 0.0
    %2143 = vmatprep.subr.mxu0 0.0
    %2144 = vmatpush1.msra.mxu0 0.0
    %2145 = vmatprep.subr.mxu0 0.0
    %2146 = vmatpush1.msra.mxu0 0.0
    %2147 = vmatprep.subr.mxu0 0.0
    %2148 = vmatpush1.msra.mxu0 0.0
    %2149 = vmatprep.subr.mxu0 0.0
    %2150 = vmatpush1.msra.mxu0 0.0
    %2151 = vmatprep.subr.mxu0 0.0
    %2152 = vmatpush1.msra.mxu0 0.0
    %2153 = vmatprep.subr.mxu0 0.0
    %2154 = vmatpush1.msra.mxu0 0.0
    %2155 = vmatprep.subr.mxu0 0.0
    %2156 = vmatpush1.msra.mxu0 0.0
    %2157 = vmatprep.subr.mxu0 0.0
    %2158 = vmatpush1.msra.mxu0 0.0
    %2159 = vmatprep.subr.mxu0 0.0
    %2160 = vmatpush1.msra.mxu0 0.0
    %2161 = vmatprep.subr.mxu0 0.0
    %2162 = vmatpush1.msra.mxu0 0.0
    %2163 = vmatprep.subr.mxu0 0.0
    %2164 = vmatpush1.msra.mxu0 0.0
    %2165 = vmatprep.subr.mxu0 0.0
    %2166 = vmatpush1.msra.mxu0 0.0
    %2167 = vmatprep.subr.mxu0 0.0
    %2168 = vmatpush1.msra.mxu0 0.0
    %2169 = vmatprep.subr.mxu0 0.0
    %2170 = vmatpush1.msra.mxu0 0.0
    %2171 = vmatprep.subr.mxu0 0.0
    %2172 = vmatpush1.msra.mxu0 0.0
    %2173 = vmatprep.subr.mxu0 0.0
    %2174 = vmatpush1.msra.mxu0 0.0
    %2175 = vmatprep.subr.mxu0 0.0
    %2176 = vmatpush1.msra.mxu0 0.0
    %2177 = vmatprep.subr.mxu0 0.0
    %2178 = vmatpush1.msra.mxu0 0.0
    %2179 = vmatprep.subr.mxu0 0.0
    %2180 = vmatpush1.msra.mxu0 0.0
    %2181 = vmatprep.subr.mxu0 0.0
    %2182 = vmatpush1.msra.mxu0 0.0
    %2183 = vmatprep.subr.mxu0 0.0
    %2184 = vmatpush1.msra.mxu0 0.0
    %2185 = vmatprep.subr.mxu0 0.0
    %2186 = vmatpush1.msra.mxu0 0.0
    %2187 = vmatprep.subr.mxu0 0.0
    %2188 = vmatpush1.msra.mxu0 0.0
    %2189 = vmatprep.subr.mxu0 0.0
    %2190 = vmatpush1.msra.mxu0 0.0
    %2191 = vmatprep.subr.mxu0 0.0
    %2192 = vmatpush1.msra.mxu0 0.0
    %2193 = vmatprep.subr.mxu0 0.0
    %2194 = vmatpush1.msra.mxu0 0.0
    %2195 = vmatprep.subr.mxu0 0.0
    %2196 = vmatpush1.msra.mxu0 0.0
    %2197 = vmatprep.subr.mxu0 0.0
    %2198 = vmatpush1.msra.mxu0 0.0
    %2199 = vmatprep.mubr.f32.mxu0 0.0
    %v2200 = vand.u32 %v1914, 4294901760
    %v2201 = vsub.f32 %v1914, %v2200
    %2202 = vmatmul.mubr.f32.gmra.mrb[0].mxu0 %v2201
    %v2203 = vpop.f32.mrb[0].mxu0
    %v2204 = vadd.f32 %v2110, %v2203
    %v2205 = vpop.f32.mrb[0].mxu0
    %2206 = vmatprep.mubr.f32.mxu0 0.0
    %v2207 = vand.u32 %v1917, 4294901760
    %v2208 = vsub.f32 %v1917, %v2207
    %2209 = vmatmul.mubr.f32.gmra.mrb[0].mxu0 %v2208
    %v2210 = vpop.f32.mrb[0].mxu0
    %v2211 = vadd.f32 %v2116, %v2210
    %v2212 = vpop.f32.mrb[0].mxu0
    %2213 = vmatprep.mubr.f32.mxu0 0.0
    %v2214 = vand.u32 %v1920, 4294901760
    %v2215 = vsub.f32 %v1920, %v2214
    %2216 = vmatmul.mubr.f32.gmra.mrb[0].mxu0 %v2215
    %v2217 = vpop.f32.mrb[0].mxu0
    %v2218 = vadd.f32 %v2122, %v2217
    %v2219 = vpop.f32.mrb[0].mxu0
    %2220 = vmatprep.mubr.f32.mxu0 0.0
    %v2221 = vand.u32 %v1923, 4294901760
    %v2222 = vsub.f32 %v1923, %v2221
    %2223 = vmatmul.mubr.f32.gmra.mrb[0].mxu0 %v2222
    %v2224 = vpop.f32.mrb[0].mxu0
    %v2225 = vadd.f32 %v2128, %v2224
    %v2226 = vpop.f32.mrb[0].mxu0
    %2227 = vdwg.mxu0
    %2228 = vmatprep.subr.mxu0 0.0
    %v2229 = vand.u32 %v61, 4294901760
    %2230 = vmatpush1.msra.mxu0 %v2229
    %2231 = vmatprep.subr.mxu0 0.0
    %v2232 = vand.u32 %v62, 4294901760
    %2233 = vmatpush1.msra.mxu0 %v2232
    %2234 = vmatprep.subr.mxu0 0.0
    %2235 = vmatpush1.msra.mxu0 0.0
    %2236 = vmatprep.subr.mxu0 0.0
    %2237 = vmatpush1.msra.mxu0 0.0
    %2238 = vmatprep.subr.mxu0 0.0
    %2239 = vmatpush1.msra.mxu0 0.0
    %2240 = vmatprep.subr.mxu0 0.0
    %2241 = vmatpush1.msra.mxu0 0.0
    %2242 = vmatprep.subr.mxu0 0.0
    %2243 = vmatpush1.msra.mxu0 0.0
    %2244 = vmatprep.subr.mxu0 0.0
    %2245 = vmatpush1.msra.mxu0 0.0
    %2246 = vmatprep.subr.mxu0 0.0
    %2247 = vmatpush1.msra.mxu0 0.0
    %2248 = vmatprep.subr.mxu0 0.0
    %2249 = vmatpush1.msra.mxu0 0.0
    %2250 = vmatprep.subr.mxu0 0.0
    %2251 = vmatpush1.msra.mxu0 0.0
    %2252 = vmatprep.subr.mxu0 0.0
    %2253 = vmatpush1.msra.mxu0 0.0
    %2254 = vmatprep.subr.mxu0 0.0
    %2255 = vmatpush1.msra.mxu0 0.0
    %2256 = vmatprep.subr.mxu0 0.0
    %2257 = vmatpush1.msra.mxu0 0.0
    %2258 = vmatprep.subr.mxu0 0.0
    %2259 = vmatpush1.msra.mxu0 0.0
    %2260 = vmatprep.subr.mxu0 0.0
    %2261 = vmatpush1.msra.mxu0 0.0
    %2262 = vmatprep.subr.mxu0 0.0
    %2263 = vmatpush1.msra.mxu0 0.0
    %2264 = vmatprep.subr.mxu0 0.0
    %2265 = vmatpush1.msra.mxu0 0.0
    %2266 = vmatprep.subr.mxu0 0.0
    %2267 = vmatpush1.msra.mxu0 0.0
    %2268 = vmatprep.subr.mxu0 0.0
    %2269 = vmatpush1.msra.mxu0 0.0
    %2270 = vmatprep.subr.mxu0 0.0
    %2271 = vmatpush1.msra.mxu0 0.0
    %2272 = vmatprep.subr.mxu0 0.0
    %2273 = vmatpush1.msra.mxu0 0.0
    %2274 = vmatprep.subr.mxu0 0.0
    %2275 = vmatpush1.msra.mxu0 0.0
    %2276 = vmatprep.subr.mxu0 0.0
    %2277 = vmatpush1.msra.mxu0 0.0
    %2278 = vmatprep.subr.mxu0 0.0
    %2279 = vmatpush1.msra.mxu0 0.0
    %2280 = vmatprep.subr.mxu0 0.0
    %2281 = vmatpush1.msra.mxu0 0.0
    %2282 = vmatprep.subr.mxu0 0.0
    %2283 = vmatpush1.msra.mxu0 0.0
    %2284 = vmatprep.subr.mxu0 0.0
    %2285 = vmatpush1.msra.mxu0 0.0
    %2286 = vmatprep.subr.mxu0 0.0
    %2287 = vmatpush1.msra.mxu0 0.0
    %2288 = vmatprep.subr.mxu0 0.0
    %2289 = vmatpush1.msra.mxu0 0.0
    %2290 = vmatprep.subr.mxu0 0.0
    %2291 = vmatpush1.msra.mxu0 0.0
    %2292 = vmatprep.subr.mxu0 0.0
    %2293 = vmatpush1.msra.mxu0 0.0
    %2294 = vmatprep.mubr.f32.mxu0 0.0
    %v2295 = vand.u32 %v1914, 4294901760
    %v2296 = vsub.f32 %v1914, %v2295
    %v2297 = vand.u32 %v2296, 4294901760
    %2298 = vmatmul.mubr.f32.gmra.mrb[0].mxu0 %v2297
    %v2299 = vpop.f32.mrb[0].mxu0
    %v2300 = vadd.f32 %v2204, %v2299
    %v2301 = vpop.f32.mrb[0].mxu0
    %2302 = vmatprep.mubr.f32.mxu0 0.0
    %v2303 = vand.u32 %v1917, 4294901760
    %v2304 = vsub.f32 %v1917, %v2303
    %v2305 = vand.u32 %v2304, 4294901760
    %2306 = vmatmul.mubr.f32.gmra.mrb[0].mxu0 %v2305
    %v2307 = vpop.f32.mrb[0].mxu0
    %v2308 = vadd.f32 %v2211, %v2307
    %v2309 = vpop.f32.mrb[0].mxu0
    %2310 = vmatprep.mubr.f32.mxu0 0.0
    %v2311 = vand.u32 %v1920, 4294901760
    %v2312 = vsub.f32 %v1920, %v2311
    %v2313 = vand.u32 %v2312, 4294901760
    %2314 = vmatmul.mubr.f32.gmra.mrb[0].mxu0 %v2313
    %v2315 = vpop.f32.mrb[0].mxu0
    %v2316 = vadd.f32 %v2218, %v2315
    %v2317 = vpop.f32.mrb[0].mxu0
    %2318 = vmatprep.mubr.f32.mxu0 0.0
    %v2319 = vand.u32 %v1923, 4294901760
    %v2320 = vsub.f32 %v1923, %v2319
    %v2321 = vand.u32 %v2320, 4294901760
    %2322 = vmatmul.mubr.f32.gmra.mrb[0].mxu0 %v2321
    %v2323 = vpop.f32.mrb[0].mxu0
    %v2324 = vadd.f32 %v2225, %v2323
    %v2325 = vpop.f32.mrb[0].mxu0
    %2326 = vdwg.mxu0
    %2327 = vmatprep.subr.mxu0 0.0
    %v2328 = vand.u32 %v61, 4294901760
    %v2329 = vsub.f32 %v61, %v2328
    %v2330 = vand.u32 %v2329, 4294901760
    %2331 = vmatpush1.msra.mxu0 %v2330
    %2332 = vmatprep.subr.mxu0 0.0
    %v2333 = vand.u32 %v62, 4294901760
    %v2334 = vsub.f32 %v62, %v2333
    %v2335 = vand.u32 %v2334, 4294901760
    %2336 = vmatpush1.msra.mxu0 %v2335
    %2337 = vmatprep.subr.mxu0 0.0
    %2338 = vmatpush1.msra.mxu0 0.0
    %2339 = vmatprep.subr.mxu0 0.0
    %2340 = vmatpush1.msra.mxu0 0.0
    %2341 = vmatprep.subr.mxu0 0.0
    %2342 = vmatpush1.msra.mxu0 0.0
    %2343 = vmatprep.subr.mxu0 0.0
    %2344 = vmatpush1.msra.mxu0 0.0
    %2345 = vmatprep.subr.mxu0 0.0
    %2346 = vmatpush1.msra.mxu0 0.0
    %2347 = vmatprep.subr.mxu0 0.0
    %2348 = vmatpush1.msra.mxu0 0.0
    %2349 = vmatprep.subr.mxu0 0.0
    %2350 = vmatpush1.msra.mxu0 0.0
    %2351 = vmatprep.subr.mxu0 0.0
    %2352 = vmatpush1.msra.mxu0 0.0
    %2353 = vmatprep.subr.mxu0 0.0
    %2354 = vmatpush1.msra.mxu0 0.0
    %2355 = vmatprep.subr.mxu0 0.0
    %2356 = vmatpush1.msra.mxu0 0.0
    %2357 = vmatprep.subr.mxu0 0.0
    %2358 = vmatpush1.msra.mxu0 0.0
    %2359 = vmatprep.subr.mxu0 0.0
    %2360 = vmatpush1.msra.mxu0 0.0
    %2361 = vmatprep.subr.mxu0 0.0
    %2362 = vmatpush1.msra.mxu0 0.0
    %2363 = vmatprep.subr.mxu0 0.0
    %2364 = vmatpush1.msra.mxu0 0.0
    %2365 = vmatprep.subr.mxu0 0.0
    %2366 = vmatpush1.msra.mxu0 0.0
    %2367 = vmatprep.subr.mxu0 0.0
    %2368 = vmatpush1.msra.mxu0 0.0
    %2369 = vmatprep.subr.mxu0 0.0
    %2370 = vmatpush1.msra.mxu0 0.0
    %2371 = vmatprep.subr.mxu0 0.0
    %2372 = vmatpush1.msra.mxu0 0.0
    %2373 = vmatprep.subr.mxu0 0.0
    %2374 = vmatpush1.msra.mxu0 0.0
    %2375 = vmatprep.subr.mxu0 0.0
    %2376 = vmatpush1.msra.mxu0 0.0
    %2377 = vmatprep.subr.mxu0 0.0
    %2378 = vmatpush1.msra.mxu0 0.0
    %2379 = vmatprep.subr.mxu0 0.0
    %2380 = vmatpush1.msra.mxu0 0.0
    %2381 = vmatprep.subr.mxu0 0.0
    %2382 = vmatpush1.msra.mxu0 0.0
    %2383 = vmatprep.subr.mxu0 0.0
    %2384 = vmatpush1.msra.mxu0 0.0
    %2385 = vmatprep.subr.mxu0 0.0
    %2386 = vmatpush1.msra.mxu0 0.0
    %2387 = vmatprep.subr.mxu0 0.0
    %2388 = vmatpush1.msra.mxu0 0.0
    %2389 = vmatprep.subr.mxu0 0.0
    %2390 = vmatpush1.msra.mxu0 0.0
    %2391 = vmatprep.subr.mxu0 0.0
    %2392 = vmatpush1.msra.mxu0 0.0
    %2393 = vmatprep.subr.mxu0 0.0
    %2394 = vmatpush1.msra.mxu0 0.0
    %2395 = vmatprep.subr.mxu0 0.0
    %2396 = vmatpush1.msra.mxu0 0.0
    %2397 = vmatprep.mubr.f32.mxu0 0.0
    %v2398 = vand.u32 %v1914, 4294901760
    %2399 = vmatmul.mubr.f32.gmra.mrb[0].mxu0 %v2398
    %v2400 = vpop.f32.mrb[0].mxu0
    %v2401 = vadd.f32 %v2300, %v2400
    %v2402 = vpop.f32.mrb[0].mxu0
    %2403 = vmatprep.mubr.f32.mxu0 0.0
    %v2404 = vand.u32 %v1917, 4294901760
    %2405 = vmatmul.mubr.f32.gmra.mrb[0].mxu0 %v2404
    %v2406 = vpop.f32.mrb[0].mxu0
    %v2407 = vadd.f32 %v2308, %v2406
    %v2408 = vpop.f32.mrb[0].mxu0
    %2409 = vmatprep.mubr.f32.mxu0 0.0
    %v2410 = vand.u32 %v1920, 4294901760
    %2411 = vmatmul.mubr.f32.gmra.mrb[0].mxu0 %v2410
    %v2412 = vpop.f32.mrb[0].mxu0
    %v2413 = vadd.f32 %v2316, %v2412
    %v2414 = vpop.f32.mrb[0].mxu0
    %2415 = vmatprep.mubr.f32.mxu0 0.0
    %v2416 = vand.u32 %v1923, 4294901760
    %2417 = vmatmul.mubr.f32.gmra.mrb[0].mxu0 %v2416
    %v2418 = vpop.f32.mrb[0].mxu0
    %v2419 = vadd.f32 %v2324, %v2418
    %v2420 = vpop.f32.mrb[0].mxu0
    %2421 = vdwg.mxu0
    %2422 = vmatprep.subr.mxu0 0.0
    %v2423 = vand.u32 %v61, 4294901760
    %2424 = vmatpush1.msra.mxu0 %v2423
    %2425 = vmatprep.subr.mxu0 0.0
    %v2426 = vand.u32 %v62, 4294901760
    %2427 = vmatpush1.msra.mxu0 %v2426
    %2428 = vmatprep.subr.mxu0 0.0
    %2429 = vmatpush1.msra.mxu0 0.0
    %2430 = vmatprep.subr.mxu0 0.0
    %2431 = vmatpush1.msra.mxu0 0.0
    %2432 = vmatprep.subr.mxu0 0.0
    %2433 = vmatpush1.msra.mxu0 0.0
    %2434 = vmatprep.subr.mxu0 0.0
    %2435 = vmatpush1.msra.mxu0 0.0
    %2436 = vmatprep.subr.mxu0 0.0
    %2437 = vmatpush1.msra.mxu0 0.0
    %2438 = vmatprep.subr.mxu0 0.0
    %2439 = vmatpush1.msra.mxu0 0.0
    %2440 = vmatprep.subr.mxu0 0.0
    %2441 = vmatpush1.msra.mxu0 0.0
    %2442 = vmatprep.subr.mxu0 0.0
    %2443 = vmatpush1.msra.mxu0 0.0
    %2444 = vmatprep.subr.mxu0 0.0
    %2445 = vmatpush1.msra.mxu0 0.0
    %2446 = vmatprep.subr.mxu0 0.0
    %2447 = vmatpush1.msra.mxu0 0.0
    %2448 = vmatprep.subr.mxu0 0.0
    %2449 = vmatpush1.msra.mxu0 0.0
    %2450 = vmatprep.subr.mxu0 0.0
    %2451 = vmatpush1.msra.mxu0 0.0
    %2452 = vmatprep.subr.mxu0 0.0
    %2453 = vmatpush1.msra.mxu0 0.0
    %2454 = vmatprep.subr.mxu0 0.0
    %2455 = vmatpush1.msra.mxu0 0.0
    %2456 = vmatprep.subr.mxu0 0.0
    %2457 = vmatpush1.msra.mxu0 0.0
    %2458 = vmatprep.subr.mxu0 0.0
    %2459 = vmatpush1.msra.mxu0 0.0
    %2460 = vmatprep.subr.mxu0 0.0
    %2461 = vmatpush1.msra.mxu0 0.0
    %2462 = vmatprep.subr.mxu0 0.0
    %2463 = vmatpush1.msra.mxu0 0.0
    %2464 = vmatprep.subr.mxu0 0.0
    %2465 = vmatpush1.msra.mxu0 0.0
    %2466 = vmatprep.subr.mxu0 0.0
    %2467 = vmatpush1.msra.mxu0 0.0
    %2468 = vmatprep.subr.mxu0 0.0
    %2469 = vmatpush1.msra.mxu0 0.0
    %2470 = vmatprep.subr.mxu0 0.0
    %2471 = vmatpush1.msra.mxu0 0.0
    %2472 = vmatprep.subr.mxu0 0.0
    %2473 = vmatpush1.msra.mxu0 0.0
    %2474 = vmatprep.subr.mxu0 0.0
    %2475 = vmatpush1.msra.mxu0 0.0
    %2476 = vmatprep.subr.mxu0 0.0
    %2477 = vmatpush1.msra.mxu0 0.0
    %2478 = vmatprep.subr.mxu0 0.0
    %2479 = vmatpush1.msra.mxu0 0.0
    %2480 = vmatprep.subr.mxu0 0.0
    %2481 = vmatpush1.msra.mxu0 0.0
    %2482 = vmatprep.subr.mxu0 0.0
    %2483 = vmatpush1.msra.mxu0 0.0
    %2484 = vmatprep.subr.mxu0 0.0
    %2485 = vmatpush1.msra.mxu0 0.0
    %2486 = vmatprep.subr.mxu0 0.0
    %2487 = vmatpush1.msra.mxu0 0.0
    %2488 = vmatprep.mubr.f32.mxu0 0.0
    %v2489 = vand.u32 %v1914, 4294901760
    %2490 = vmatmul.mubr.f32.gmra.mrb[0].mxu0 %v2489
    %v2491 = vpop.f32.mrb[0].mxu0
    %v2492 = vadd.f32 %v2401, %v2491
    %v2493 = vpop.f32.mrb[0].mxu0
    %2494 = vmatprep.mubr.f32.mxu0 0.0
    %v2495 = vand.u32 %v1917, 4294901760
    %2496 = vmatmul.mubr.f32.gmra.mrb[0].mxu0 %v2495
    %v2497 = vpop.f32.mrb[0].mxu0
    %v2498 = vadd.f32 %v2407, %v2497
    %v2499 = vpop.f32.mrb[0].mxu0
    %2500 = vmatprep.mubr.f32.mxu0 0.0
    %v2501 = vand.u32 %v1920, 4294901760
    %2502 = vmatmul.mubr.f32.gmra.mrb[0].mxu0 %v2501
    %v2503 = vpop.f32.mrb[0].mxu0
    %v2504 = vadd.f32 %v2413, %v2503
    %v2505 = vpop.f32.mrb[0].mxu0
    %2506 = vmatprep.mubr.f32.mxu0 0.0
    %v2507 = vand.u32 %v1923, 4294901760
    %2508 = vmatmul.mubr.f32.gmra.mrb[0].mxu0 %v2507
    %v2509 = vpop.f32.mrb[0].mxu0
    %v2510 = vadd.f32 %v2419, %v2509
    %v2511 = vpop.f32.mrb[0].mxu0
    %2512 = vdwg.mxu0
    %2514 = vset.pattern.permute.xlu0 0
    %2515 = vperm.xlu0 %2514, %v40
    %v2516 = vpop.permute.xlu0 %2515
    %2519 = vset.pattern.permute.xlu0 0
    %2520 = vperm.xlu0 %2519, %v41
    %v2521 = vpop.permute.xlu0 %2520
    %2524 = vset.pattern.permute.xlu0 0
    %2525 = vperm.xlu0 %2524, %v42
    %v2526 = vpop.permute.xlu0 %2525
    %2529 = vset.pattern.permute.xlu0 0
    %2530 = vperm.xlu0 %2529, %v43
    %v2531 = vpop.permute.xlu0 %2530
    %v2533 = vadd.f32 %v2492, %v2516
    %v2534 = vadd.f32 %v2498, %v2521
    %v2535 = vadd.f32 %v2504, %v2526
    %v2536 = vadd.f32 %v2510, %v2531
    %v2537 = vmax.f32 %v2533, 0.0
    %v2538 = vmax.f32 %v2534, 0.0
    %v2539 = vmax.f32 %v2535, 0.0
    %v2540 = vmax.f32 %v2536, 0.0
    %2541 = vst [vmem:[#allocation2] sm:$0xff] %v2537
    %2542 = vst [vmem:[#allocation2 + $0x8] sm:$0xff] %v2538
    %2543 = vst [vmem:[#allocation2 + $0x10] sm:$0xff] %v2539
    %2544 = vst [vmem:[#allocation2 + $0x18] sm:$0xff] %v2540
    %s2545 = scalar_lea.vmem %s1, 16
    %v2546 = vld [vmem:[%s2545] sm:$0xff]
    %v2547 = vld [vmem:[%s2545 + $0x8] sm:$0xff]
    %2548 = vmatprep.subr.mxu0 0.0
    %v2549 = vand.u32 %v2546, 4294901760
    %2550 = vmatpush1.msra.mxu0 %v2549
    %2551 = vmatprep.subr.mxu0 0.0
    %v2552 = vand.u32 %v2547, 4294901760
    %2553 = vmatpush1.msra.mxu0 %v2552
    %2554 = vmatprep.subr.mxu0 0.0
    %2555 = vmatpush1.msra.mxu0 0.0
    %2556 = vmatprep.subr.mxu0 0.0
    %2557 = vmatpush1.msra.mxu0 0.0
    %2558 = vmatprep.subr.mxu0 0.0
    %2559 = vmatpush1.msra.mxu0 0.0
    %2560 = vmatprep.subr.mxu0 0.0
    %2561 = vmatpush1.msra.mxu0 0.0
    %2562 = vmatprep.subr.mxu0 0.0
    %2563 = vmatpush1.msra.mxu0 0.0
    %2564 = vmatprep.subr.mxu0 0.0
    %2565 = vmatpush1.msra.mxu0 0.0
    %2566 = vmatprep.subr.mxu0 0.0
    %2567 = vmatpush1.msra.mxu0 0.0
    %2568 = vmatprep.subr.mxu0 0.0
    %2569 = vmatpush1.msra.mxu0 0.0
    %2570 = vmatprep.subr.mxu0 0.0
    %2571 = vmatpush1.msra.mxu0 0.0
    %2572 = vmatprep.subr.mxu0 0.0
    %2573 = vmatpush1.msra.mxu0 0.0
    %2574 = vmatprep.subr.mxu0 0.0
    %2575 = vmatpush1.msra.mxu0 0.0
    %2576 = vmatprep.subr.mxu0 0.0
    %2577 = vmatpush1.msra.mxu0 0.0
    %2578 = vmatprep.subr.mxu0 0.0
    %2579 = vmatpush1.msra.mxu0 0.0
    %2580 = vmatprep.subr.mxu0 0.0
    %2581 = vmatpush1.msra.mxu0 0.0
    %2582 = vmatprep.subr.mxu0 0.0
    %2583 = vmatpush1.msra.mxu0 0.0
    %2584 = vmatprep.subr.mxu0 0.0
    %2585 = vmatpush1.msra.mxu0 0.0
    %2586 = vmatprep.subr.mxu0 0.0
    %2587 = vmatpush1.msra.mxu0 0.0
    %2588 = vmatprep.subr.mxu0 0.0
    %2589 = vmatpush1.msra.mxu0 0.0
    %2590 = vmatprep.subr.mxu0 0.0
    %2591 = vmatpush1.msra.mxu0 0.0
    %2592 = vmatprep.subr.mxu0 0.0
    %2593 = vmatpush1.msra.mxu0 0.0
    %2594 = vmatprep.subr.mxu0 0.0
    %2595 = vmatpush1.msra.mxu0 0.0
    %2596 = vmatprep.subr.mxu0 0.0
    %2597 = vmatpush1.msra.mxu0 0.0
    %2598 = vmatprep.subr.mxu0 0.0
    %2599 = vmatpush1.msra.mxu0 0.0
    %2600 = vmatprep.subr.mxu0 0.0
    %2601 = vmatpush1.msra.mxu0 0.0
    %2602 = vmatprep.subr.mxu0 0.0
    %2603 = vmatpush1.msra.mxu0 0.0
    %2604 = vmatprep.subr.mxu0 0.0
    %2605 = vmatpush1.msra.mxu0 0.0
    %2606 = vmatprep.subr.mxu0 0.0
    %2607 = vmatpush1.msra.mxu0 0.0
    %2608 = vmatprep.subr.mxu0 0.0
    %2609 = vmatpush1.msra.mxu0 0.0
    %2610 = vmatprep.subr.mxu0 0.0
    %2611 = vmatpush1.msra.mxu0 0.0
    %2612 = vmatprep.subr.mxu0 0.0
    %2613 = vmatpush1.msra.mxu0 0.0
    %2614 = vmatprep.mubr.f32.mxu0 0.0
    %v2615 = vand.u32 %v75, 4294901760
    %v2616 = vsub.f32 %v75, %v2615
    %v2617 = vand.u32 %v2616, 4294901760
    %v2618 = vsub.f32 %v2616, %v2617
    %v2619 = vand.u32 %v2618, 4294901760
    %2620 = vmatmul.mubr.f32.gmra.mrb[0].mxu0 %v2619
    %v2621 = vpop.f32.mrb[0].mxu0
    %v2622 = vadd.f32 %v66, %v2621
    %v2623 = vpop.f32.mrb[0].mxu0
    %2624 = vmatprep.mubr.f32.mxu0 0.0
    %v2625 = vand.u32 %v78, 4294901760
    %v2626 = vsub.f32 %v78, %v2625
    %v2627 = vand.u32 %v2626, 4294901760
    %v2628 = vsub.f32 %v2626, %v2627
    %v2629 = vand.u32 %v2628, 4294901760
    %2630 = vmatmul.mubr.f32.gmra.mrb[0].mxu0 %v2629
    %v2631 = vpop.f32.mrb[0].mxu0
    %v2632 = vadd.f32 %v71, %v2631
    %v2633 = vpop.f32.mrb[0].mxu0
    %2634 = vdwg.mxu0
    %2635 = vmatprep.subr.mxu0 0.0
    %v2636 = vand.u32 %v2546, 4294901760
    %v2637 = vsub.f32 %v2546, %v2636
    %v2638 = vand.u32 %v2637, 4294901760
    %v2639 = vsub.f32 %v2637, %v2638
    %v2640 = vand.u32 %v2639, 4294901760
    %2641 = vmatpush1.msra.mxu0 %v2640
    %2642 = vmatprep.subr.mxu0 0.0
    %v2643 = vand.u32 %v2547, 4294901760
    %v2644 = vsub.f32 %v2547, %v2643
    %v2645 = vand.u32 %v2644, 4294901760
    %v2646 = vsub.f32 %v2644, %v2645
    %v2647 = vand.u32 %v2646, 4294901760
    %2648 = vmatpush1.msra.mxu0 %v2647
    %2649 = vmatprep.subr.mxu0 0.0
    %2650 = vmatpush1.msra.mxu0 0.0
    %2651 = vmatprep.subr.mxu0 0.0
    %2652 = vmatpush1.msra.mxu0 0.0
    %2653 = vmatprep.subr.mxu0 0.0
    %2654 = vmatpush1.msra.mxu0 0.0
    %2655 = vmatprep.subr.mxu0 0.0
    %2656 = vmatpush1.msra.mxu0 0.0
    %2657 = vmatprep.subr.mxu0 0.0
    %2658 = vmatpush1.msra.mxu0 0.0
    %2659 = vmatprep.subr.mxu0 0.0
    %2660 = vmatpush1.msra.mxu0 0.0
    %2661 = vmatprep.subr.mxu0 0.0
    %2662 = vmatpush1.msra.mxu0 0.0
    %2663 = vmatprep.subr.mxu0 0.0
    %2664 = vmatpush1.msra.mxu0 0.0
    %2665 = vmatprep.subr.mxu0 0.0
    %2666 = vmatpush1.msra.mxu0 0.0
    %2667 = vmatprep.subr.mxu0 0.0
    %2668 = vmatpush1.msra.mxu0 0.0
    %2669 = vmatprep.subr.mxu0 0.0
    %2670 = vmatpush1.msra.mxu0 0.0
    %2671 = vmatprep.subr.mxu0 0.0
    %2672 = vmatpush1.msra.mxu0 0.0
    %2673 = vmatprep.subr.mxu0 0.0
    %2674 = vmatpush1.msra.mxu0 0.0
    %2675 = vmatprep.subr.mxu0 0.0
    %2676 = vmatpush1.msra.mxu0 0.0
    %2677 = vmatprep.subr.mxu0 0.0
    %2678 = vmatpush1.msra.mxu0 0.0
    %2679 = vmatprep.subr.mxu0 0.0
    %2680 = vmatpush1.msra.mxu0 0.0
    %2681 = vmatprep.subr.mxu0 0.0
    %2682 = vmatpush1.msra.mxu0 0.0
    %2683 = vmatprep.subr.mxu0 0.0
    %2684 = vmatpush1.msra.mxu0 0.0
    %2685 = vmatprep.subr.mxu0 0.0
    %2686 = vmatpush1.msra.mxu0 0.0
    %2687 = vmatprep.subr.mxu0 0.0
    %2688 = vmatpush1.msra.mxu0 0.0
    %2689 = vmatprep.subr.mxu0 0.0
    %2690 = vmatpush1.msra.mxu0 0.0
    %2691 = vmatprep.subr.mxu0 0.0
    %2692 = vmatpush1.msra.mxu0 0.0
    %2693 = vmatprep.subr.mxu0 0.0
    %2694 = vmatpush1.msra.mxu0 0.0
    %2695 = vmatprep.subr.mxu0 0.0
    %2696 = vmatpush1.msra.mxu0 0.0
    %2697 = vmatprep.subr.mxu0 0.0
    %2698 = vmatpush1.msra.mxu0 0.0
    %2699 = vmatprep.subr.mxu0 0.0
    %2700 = vmatpush1.msra.mxu0 0.0
    %2701 = vmatprep.subr.mxu0 0.0
    %2702 = vmatpush1.msra.mxu0 0.0
    %2703 = vmatprep.subr.mxu0 0.0
    %2704 = vmatpush1.msra.mxu0 0.0
    %2705 = vmatprep.subr.mxu0 0.0
    %2706 = vmatpush1.msra.mxu0 0.0
    %2707 = vmatprep.subr.mxu0 0.0
    %2708 = vmatpush1.msra.mxu0 0.0
    %2709 = vmatprep.mubr.f32.mxu0 0.0
    %v2710 = vand.u32 %v75, 4294901760
    %2711 = vmatmul.mubr.f32.gmra.mrb[0].mxu0 %v2710
    %v2712 = vpop.f32.mrb[0].mxu0
    %v2713 = vadd.f32 %v2622, %v2712
    %v2714 = vpop.f32.mrb[0].mxu0
    %2715 = vmatprep.mubr.f32.mxu0 0.0
    %v2716 = vand.u32 %v78, 4294901760
    %2717 = vmatmul.mubr.f32.gmra.mrb[0].mxu0 %v2716
    %v2718 = vpop.f32.mrb[0].mxu0
    %v2719 = vadd.f32 %v2632, %v2718
    %v2720 = vpop.f32.mrb[0].mxu0
    %2721 = vdwg.mxu0
    %2722 = vmatprep.subr.mxu0 0.0
    %v2723 = vand.u32 %v2546, 4294901760
    %v2724 = vsub.f32 %v2546, %v2723
    %2725 = vmatpush1.msra.mxu0 %v2724
    %2726 = vmatprep.subr.mxu0 0.0
    %v2727 = vand.u32 %v2547, 4294901760
    %v2728 = vsub.f32 %v2547, %v2727
    %2729 = vmatpush1.msra.mxu0 %v2728
    %2730 = vmatprep.subr.mxu0 0.0
    %2731 = vmatpush1.msra.mxu0 0.0
    %2732 = vmatprep.subr.mxu0 0.0
    %2733 = vmatpush1.msra.mxu0 0.0
    %2734 = vmatprep.subr.mxu0 0.0
    %2735 = vmatpush1.msra.mxu0 0.0
    %2736 = vmatprep.subr.mxu0 0.0
    %2737 = vmatpush1.msra.mxu0 0.0
    %2738 = vmatprep.subr.mxu0 0.0
    %2739 = vmatpush1.msra.mxu0 0.0
    %2740 = vmatprep.subr.mxu0 0.0
    %2741 = vmatpush1.msra.mxu0 0.0
    %2742 = vmatprep.subr.mxu0 0.0
    %2743 = vmatpush1.msra.mxu0 0.0
    %2744 = vmatprep.subr.mxu0 0.0
    %2745 = vmatpush1.msra.mxu0 0.0
    %2746 = vmatprep.subr.mxu0 0.0
    %2747 = vmatpush1.msra.mxu0 0.0
    %2748 = vmatprep.subr.mxu0 0.0
    %2749 = vmatpush1.msra.mxu0 0.0
    %2750 = vmatprep.subr.mxu0 0.0
    %2751 = vmatpush1.msra.mxu0 0.0
    %2752 = vmatprep.subr.mxu0 0.0
    %2753 = vmatpush1.msra.mxu0 0.0
    %2754 = vmatprep.subr.mxu0 0.0
    %2755 = vmatpush1.msra.mxu0 0.0
    %2756 = vmatprep.subr.mxu0 0.0
    %2757 = vmatpush1.msra.mxu0 0.0
    %2758 = vmatprep.subr.mxu0 0.0
    %2759 = vmatpush1.msra.mxu0 0.0
    %2760 = vmatprep.subr.mxu0 0.0
    %2761 = vmatpush1.msra.mxu0 0.0
    %2762 = vmatprep.subr.mxu0 0.0
    %2763 = vmatpush1.msra.mxu0 0.0
    %2764 = vmatprep.subr.mxu0 0.0
    %2765 = vmatpush1.msra.mxu0 0.0
    %2766 = vmatprep.subr.mxu0 0.0
    %2767 = vmatpush1.msra.mxu0 0.0
    %2768 = vmatprep.subr.mxu0 0.0
    %2769 = vmatpush1.msra.mxu0 0.0
    %2770 = vmatprep.subr.mxu0 0.0
    %2771 = vmatpush1.msra.mxu0 0.0
    %2772 = vmatprep.subr.mxu0 0.0
    %2773 = vmatpush1.msra.mxu0 0.0
    %2774 = vmatprep.subr.mxu0 0.0
    %2775 = vmatpush1.msra.mxu0 0.0
    %2776 = vmatprep.subr.mxu0 0.0
    %2777 = vmatpush1.msra.mxu0 0.0
    %2778 = vmatprep.subr.mxu0 0.0
    %2779 = vmatpush1.msra.mxu0 0.0
    %2780 = vmatprep.subr.mxu0 0.0
    %2781 = vmatpush1.msra.mxu0 0.0
    %2782 = vmatprep.subr.mxu0 0.0
    %2783 = vmatpush1.msra.mxu0 0.0
    %2784 = vmatprep.subr.mxu0 0.0
    %2785 = vmatpush1.msra.mxu0 0.0
    %2786 = vmatprep.subr.mxu0 0.0
    %2787 = vmatpush1.msra.mxu0 0.0
    %2788 = vmatprep.subr.mxu0 0.0
    %2789 = vmatpush1.msra.mxu0 0.0
    %2790 = vmatprep.mubr.f32.mxu0 0.0
    %v2791 = vand.u32 %v75, 4294901760
    %v2792 = vsub.f32 %v75, %v2791
    %2793 = vmatmul.mubr.f32.gmra.mrb[0].mxu0 %v2792
    %v2794 = vpop.f32.mrb[0].mxu0
    %v2795 = vadd.f32 %v2713, %v2794
    %v2796 = vpop.f32.mrb[0].mxu0
    %2797 = vmatprep.mubr.f32.mxu0 0.0
    %v2798 = vand.u32 %v78, 4294901760
    %v2799 = vsub.f32 %v78, %v2798
    %2800 = vmatmul.mubr.f32.gmra.mrb[0].mxu0 %v2799
    %v2801 = vpop.f32.mrb[0].mxu0
    %v2802 = vadd.f32 %v2719, %v2801
    %v2803 = vpop.f32.mrb[0].mxu0
    %2804 = vdwg.mxu0
    %2805 = vmatprep.subr.mxu0 0.0
    %v2806 = vand.u32 %v2546, 4294901760
    %2807 = vmatpush1.msra.mxu0 %v2806
    %2808 = vmatprep.subr.mxu0 0.0
    %v2809 = vand.u32 %v2547, 4294901760
    %2810 = vmatpush1.msra.mxu0 %v2809
    %2811 = vmatprep.subr.mxu0 0.0
    %2812 = vmatpush1.msra.mxu0 0.0
    %2813 = vmatprep.subr.mxu0 0.0
    %2814 = vmatpush1.msra.mxu0 0.0
    %2815 = vmatprep.subr.mxu0 0.0
    %2816 = vmatpush1.msra.mxu0 0.0
    %2817 = vmatprep.subr.mxu0 0.0
    %2818 = vmatpush1.msra.mxu0 0.0
    %2819 = vmatprep.subr.mxu0 0.0
    %2820 = vmatpush1.msra.mxu0 0.0
    %2821 = vmatprep.subr.mxu0 0.0
    %2822 = vmatpush1.msra.mxu0 0.0
    %2823 = vmatprep.subr.mxu0 0.0
    %2824 = vmatpush1.msra.mxu0 0.0
    %2825 = vmatprep.subr.mxu0 0.0
    %2826 = vmatpush1.msra.mxu0 0.0
    %2827 = vmatprep.subr.mxu0 0.0
    %2828 = vmatpush1.msra.mxu0 0.0
    %2829 = vmatprep.subr.mxu0 0.0
    %2830 = vmatpush1.msra.mxu0 0.0
    %2831 = vmatprep.subr.mxu0 0.0
    %2832 = vmatpush1.msra.mxu0 0.0
    %2833 = vmatprep.subr.mxu0 0.0
    %2834 = vmatpush1.msra.mxu0 0.0
    %2835 = vmatprep.subr.mxu0 0.0
    %2836 = vmatpush1.msra.mxu0 0.0
    %2837 = vmatprep.subr.mxu0 0.0
    %2838 = vmatpush1.msra.mxu0 0.0
    %2839 = vmatprep.subr.mxu0 0.0
    %2840 = vmatpush1.msra.mxu0 0.0
    %2841 = vmatprep.subr.mxu0 0.0
    %2842 = vmatpush1.msra.mxu0 0.0
    %2843 = vmatprep.subr.mxu0 0.0
    %2844 = vmatpush1.msra.mxu0 0.0
    %2845 = vmatprep.subr.mxu0 0.0
    %2846 = vmatpush1.msra.mxu0 0.0
    %2847 = vmatprep.subr.mxu0 0.0
    %2848 = vmatpush1.msra.mxu0 0.0
    %2849 = vmatprep.subr.mxu0 0.0
    %2850 = vmatpush1.msra.mxu0 0.0
    %2851 = vmatprep.subr.mxu0 0.0
    %2852 = vmatpush1.msra.mxu0 0.0
    %2853 = vmatprep.subr.mxu0 0.0
    %2854 = vmatpush1.msra.mxu0 0.0
    %2855 = vmatprep.subr.mxu0 0.0
    %2856 = vmatpush1.msra.mxu0 0.0
    %2857 = vmatprep.subr.mxu0 0.0
    %2858 = vmatpush1.msra.mxu0 0.0
    %2859 = vmatprep.subr.mxu0 0.0
    %2860 = vmatpush1.msra.mxu0 0.0
    %2861 = vmatprep.subr.mxu0 0.0
    %2862 = vmatpush1.msra.mxu0 0.0
    %2863 = vmatprep.subr.mxu0 0.0
    %2864 = vmatpush1.msra.mxu0 0.0
    %2865 = vmatprep.subr.mxu0 0.0
    %2866 = vmatpush1.msra.mxu0 0.0
    %2867 = vmatprep.subr.mxu0 0.0
    %2868 = vmatpush1.msra.mxu0 0.0
    %2869 = vmatprep.subr.mxu0 0.0
    %2870 = vmatpush1.msra.mxu0 0.0
    %2871 = vmatprep.mubr.f32.mxu0 0.0
    %v2872 = vand.u32 %v75, 4294901760
    %v2873 = vsub.f32 %v75, %v2872
    %v2874 = vand.u32 %v2873, 4294901760
    %2875 = vmatmul.mubr.f32.gmra.mrb[0].mxu0 %v2874
    %v2876 = vpop.f32.mrb[0].mxu0
    %v2877 = vadd.f32 %v2795, %v2876
    %v2878 = vpop.f32.mrb[0].mxu0
    %2879 = vmatprep.mubr.f32.mxu0 0.0
    %v2880 = vand.u32 %v78, 4294901760
    %v2881 = vsub.f32 %v78, %v2880
    %v2882 = vand.u32 %v2881, 4294901760
    %2883 = vmatmul.mubr.f32.gmra.mrb[0].mxu0 %v2882
    %v2884 = vpop.f32.mrb[0].mxu0
    %v2885 = vadd.f32 %v2802, %v2884
    %v2886 = vpop.f32.mrb[0].mxu0
    %2887 = vdwg.mxu0
    %2888 = vmatprep.subr.mxu0 0.0
    %v2889 = vand.u32 %v2546, 4294901760
    %v2890 = vsub.f32 %v2546, %v2889
    %v2891 = vand.u32 %v2890, 4294901760
    %2892 = vmatpush1.msra.mxu0 %v2891
    %2893 = vmatprep.subr.mxu0 0.0
    %v2894 = vand.u32 %v2547, 4294901760
    %v2895 = vsub.f32 %v2547, %v2894
    %v2896 = vand.u32 %v2895, 4294901760
    %2897 = vmatpush1.msra.mxu0 %v2896
    %2898 = vmatprep.subr.mxu0 0.0
    %2899 = vmatpush1.msra.mxu0 0.0
    %2900 = vmatprep.subr.mxu0 0.0
    %2901 = vmatpush1.msra.mxu0 0.0
    %2902 = vmatprep.subr.mxu0 0.0
    %2903 = vmatpush1.msra.mxu0 0.0
    %2904 = vmatprep.subr.mxu0 0.0
    %2905 = vmatpush1.msra.mxu0 0.0
    %2906 = vmatprep.subr.mxu0 0.0
    %2907 = vmatpush1.msra.mxu0 0.0
    %2908 = vmatprep.subr.mxu0 0.0
    %2909 = vmatpush1.msra.mxu0 0.0
    %2910 = vmatprep.subr.mxu0 0.0
    %2911 = vmatpush1.msra.mxu0 0.0
    %2912 = vmatprep.subr.mxu0 0.0
    %2913 = vmatpush1.msra.mxu0 0.0
    %2914 = vmatprep.subr.mxu0 0.0
    %2915 = vmatpush1.msra.mxu0 0.0
    %2916 = vmatprep.subr.mxu0 0.0
    %2917 = vmatpush1.msra.mxu0 0.0
    %2918 = vmatprep.subr.mxu0 0.0
    %2919 = vmatpush1.msra.mxu0 0.0
    %2920 = vmatprep.subr.mxu0 0.0
    %2921 = vmatpush1.msra.mxu0 0.0
    %2922 = vmatprep.subr.mxu0 0.0
    %2923 = vmatpush1.msra.mxu0 0.0
    %2924 = vmatprep.subr.mxu0 0.0
    %2925 = vmatpush1.msra.mxu0 0.0
    %2926 = vmatprep.subr.mxu0 0.0
    %2927 = vmatpush1.msra.mxu0 0.0
    %2928 = vmatprep.subr.mxu0 0.0
    %2929 = vmatpush1.msra.mxu0 0.0
    %2930 = vmatprep.subr.mxu0 0.0
    %2931 = vmatpush1.msra.mxu0 0.0
    %2932 = vmatprep.subr.mxu0 0.0
    %2933 = vmatpush1.msra.mxu0 0.0
    %2934 = vmatprep.subr.mxu0 0.0
    %2935 = vmatpush1.msra.mxu0 0.0
    %2936 = vmatprep.subr.mxu0 0.0
    %2937 = vmatpush1.msra.mxu0 0.0
    %2938 = vmatprep.subr.mxu0 0.0
    %2939 = vmatpush1.msra.mxu0 0.0
    %2940 = vmatprep.subr.mxu0 0.0
    %2941 = vmatpush1.msra.mxu0 0.0
    %2942 = vmatprep.subr.mxu0 0.0
    %2943 = vmatpush1.msra.mxu0 0.0
    %2944 = vmatprep.subr.mxu0 0.0
    %2945 = vmatpush1.msra.mxu0 0.0
    %2946 = vmatprep.subr.mxu0 0.0
    %2947 = vmatpush1.msra.mxu0 0.0
    %2948 = vmatprep.subr.mxu0 0.0
    %2949 = vmatpush1.msra.mxu0 0.0
    %2950 = vmatprep.subr.mxu0 0.0
    %2951 = vmatpush1.msra.mxu0 0.0
    %2952 = vmatprep.subr.mxu0 0.0
    %2953 = vmatpush1.msra.mxu0 0.0
    %2954 = vmatprep.subr.mxu0 0.0
    %2955 = vmatpush1.msra.mxu0 0.0
    %2956 = vmatprep.subr.mxu0 0.0
    %2957 = vmatpush1.msra.mxu0 0.0
    %2958 = vmatprep.mubr.f32.mxu0 0.0
    %v2959 = vand.u32 %v75, 4294901760
    %2960 = vmatmul.mubr.f32.gmra.mrb[0].mxu0 %v2959
    %v2961 = vpop.f32.mrb[0].mxu0
    %v2962 = vadd.f32 %v2877, %v2961
    %v2963 = vpop.f32.mrb[0].mxu0
    %2964 = vmatprep.mubr.f32.mxu0 0.0
    %v2965 = vand.u32 %v78, 4294901760
    %2966 = vmatmul.mubr.f32.gmra.mrb[0].mxu0 %v2965
    %v2967 = vpop.f32.mrb[0].mxu0
    %v2968 = vadd.f32 %v2885, %v2967
    %v2969 = vpop.f32.mrb[0].mxu0
    %2970 = vdwg.mxu0
    %2971 = vmatprep.subr.mxu0 0.0
    %v2972 = vand.u32 %v2546, 4294901760
    %2973 = vmatpush1.msra.mxu0 %v2972
    %2974 = vmatprep.subr.mxu0 0.0
    %v2975 = vand.u32 %v2547, 4294901760
    %2976 = vmatpush1.msra.mxu0 %v2975
    %2977 = vmatprep.subr.mxu0 0.0
    %2978 = vmatpush1.msra.mxu0 0.0
    %2979 = vmatprep.subr.mxu0 0.0
    %2980 = vmatpush1.msra.mxu0 0.0
    %2981 = vmatprep.subr.mxu0 0.0
    %2982 = vmatpush1.msra.mxu0 0.0
    %2983 = vmatprep.subr.mxu0 0.0
    %2984 = vmatpush1.msra.mxu0 0.0
    %2985 = vmatprep.subr.mxu0 0.0
    %2986 = vmatpush1.msra.mxu0 0.0
    %2987 = vmatprep.subr.mxu0 0.0
    %2988 = vmatpush1.msra.mxu0 0.0
    %2989 = vmatprep.subr.mxu0 0.0
    %2990 = vmatpush1.msra.mxu0 0.0
    %2991 = vmatprep.subr.mxu0 0.0
    %2992 = vmatpush1.msra.mxu0 0.0
    %2993 = vmatprep.subr.mxu0 0.0
    %2994 = vmatpush1.msra.mxu0 0.0
    %2995 = vmatprep.subr.mxu0 0.0
    %2996 = vmatpush1.msra.mxu0 0.0
    %2997 = vmatprep.subr.mxu0 0.0
    %2998 = vmatpush1.msra.mxu0 0.0
    %2999 = vmatprep.subr.mxu0 0.0
    %3000 = vmatpush1.msra.mxu0 0.0
    %3001 = vmatprep.subr.mxu0 0.0
    %3002 = vmatpush1.msra.mxu0 0.0
    %3003 = vmatprep.subr.mxu0 0.0
    %3004 = vmatpush1.msra.mxu0 0.0
    %3005 = vmatprep.subr.mxu0 0.0
    %3006 = vmatpush1.msra.mxu0 0.0
    %3007 = vmatprep.subr.mxu0 0.0
    %3008 = vmatpush1.msra.mxu0 0.0
    %3009 = vmatprep.subr.mxu0 0.0
    %3010 = vmatpush1.msra.mxu0 0.0
    %3011 = vmatprep.subr.mxu0 0.0
    %3012 = vmatpush1.msra.mxu0 0.0
    %3013 = vmatprep.subr.mxu0 0.0
    %3014 = vmatpush1.msra.mxu0 0.0
    %3015 = vmatprep.subr.mxu0 0.0
    %3016 = vmatpush1.msra.mxu0 0.0
    %3017 = vmatprep.subr.mxu0 0.0
    %3018 = vmatpush1.msra.mxu0 0.0
    %3019 = vmatprep.subr.mxu0 0.0
    %3020 = vmatpush1.msra.mxu0 0.0
    %3021 = vmatprep.subr.mxu0 0.0
    %3022 = vmatpush1.msra.mxu0 0.0
    %3023 = vmatprep.subr.mxu0 0.0
    %3024 = vmatpush1.msra.mxu0 0.0
    %3025 = vmatprep.subr.mxu0 0.0
    %3026 = vmatpush1.msra.mxu0 0.0
    %3027 = vmatprep.subr.mxu0 0.0
    %3028 = vmatpush1.msra.mxu0 0.0
    %3029 = vmatprep.subr.mxu0 0.0
    %3030 = vmatpush1.msra.mxu0 0.0
    %3031 = vmatprep.subr.mxu0 0.0
    %3032 = vmatpush1.msra.mxu0 0.0
    %3033 = vmatprep.subr.mxu0 0.0
    %3034 = vmatpush1.msra.mxu0 0.0
    %3035 = vmatprep.subr.mxu0 0.0
    %3036 = vmatpush1.msra.mxu0 0.0
    %3037 = vmatprep.mubr.f32.mxu0 0.0
    %v3038 = vand.u32 %v75, 4294901760
    %3039 = vmatmul.mubr.f32.gmra.mrb[0].mxu0 %v3038
    %v3040 = vpop.f32.mrb[0].mxu0
    %v3041 = vadd.f32 %v2962, %v3040
    %v3042 = vpop.f32.mrb[0].mxu0
    %3043 = vmatprep.mubr.f32.mxu0 0.0
    %v3044 = vand.u32 %v78, 4294901760
    %3045 = vmatmul.mubr.f32.gmra.mrb[0].mxu0 %v3044
    %v3046 = vpop.f32.mrb[0].mxu0
    %v3047 = vadd.f32 %v2968, %v3046
    %v3048 = vpop.f32.mrb[0].mxu0
    %3049 = vdwg.mxu0
    %v3050 = vmax.f32 %v3041, 0.0
    %v3051 = vmax.f32 %v3047, 0.0
    %s3052 = scalar_lea.vmem %s0, 8
    %v3053 = vld [vmem:[%s3052] sm:$0xff]
    %v3054 = vlaneseq
    %v3055 = vshrl.u32 %v3054, 7
    %v3056 = vsub.s32 0, %v3055
    %v3057 = vrot.slane %v3053, %v3056
    %v3058 = vlaneseq
    %v3059 = vshrl.u32 %v3058, 7
    %v3060 = vsub.s32 1, %v3059
    %v3061 = vrot.slane %v3053, %v3060
    %v3062 = vlaneseq
    %v3063 = vshrl.u32 %v3062, 7
    %v3064 = vsub.s32 2, %v3063
    %v3065 = vrot.slane %v3053, %v3064
    %v3066 = vlaneseq
    %v3067 = vshrl.u32 %v3066, 7
    %v3068 = vsub.s32 3, %v3067
    %v3069 = vrot.slane %v3053, %v3068
    %v3070 = vlaneseq
    %v3071 = vshrl.u32 %v3070, 7
    %v3072 = vsub.s32 4, %v3071
    %v3073 = vrot.slane %v3053, %v3072
    %v3074 = vlaneseq
    %v3075 = vshrl.u32 %v3074, 7
    %v3076 = vsub.s32 5, %v3075
    %v3077 = vrot.slane %v3053, %v3076
    %v3078 = vlaneseq
    %v3079 = vshrl.u32 %v3078, 7
    %v3080 = vsub.s32 6, %v3079
    %v3081 = vrot.slane %v3053, %v3080
    %v3082 = vlaneseq
    %v3083 = vshrl.u32 %v3082, 7
    %v3084 = vsub.s32 7, %v3083
    %v3085 = vrot.slane %v3053, %v3084
    %vm3086 = vcmp.eq.s32.totalorder %v45, %v3057
    %vm3087 = vcmp.eq.s32.totalorder %v45, %v3061
    %vm3088 = vcmp.eq.s32.totalorder %v45, %v3065
    %vm3089 = vcmp.eq.s32.totalorder %v45, %v3069
    %vm3090 = vcmp.eq.s32.totalorder %v45, %v3073
    %vm3091 = vcmp.eq.s32.totalorder %v45, %v3077
    %vm3092 = vcmp.eq.s32.totalorder %v45, %v3081
    %vm3093 = vcmp.eq.s32.totalorder %v45, %v3085
    %vm3094 = vcmp.eq.s32.totalorder %v46, %v3057
    %vm3095 = vcmp.eq.s32.totalorder %v46, %v3061
    %vm3096 = vcmp.eq.s32.totalorder %v46, %v3065
    %vm3097 = vcmp.eq.s32.totalorder %v46, %v3069
    %vm3098 = vcmp.eq.s32.totalorder %v46, %v3073
    %vm3099 = vcmp.eq.s32.totalorder %v46, %v3077
    %vm3100 = vcmp.eq.s32.totalorder %v46, %v3081
    %vm3101 = vcmp.eq.s32.totalorder %v46, %v3085
    %vm3102 = vcmp.eq.s32.totalorder %v47, %v3057
    %vm3103 = vcmp.eq.s32.totalorder %v47, %v3061
    %vm3104 = vcmp.eq.s32.totalorder %v47, %v3065
    %vm3105 = vcmp.eq.s32.totalorder %v47, %v3069
    %vm3106 = vcmp.eq.s32.totalorder %v47, %v3073
    %vm3107 = vcmp.eq.s32.totalorder %v47, %v3077
    %vm3108 = vcmp.eq.s32.totalorder %v47, %v3081
    %vm3109 = vcmp.eq.s32.totalorder %v47, %v3085
    %vm3110 = vcmp.eq.s32.totalorder %v48, %v3057
    %vm3111 = vcmp.eq.s32.totalorder %v48, %v3061
    %vm3112 = vcmp.eq.s32.totalorder %v48, %v3065
    %vm3113 = vcmp.eq.s32.totalorder %v48, %v3069
    %vm3114 = vcmp.eq.s32.totalorder %v48, %v3073
    %vm3115 = vcmp.eq.s32.totalorder %v48, %v3077
    %vm3116 = vcmp.eq.s32.totalorder %v48, %v3081
    %vm3117 = vcmp.eq.s32.totalorder %v48, %v3085
    %vm3118 = vcmp.eq.s32.totalorder %v49, %v3057
    %vm3119 = vcmp.eq.s32.totalorder %v49, %v3061
    %vm3120 = vcmp.eq.s32.totalorder %v49, %v3065
    %vm3121 = vcmp.eq.s32.totalorder %v49, %v3069
    %vm3122 = vcmp.eq.s32.totalorder %v49, %v3073
    %vm3123 = vcmp.eq.s32.totalorder %v49, %v3077
    %vm3124 = vcmp.eq.s32.totalorder %v49, %v3081
    %vm3125 = vcmp.eq.s32.totalorder %v49, %v3085
    %vm3126 = vcmp.eq.s32.totalorder %v50, %v3057
    %vm3127 = vcmp.eq.s32.totalorder %v50, %v3061
    %vm3128 = vcmp.eq.s32.totalorder %v50, %v3065
    %vm3129 = vcmp.eq.s32.totalorder %v50, %v3069
    %vm3130 = vcmp.eq.s32.totalorder %v50, %v3073
    %vm3131 = vcmp.eq.s32.totalorder %v50, %v3077
    %vm3132 = vcmp.eq.s32.totalorder %v50, %v3081
    %vm3133 = vcmp.eq.s32.totalorder %v50, %v3085
    %vm3134 = vcmp.eq.s32.totalorder %v51, %v3057
    %vm3135 = vcmp.eq.s32.totalorder %v51, %v3061
    %vm3136 = vcmp.eq.s32.totalorder %v51, %v3065
    %vm3137 = vcmp.eq.s32.totalorder %v51, %v3069
    %vm3138 = vcmp.eq.s32.totalorder %v51, %v3073
    %vm3139 = vcmp.eq.s32.totalorder %v51, %v3077
    %vm3140 = vcmp.eq.s32.totalorder %v51, %v3081
    %vm3141 = vcmp.eq.s32.totalorder %v51, %v3085
    %vm3142 = vcmp.eq.s32.totalorder %v52, %v3057
    %vm3143 = vcmp.eq.s32.totalorder %v52, %v3061
    %vm3144 = vcmp.eq.s32.totalorder %v52, %v3065
    %vm3145 = vcmp.eq.s32.totalorder %v52, %v3069
    %vm3146 = vcmp.eq.s32.totalorder %v52, %v3073
    %vm3147 = vcmp.eq.s32.totalorder %v52, %v3077
    %vm3148 = vcmp.eq.s32.totalorder %v52, %v3081
    %vm3149 = vcmp.eq.s32.totalorder %v52, %v3085
    %vm3150 = vcmp.eq.s32.totalorder %v53, %v3057
    %vm3151 = vcmp.eq.s32.totalorder %v53, %v3061
    %vm3152 = vcmp.eq.s32.totalorder %v53, %v3065
    %vm3153 = vcmp.eq.s32.totalorder %v53, %v3069
    %vm3154 = vcmp.eq.s32.totalorder %v53, %v3073
    %vm3155 = vcmp.eq.s32.totalorder %v53, %v3077
    %vm3156 = vcmp.eq.s32.totalorder %v53, %v3081
    %vm3157 = vcmp.eq.s32.totalorder %v53, %v3085
    %vm3158 = vcmp.eq.s32.totalorder %v54, %v3057
    %vm3159 = vcmp.eq.s32.totalorder %v54, %v3061
    %vm3160 = vcmp.eq.s32.totalorder %v54, %v3065
    %vm3161 = vcmp.eq.s32.totalorder %v54, %v3069
    %vm3162 = vcmp.eq.s32.totalorder %v54, %v3073
    %vm3163 = vcmp.eq.s32.totalorder %v54, %v3077
    %vm3164 = vcmp.eq.s32.totalorder %v54, %v3081
    %vm3165 = vcmp.eq.s32.totalorder %v54, %v3085
    %vm3166 = vcmp.eq.s32.totalorder %v55, %v3057
    %vm3167 = vcmp.eq.s32.totalorder %v55, %v3061
    %vm3168 = vcmp.eq.s32.totalorder %v55, %v3065
    %vm3169 = vcmp.eq.s32.totalorder %v55, %v3069
    %vm3170 = vcmp.eq.s32.totalorder %v55, %v3073
    %vm3171 = vcmp.eq.s32.totalorder %v55, %v3077
    %vm3172 = vcmp.eq.s32.totalorder %v55, %v3081
    %vm3173 = vcmp.eq.s32.totalorder %v55, %v3085
    %vm3174 = vcmp.eq.s32.totalorder %v56, %v3057
    %vm3175 = vcmp.eq.s32.totalorder %v56, %v3061
    %vm3176 = vcmp.eq.s32.totalorder %v56, %v3065
    %vm3177 = vcmp.eq.s32.totalorder %v56, %v3069
    %vm3178 = vcmp.eq.s32.totalorder %v56, %v3073
    %vm3179 = vcmp.eq.s32.totalorder %v56, %v3077
    %vm3180 = vcmp.eq.s32.totalorder %v56, %v3081
    %vm3181 = vcmp.eq.s32.totalorder %v56, %v3085
    %vm3182 = vcmp.eq.s32.totalorder %v57, %v3057
    %vm3183 = vcmp.eq.s32.totalorder %v57, %v3061
    %vm3184 = vcmp.eq.s32.totalorder %v57, %v3065
    %vm3185 = vcmp.eq.s32.totalorder %v57, %v3069
    %vm3186 = vcmp.eq.s32.totalorder %v57, %v3073
    %vm3187 = vcmp.eq.s32.totalorder %v57, %v3077
    %vm3188 = vcmp.eq.s32.totalorder %v57, %v3081
    %vm3189 = vcmp.eq.s32.totalorder %v57, %v3085
    %vm3190 = vcmp.eq.s32.totalorder %v58, %v3057
    %vm3191 = vcmp.eq.s32.totalorder %v58, %v3061
    %vm3192 = vcmp.eq.s32.totalorder %v58, %v3065
    %vm3193 = vcmp.eq.s32.totalorder %v58, %v3069
    %vm3194 = vcmp.eq.s32.totalorder %v58, %v3073
    %vm3195 = vcmp.eq.s32.totalorder %v58, %v3077
    %vm3196 = vcmp.eq.s32.totalorder %v58, %v3081
    %vm3197 = vcmp.eq.s32.totalorder %v58, %v3085
    %vm3198 = vcmp.eq.s32.totalorder %v59, %v3057
    %vm3199 = vcmp.eq.s32.totalorder %v59, %v3061
    %vm3200 = vcmp.eq.s32.totalorder %v59, %v3065
    %vm3201 = vcmp.eq.s32.totalorder %v59, %v3069
    %vm3202 = vcmp.eq.s32.totalorder %v59, %v3073
    %vm3203 = vcmp.eq.s32.totalorder %v59, %v3077
    %vm3204 = vcmp.eq.s32.totalorder %v59, %v3081
    %vm3205 = vcmp.eq.s32.totalorder %v59, %v3085
    %vm3206 = vcmp.eq.s32.totalorder %v60, %v3057
    %vm3207 = vcmp.eq.s32.totalorder %v60, %v3061
    %vm3208 = vcmp.eq.s32.totalorder %v60, %v3065
    %vm3209 = vcmp.eq.s32.totalorder %v60, %v3069
    %vm3210 = vcmp.eq.s32.totalorder %v60, %v3073
    %vm3211 = vcmp.eq.s32.totalorder %v60, %v3077
    %vm3212 = vcmp.eq.s32.totalorder %v60, %v3081
    %vm3213 = vcmp.eq.s32.totalorder %v60, %v3085
    %v3214 = vsel %vm3086, 1, 0
    %v3215 = vsel %vm3087, 1, 0
    %v3216 = vsel %vm3088, 1, 0
    %v3217 = vsel %vm3089, 1, 0
    %v3218 = vsel %vm3090, 1, 0
    %v3219 = vsel %vm3091, 1, 0
    %v3220 = vsel %vm3092, 1, 0
    %v3221 = vsel %vm3093, 1, 0
    %v3222 = vsel %vm3094, 1, 0
    %v3223 = vsel %vm3095, 1, 0
    %v3224 = vsel %vm3096, 1, 0
    %v3225 = vsel %vm3097, 1, 0
    %v3226 = vsel %vm3098, 1, 0
    %v3227 = vsel %vm3099, 1, 0
    %v3228 = vsel %vm3100, 1, 0
    %v3229 = vsel %vm3101, 1, 0
    %v3230 = vsel %vm3102, 1, 0
    %v3231 = vsel %vm3103, 1, 0
    %v3232 = vsel %vm3104, 1, 0
    %v3233 = vsel %vm3105, 1, 0
    %v3234 = vsel %vm3106, 1, 0
    %v3235 = vsel %vm3107, 1, 0
    %v3236 = vsel %vm3108, 1, 0
    %v3237 = vsel %vm3109, 1, 0
    %v3238 = vsel %vm3110, 1, 0
    %v3239 = vsel %vm3111, 1, 0
    %v3240 = vsel %vm3112, 1, 0
    %v3241 = vsel %vm3113, 1, 0
    %v3242 = vsel %vm3114, 1, 0
    %v3243 = vsel %vm3115, 1, 0
    %v3244 = vsel %vm3116, 1, 0
    %v3245 = vsel %vm3117, 1, 0
    %v3246 = vsel %vm3118, 1, 0
    %v3247 = vsel %vm3119, 1, 0
    %v3248 = vsel %vm3120, 1, 0
    %v3249 = vsel %vm3121, 1, 0
    %v3250 = vsel %vm3122, 1, 0
    %v3251 = vsel %vm3123, 1, 0
    %v3252 = vsel %vm3124, 1, 0
    %v3253 = vsel %vm3125, 1, 0
    %v3254 = vsel %vm3126, 1, 0
    %v3255 = vsel %vm3127, 1, 0
    %v3256 = vsel %vm3128, 1, 0
    %v3257 = vsel %vm3129, 1, 0
    %v3258 = vsel %vm3130, 1, 0
    %v3259 = vsel %vm3131, 1, 0
    %v3260 = vsel %vm3132, 1, 0
    %v3261 = vsel %vm3133, 1, 0
    %v3262 = vsel %vm3134, 1, 0
    %v3263 = vsel %vm3135, 1, 0
    %v3264 = vsel %vm3136, 1, 0
    %v3265 = vsel %vm3137, 1, 0
    %v3266 = vsel %vm3138, 1, 0
    %v3267 = vsel %vm3139, 1, 0
    %v3268 = vsel %vm3140, 1, 0
    %v3269 = vsel %vm3141, 1, 0
    %v3270 = vsel %vm3142, 1, 0
    %v3271 = vsel %vm3143, 1, 0
    %v3272 = vsel %vm3144, 1, 0
    %v3273 = vsel %vm3145, 1, 0
    %v3274 = vsel %vm3146, 1, 0
    %v3275 = vsel %vm3147, 1, 0
    %v3276 = vsel %vm3148, 1, 0
    %v3277 = vsel %vm3149, 1, 0
    %v3278 = vsel %vm3150, 1, 0
    %v3279 = vsel %vm3151, 1, 0
    %v3280 = vsel %vm3152, 1, 0
    %v3281 = vsel %vm3153, 1, 0
    %v3282 = vsel %vm3154, 1, 0
    %v3283 = vsel %vm3155, 1, 0
    %v3284 = vsel %vm3156, 1, 0
    %v3285 = vsel %vm3157, 1, 0
    %v3286 = vsel %vm3158, 1, 0
    %v3287 = vsel %vm3159, 1, 0
    %v3288 = vsel %vm3160, 1, 0
    %v3289 = vsel %vm3161, 1, 0
    %v3290 = vsel %vm3162, 1, 0
    %v3291 = vsel %vm3163, 1, 0
    %v3292 = vsel %vm3164, 1, 0
    %v3293 = vsel %vm3165, 1, 0
    %v3294 = vsel %vm3166, 1, 0
    %v3295 = vsel %vm3167, 1, 0
    %v3296 = vsel %vm3168, 1, 0
    %v3297 = vsel %vm3169, 1, 0
    %v3298 = vsel %vm3170, 1, 0
    %v3299 = vsel %vm3171, 1, 0
    %v3300 = vsel %vm3172, 1, 0
    %v3301 = vsel %vm3173, 1, 0
    %v3302 = vsel %vm3174, 1, 0
    %v3303 = vsel %vm3175, 1, 0
    %v3304 = vsel %vm3176, 1, 0
    %v3305 = vsel %vm3177, 1, 0
    %v3306 = vsel %vm3178, 1, 0
    %v3307 = vsel %vm3179, 1, 0
    %v3308 = vsel %vm3180, 1, 0
    %v3309 = vsel %vm3181, 1, 0
    %v3310 = vsel %vm3182, 1, 0
    %v3311 = vsel %vm3183, 1, 0
    %v3312 = vsel %vm3184, 1, 0
    %v3313 = vsel %vm3185, 1, 0
    %v3314 = vsel %vm3186, 1, 0
    %v3315 = vsel %vm3187, 1, 0
    %v3316 = vsel %vm3188, 1, 0
    %v3317 = vsel %vm3189, 1, 0
    %v3318 = vsel %vm3190, 1, 0
    %v3319 = vsel %vm3191, 1, 0
    %v3320 = vsel %vm3192, 1, 0
    %v3321 = vsel %vm3193, 1, 0
    %v3322 = vsel %vm3194, 1, 0
    %v3323 = vsel %vm3195, 1, 0
    %v3324 = vsel %vm3196, 1, 0
    %v3325 = vsel %vm3197, 1, 0
    %v3326 = vsel %vm3198, 1, 0
    %v3327 = vsel %vm3199, 1, 0
    %v3328 = vsel %vm3200, 1, 0
    %v3329 = vsel %vm3201, 1, 0
    %v3330 = vsel %vm3202, 1, 0
    %v3331 = vsel %vm3203, 1, 0
    %v3332 = vsel %vm3204, 1, 0
    %v3333 = vsel %vm3205, 1, 0
    %v3334 = vsel %vm3206, 1, 0
    %v3335 = vsel %vm3207, 1, 0
    %v3336 = vsel %vm3208, 1, 0
    %v3337 = vsel %vm3209, 1, 0
    %v3338 = vsel %vm3210, 1, 0
    %v3339 = vsel %vm3211, 1, 0
    %v3340 = vsel %vm3212, 1, 0
    %v3341 = vsel %vm3213, 1, 0
    %v3342 = vcvt.s32.f32 %v3214
    %v3343 = vcvt.s32.f32 %v3215
    %v3344 = vcvt.s32.f32 %v3216
    %v3345 = vcvt.s32.f32 %v3217
    %v3346 = vcvt.s32.f32 %v3218
    %v3347 = vcvt.s32.f32 %v3219
    %v3348 = vcvt.s32.f32 %v3220
    %v3349 = vcvt.s32.f32 %v3221
    %v3350 = vcvt.s32.f32 %v3222
    %v3351 = vcvt.s32.f32 %v3223
    %v3352 = vcvt.s32.f32 %v3224
    %v3353 = vcvt.s32.f32 %v3225
    %v3354 = vcvt.s32.f32 %v3226
    %v3355 = vcvt.s32.f32 %v3227
    %v3356 = vcvt.s32.f32 %v3228
    %v3357 = vcvt.s32.f32 %v3229
    %v3358 = vcvt.s32.f32 %v3230
    %v3359 = vcvt.s32.f32 %v3231
    %v3360 = vcvt.s32.f32 %v3232
    %v3361 = vcvt.s32.f32 %v3233
    %v3362 = vcvt.s32.f32 %v3234
    %v3363 = vcvt.s32.f32 %v3235
    %v3364 = vcvt.s32.f32 %v3236
    %v3365 = vcvt.s32.f32 %v3237
    %v3366 = vcvt.s32.f32 %v3238
    %v3367 = vcvt.s32.f32 %v3239
    %v3368 = vcvt.s32.f32 %v3240
    %v3369 = vcvt.s32.f32 %v3241
    %v3370 = vcvt.s32.f32 %v3242
    %v3371 = vcvt.s32.f32 %v3243
    %v3372 = vcvt.s32.f32 %v3244
    %v3373 = vcvt.s32.f32 %v3245
    %v3374 = vcvt.s32.f32 %v3246
    %v3375 = vcvt.s32.f32 %v3247
    %v3376 = vcvt.s32.f32 %v3248
    %v3377 = vcvt.s32.f32 %v3249
    %v3378 = vcvt.s32.f32 %v3250
    %v3379 = vcvt.s32.f32 %v3251
    %v3380 = vcvt.s32.f32 %v3252
    %v3381 = vcvt.s32.f32 %v3253
    %v3382 = vcvt.s32.f32 %v3254
    %v3383 = vcvt.s32.f32 %v3255
    %v3384 = vcvt.s32.f32 %v3256
    %v3385 = vcvt.s32.f32 %v3257
    %v3386 = vcvt.s32.f32 %v3258
    %v3387 = vcvt.s32.f32 %v3259
    %v3388 = vcvt.s32.f32 %v3260
    %v3389 = vcvt.s32.f32 %v3261
    %v3390 = vcvt.s32.f32 %v3262
    %v3391 = vcvt.s32.f32 %v3263
    %v3392 = vcvt.s32.f32 %v3264
    %v3393 = vcvt.s32.f32 %v3265
    %v3394 = vcvt.s32.f32 %v3266
    %v3395 = vcvt.s32.f32 %v3267
    %v3396 = vcvt.s32.f32 %v3268
    %v3397 = vcvt.s32.f32 %v3269
    %v3398 = vcvt.s32.f32 %v3270
    %v3399 = vcvt.s32.f32 %v3271
    %v3400 = vcvt.s32.f32 %v3272
    %v3401 = vcvt.s32.f32 %v3273
    %v3402 = vcvt.s32.f32 %v3274
    %v3403 = vcvt.s32.f32 %v3275
    %v3404 = vcvt.s32.f32 %v3276
    %v3405 = vcvt.s32.f32 %v3277
    %v3406 = vcvt.s32.f32 %v3278
    %v3407 = vcvt.s32.f32 %v3279
    %v3408 = vcvt.s32.f32 %v3280
    %v3409 = vcvt.s32.f32 %v3281
    %v3410 = vcvt.s32.f32 %v3282
    %v3411 = vcvt.s32.f32 %v3283
    %v3412 = vcvt.s32.f32 %v3284
    %v3413 = vcvt.s32.f32 %v3285
    %v3414 = vcvt.s32.f32 %v3286
    %v3415 = vcvt.s32.f32 %v3287
    %v3416 = vcvt.s32.f32 %v3288
    %v3417 = vcvt.s32.f32 %v3289
    %v3418 = vcvt.s32.f32 %v3290
    %v3419 = vcvt.s32.f32 %v3291
    %v3420 = vcvt.s32.f32 %v3292
    %v3421 = vcvt.s32.f32 %v3293
    %v3422 = vcvt.s32.f32 %v3294
    %v3423 = vcvt.s32.f32 %v3295
    %v3424 = vcvt.s32.f32 %v3296
    %v3425 = vcvt.s32.f32 %v3297
    %v3426 = vcvt.s32.f32 %v3298
    %v3427 = vcvt.s32.f32 %v3299
    %v3428 = vcvt.s32.f32 %v3300
    %v3429 = vcvt.s32.f32 %v3301
    %v3430 = vcvt.s32.f32 %v3302
    %v3431 = vcvt.s32.f32 %v3303
    %v3432 = vcvt.s32.f32 %v3304
    %v3433 = vcvt.s32.f32 %v3305
    %v3434 = vcvt.s32.f32 %v3306
    %v3435 = vcvt.s32.f32 %v3307
    %v3436 = vcvt.s32.f32 %v3308
    %v3437 = vcvt.s32.f32 %v3309
    %v3438 = vcvt.s32.f32 %v3310
    %v3439 = vcvt.s32.f32 %v3311
    %v3440 = vcvt.s32.f32 %v3312
    %v3441 = vcvt.s32.f32 %v3313
    %v3442 = vcvt.s32.f32 %v3314
    %v3443 = vcvt.s32.f32 %v3315
    %v3444 = vcvt.s32.f32 %v3316
    %v3445 = vcvt.s32.f32 %v3317
    %v3446 = vcvt.s32.f32 %v3318
    %v3447 = vcvt.s32.f32 %v3319
    %v3448 = vcvt.s32.f32 %v3320
    %v3449 = vcvt.s32.f32 %v3321
    %v3450 = vcvt.s32.f32 %v3322
    %v3451 = vcvt.s32.f32 %v3323
    %v3452 = vcvt.s32.f32 %v3324
    %v3453 = vcvt.s32.f32 %v3325
    %v3454 = vcvt.s32.f32 %v3326
    %v3455 = vcvt.s32.f32 %v3327
    %v3456 = vcvt.s32.f32 %v3328
    %v3457 = vcvt.s32.f32 %v3329
    %v3458 = vcvt.s32.f32 %v3330
    %v3459 = vcvt.s32.f32 %v3331
    %v3460 = vcvt.s32.f32 %v3332
    %v3461 = vcvt.s32.f32 %v3333
    %v3462 = vcvt.s32.f32 %v3334
    %v3463 = vcvt.s32.f32 %v3335
    %v3464 = vcvt.s32.f32 %v3336
    %v3465 = vcvt.s32.f32 %v3337
    %v3466 = vcvt.s32.f32 %v3338
    %v3467 = vcvt.s32.f32 %v3339
    %v3468 = vcvt.s32.f32 %v3340
    %v3469 = vcvt.s32.f32 %v3341
    %v3470 = vpack.c.bf16 %v3350, %v3342
    %v3471 = vpack.c.bf16 %v3351, %v3343
    %v3472 = vpack.c.bf16 %v3352, %v3344
    %v3473 = vpack.c.bf16 %v3353, %v3345
    %v3474 = vpack.c.bf16 %v3354, %v3346
    %v3475 = vpack.c.bf16 %v3355, %v3347
    %v3476 = vpack.c.bf16 %v3356, %v3348
    %v3477 = vpack.c.bf16 %v3357, %v3349
    %v3478 = vpack.c.bf16 %v3366, %v3358
    %v3479 = vpack.c.bf16 %v3367, %v3359
    %v3480 = vpack.c.bf16 %v3368, %v3360
    %v3481 = vpack.c.bf16 %v3369, %v3361
    %v3482 = vpack.c.bf16 %v3370, %v3362
    %v3483 = vpack.c.bf16 %v3371, %v3363
    %v3484 = vpack.c.bf16 %v3372, %v3364
    %v3485 = vpack.c.bf16 %v3373, %v3365
    %v3486 = vpack.c.bf16 %v3382, %v3374
    %v3487 = vpack.c.bf16 %v3383, %v3375
    %v3488 = vpack.c.bf16 %v3384, %v3376
    %v3489 = vpack.c.bf16 %v3385, %v3377
    %v3490 = vpack.c.bf16 %v3386, %v3378
    %v3491 = vpack.c.bf16 %v3387, %v3379
    %v3492 = vpack.c.bf16 %v3388, %v3380
    %v3493 = vpack.c.bf16 %v3389, %v3381
    %v3494 = vpack.c.bf16 %v3398, %v3390
    %v3495 = vpack.c.bf16 %v3399, %v3391
    %v3496 = vpack.c.bf16 %v3400, %v3392
    %v3497 = vpack.c.bf16 %v3401, %v3393
    %v3498 = vpack.c.bf16 %v3402, %v3394
    %v3499 = vpack.c.bf16 %v3403, %v3395
    %v3500 = vpack.c.bf16 %v3404, %v3396
    %v3501 = vpack.c.bf16 %v3405, %v3397
    %v3502 = vpack.c.bf16 %v3414, %v3406
    %v3503 = vpack.c.bf16 %v3415, %v3407
    %v3504 = vpack.c.bf16 %v3416, %v3408
    %v3505 = vpack.c.bf16 %v3417, %v3409
    %v3506 = vpack.c.bf16 %v3418, %v3410
    %v3507 = vpack.c.bf16 %v3419, %v3411
    %v3508 = vpack.c.bf16 %v3420, %v3412
    %v3509 = vpack.c.bf16 %v3421, %v3413
    %v3510 = vpack.c.bf16 %v3430, %v3422
    %v3511 = vpack.c.bf16 %v3431, %v3423
    %v3512 = vpack.c.bf16 %v3432, %v3424
    %v3513 = vpack.c.bf16 %v3433, %v3425
    %v3514 = vpack.c.bf16 %v3434, %v3426
    %v3515 = vpack.c.bf16 %v3435, %v3427
    %v3516 = vpack.c.bf16 %v3436, %v3428
    %v3517 = vpack.c.bf16 %v3437, %v3429
    %v3518 = vpack.c.bf16 %v3446, %v3438
    %v3519 = vpack.c.bf16 %v3447, %v3439
    %v3520 = vpack.c.bf16 %v3448, %v3440
    %v3521 = vpack.c.bf16 %v3449, %v3441
    %v3522 = vpack.c.bf16 %v3450, %v3442
    %v3523 = vpack.c.bf16 %v3451, %v3443
    %v3524 = vpack.c.bf16 %v3452, %v3444
    %v3525 = vpack.c.bf16 %v3453, %v3445
    %v3526 = vpack.c.bf16 %v3462, %v3454
    %v3527 = vpack.c.bf16 %v3463, %v3455
    %v3528 = vpack.c.bf16 %v3464, %v3456
    %v3529 = vpack.c.bf16 %v3465, %v3457
    %v3530 = vpack.c.bf16 %v3466, %v3458
    %v3531 = vpack.c.bf16 %v3467, %v3459
    %v3532 = vpack.c.bf16 %v3468, %v3460
    %v3533 = vpack.c.bf16 %v3469, %v3461
    %v3534 = vpack.c.bf16 %v3051, %v3050
    %v3535 = vunpack.c.l.bf16 %v3534
    %v3536 = vunpack.c.h.bf16 %v3534
    %v3537 = vsub.f32 %v3050, %v3535
    %v3538 = vsub.f32 %v3051, %v3536
    %v3539 = vpack.c.bf16 %v3538, %v3537
    %3540 = vmatprep.subr.bf16.mxu0 %v3471
    %3541 = vmatpush1.bf16.msra.mxu0 %v3470
    %3542 = vmatprep.subr.bf16.mxu0 %v3479
    %3543 = vmatpush1.bf16.msra.mxu0 %v3478
    %3544 = vmatprep.subr.bf16.mxu0 %v3487
    %3545 = vmatpush1.bf16.msra.mxu0 %v3486
    %3546 = vmatprep.subr.bf16.mxu0 %v3495
    %3547 = vmatpush1.bf16.msra.mxu0 %v3494
    %3548 = vmatprep.subr.bf16.mxu0 %v3503
    %3549 = vmatpush1.bf16.msra.mxu0 %v3502
    %3550 = vmatprep.subr.bf16.mxu0 %v3511
    %3551 = vmatpush1.bf16.msra.mxu0 %v3510
    %3552 = vmatprep.subr.bf16.mxu0 %v3519
    %3553 = vmatpush1.bf16.msra.mxu0 %v3518
    %3554 = vmatprep.subr.bf16.mxu0 %v3527
    %3555 = vmatpush1.bf16.msra.mxu0 %v3526
    %3556 = vmatprep.subr.bf16.mxu0 0
    %3557 = vmatpush1.bf16.msra.mxu0 0
    %3558 = vmatprep.subr.bf16.mxu0 0
    %3559 = vmatpush1.bf16.msra.mxu0 0
    %3560 = vmatprep.subr.bf16.mxu0 0
    %3561 = vmatpush1.bf16.msra.mxu0 0
    %3562 = vmatprep.subr.bf16.mxu0 0
    %3563 = vmatpush1.bf16.msra.mxu0 0
    %3564 = vmatprep.subr.bf16.mxu0 0
    %3565 = vmatpush1.bf16.msra.mxu0 0
    %3566 = vmatprep.subr.bf16.mxu0 0
    %3567 = vmatpush1.bf16.msra.mxu0 0
    %3568 = vmatprep.subr.bf16.mxu0 0
    %3569 = vmatpush1.bf16.msra.mxu0 0
    %3570 = vmatprep.subr.bf16.mxu0 0
    %3571 = vmatpush1.bf16.msra.mxu0 0
    %3572 = vmatprep.mubr.bf16.mxu0 0
    %3573 = vmatmul.mubr.bf16.gmra.mrb[0].mxu0 %v3534
    %v3574 = vpop.f32.mrb[0].mxu0
    %v3575 = vadd.f32 0.0, %v3574
    %v3576 = vpop.f32.mrb[0].mxu0
    %v3577 = vadd.f32 0.0, %v3576
    %v3578 = vpop.f32.mrb[0].mxu0
    %v3579 = vadd.f32 0.0, %v3578
    %v3580 = vpop.f32.mrb[0].mxu0
    %v3581 = vadd.f32 0.0, %v3580
    %3582 = vmatprep.mubr.bf16.mxu0 0
    %3583 = vmatmul.mubr.bf16.gmra.mrb[0].mxu0 %v3539
    %v3584 = vpop.f32.mrb[0].mxu0
    %v3585 = vadd.f32 0.0, %v3584
    %v3586 = vpop.f32.mrb[0].mxu0
    %v3587 = vadd.f32 0.0, %v3586
    %v3588 = vpop.f32.mrb[0].mxu0
    %v3589 = vadd.f32 0.0, %v3588
    %v3590 = vpop.f32.mrb[0].mxu0
    %v3591 = vadd.f32 0.0, %v3590
    %3592 = vdwg.mxu0
    %3593 = vmatprep.subr.bf16.mxu0 %v3473
    %3594 = vmatpush1.bf16.msra.mxu0 %v3472
    %3595 = vmatprep.subr.bf16.mxu0 %v3481
    %3596 = vmatpush1.bf16.msra.mxu0 %v3480
    %3597 = vmatprep.subr.bf16.mxu0 %v3489
    %3598 = vmatpush1.bf16.msra.mxu0 %v3488
    %3599 = vmatprep.subr.bf16.mxu0 %v3497
    %3600 = vmatpush1.bf16.msra.mxu0 %v3496
    %3601 = vmatprep.subr.bf16.mxu0 %v3505
    %3602 = vmatpush1.bf16.msra.mxu0 %v3504
    %3603 = vmatprep.subr.bf16.mxu0 %v3513
    %3604 = vmatpush1.bf16.msra.mxu0 %v3512
    %3605 = vmatprep.subr.bf16.mxu0 %v3521
    %3606 = vmatpush1.bf16.msra.mxu0 %v3520
    %3607 = vmatprep.subr.bf16.mxu0 %v3529
    %3608 = vmatpush1.bf16.msra.mxu0 %v3528
    %3609 = vmatprep.subr.bf16.mxu0 0
    %3610 = vmatpush1.bf16.msra.mxu0 0
    %3611 = vmatprep.subr.bf16.mxu0 0
    %3612 = vmatpush1.bf16.msra.mxu0 0
    %3613 = vmatprep.subr.bf16.mxu0 0
    %3614 = vmatpush1.bf16.msra.mxu0 0
    %3615 = vmatprep.subr.bf16.mxu0 0
    %3616 = vmatpush1.bf16.msra.mxu0 0
    %3617 = vmatprep.subr.bf16.mxu0 0
    %3618 = vmatpush1.bf16.msra.mxu0 0
    %3619 = vmatprep.subr.bf16.mxu0 0
    %3620 = vmatpush1.bf16.msra.mxu0 0
    %3621 = vmatprep.subr.bf16.mxu0 0
    %3622 = vmatpush1.bf16.msra.mxu0 0
    %3623 = vmatprep.subr.bf16.mxu0 0
    %3624 = vmatpush1.bf16.msra.mxu0 0
    %3625 = vmatprep.mubr.bf16.mxu0 0
    %3626 = vmatmul.mubr.bf16.gmra.mrb[0].mxu0 %v3534
    %v3627 = vpop.f32.mrb[0].mxu0
    %v3628 = vadd.f32 0.0, %v3627
    %v3629 = vpop.f32.mrb[0].mxu0
    %v3630 = vadd.f32 0.0, %v3629
    %v3631 = vpop.f32.mrb[0].mxu0
    %v3632 = vadd.f32 0.0, %v3631
    %v3633 = vpop.f32.mrb[0].mxu0
    %v3634 = vadd.f32 0.0, %v3633
    %3635 = vmatprep.mubr.bf16.mxu0 0
    %3636 = vmatmul.mubr.bf16.gmra.mrb[0].mxu0 %v3539
    %v3637 = vpop.f32.mrb[0].mxu0
    %v3638 = vadd.f32 0.0, %v3637
    %v3639 = vpop.f32.mrb[0].mxu0
    %v3640 = vadd.f32 0.0, %v3639
    %v3641 = vpop.f32.mrb[0].mxu0
    %v3642 = vadd.f32 0.0, %v3641
    %v3643 = vpop.f32.mrb[0].mxu0
    %v3644 = vadd.f32 0.0, %v3643
    %3645 = vdwg.mxu0
    %3646 = vmatprep.subr.bf16.mxu0 %v3475
    %3647 = vmatpush1.bf16.msra.mxu0 %v3474
    %3648 = vmatprep.subr.bf16.mxu0 %v3483
    %3649 = vmatpush1.bf16.msra.mxu0 %v3482
    %3650 = vmatprep.subr.bf16.mxu0 %v3491
    %3651 = vmatpush1.bf16.msra.mxu0 %v3490
    %3652 = vmatprep.subr.bf16.mxu0 %v3499
    %3653 = vmatpush1.bf16.msra.mxu0 %v3498
    %3654 = vmatprep.subr.bf16.mxu0 %v3507
    %3655 = vmatpush1.bf16.msra.mxu0 %v3506
    %3656 = vmatprep.subr.bf16.mxu0 %v3515
    %3657 = vmatpush1.bf16.msra.mxu0 %v3514
    %3658 = vmatprep.subr.bf16.mxu0 %v3523
    %3659 = vmatpush1.bf16.msra.mxu0 %v3522
    %3660 = vmatprep.subr.bf16.mxu0 %v3531
    %3661 = vmatpush1.bf16.msra.mxu0 %v3530
    %3662 = vmatprep.subr.bf16.mxu0 0
    %3663 = vmatpush1.bf16.msra.mxu0 0
    %3664 = vmatprep.subr.bf16.mxu0 0
    %3665 = vmatpush1.bf16.msra.mxu0 0
    %3666 = vmatprep.subr.bf16.mxu0 0
    %3667 = vmatpush1.bf16.msra.mxu0 0
    %3668 = vmatprep.subr.bf16.mxu0 0
    %3669 = vmatpush1.bf16.msra.mxu0 0
    %3670 = vmatprep.subr.bf16.mxu0 0
    %3671 = vmatpush1.bf16.msra.mxu0 0
    %3672 = vmatprep.subr.bf16.mxu0 0
    %3673 = vmatpush1.bf16.msra.mxu0 0
    %3674 = vmatprep.subr.bf16.mxu0 0
    %3675 = vmatpush1.bf16.msra.mxu0 0
    %3676 = vmatprep.subr.bf16.mxu0 0
    %3677 = vmatpush1.bf16.msra.mxu0 0
    %3678 = vmatprep.mubr.bf16.mxu0 0
    %3679 = vmatmul.mubr.bf16.gmra.mrb[0].mxu0 %v3534
    %v3680 = vpop.f32.mrb[0].mxu0
    %v3681 = vadd.f32 0.0, %v3680
    %v3682 = vpop.f32.mrb[0].mxu0
    %v3683 = vadd.f32 0.0, %v3682
    %v3684 = vpop.f32.mrb[0].mxu0
    %v3685 = vadd.f32 0.0, %v3684
    %v3686 = vpop.f32.mrb[0].mxu0
    %v3687 = vadd.f32 0.0, %v3686
    %3688 = vmatprep.mubr.bf16.mxu0 0
    %3689 = vmatmul.mubr.bf16.gmra.mrb[0].mxu0 %v3539
    %v3690 = vpop.f32.mrb[0].mxu0
    %v3691 = vadd.f32 0.0, %v3690
    %v3692 = vpop.f32.mrb[0].mxu0
    %v3693 = vadd.f32 0.0, %v3692
    %v3694 = vpop.f32.mrb[0].mxu0
    %v3695 = vadd.f32 0.0, %v3694
    %v3696 = vpop.f32.mrb[0].mxu0
    %v3697 = vadd.f32 0.0, %v3696
    %3698 = vdwg.mxu0
    %3699 = vmatprep.subr.bf16.mxu0 %v3477
    %3700 = vmatpush1.bf16.msra.mxu0 %v3476
    %3701 = vmatprep.subr.bf16.mxu0 %v3485
    %3702 = vmatpush1.bf16.msra.mxu0 %v3484
    %3703 = vmatprep.subr.bf16.mxu0 %v3493
    %3704 = vmatpush1.bf16.msra.mxu0 %v3492
    %3705 = vmatprep.subr.bf16.mxu0 %v3501
    %3706 = vmatpush1.bf16.msra.mxu0 %v3500
    %3707 = vmatprep.subr.bf16.mxu0 %v3509
    %3708 = vmatpush1.bf16.msra.mxu0 %v3508
    %3709 = vmatprep.subr.bf16.mxu0 %v3517
    %3710 = vmatpush1.bf16.msra.mxu0 %v3516
    %3711 = vmatprep.subr.bf16.mxu0 %v3525
    %3712 = vmatpush1.bf16.msra.mxu0 %v3524
    %3713 = vmatprep.subr.bf16.mxu0 %v3533
    %3714 = vmatpush1.bf16.msra.mxu0 %v3532
    %3715 = vmatprep.subr.bf16.mxu0 0
    %3716 = vmatpush1.bf16.msra.mxu0 0
    %3717 = vmatprep.subr.bf16.mxu0 0
    %3718 = vmatpush1.bf16.msra.mxu0 0
    %3719 = vmatprep.subr.bf16.mxu0 0
    %3720 = vmatpush1.bf16.msra.mxu0 0
    %3721 = vmatprep.subr.bf16.mxu0 0
    %3722 = vmatpush1.bf16.msra.mxu0 0
    %3723 = vmatprep.subr.bf16.mxu0 0
    %3724 = vmatpush1.bf16.msra.mxu0 0
    %3725 = vmatprep.subr.bf16.mxu0 0
    %3726 = vmatpush1.bf16.msra.mxu0 0
    %3727 = vmatprep.subr.bf16.mxu0 0
    %3728 = vmatpush1.bf16.msra.mxu0 0
    %3729 = vmatprep.subr.bf16.mxu0 0
    %3730 = vmatpush1.bf16.msra.mxu0 0
    %3731 = vmatprep.mubr.bf16.mxu0 0
    %3732 = vmatmul.mubr.bf16.gmra.mrb[0].mxu0 %v3534
    %v3733 = vpop.f32.mrb[0].mxu0
    %v3734 = vadd.f32 0.0, %v3733
    %v3735 = vpop.f32.mrb[0].mxu0
    %v3736 = vadd.f32 0.0, %v3735
    %v3737 = vpop.f32.mrb[0].mxu0
    %v3738 = vadd.f32 0.0, %v3737
    %v3739 = vpop.f32.mrb[0].mxu0
    %v3740 = vadd.f32 0.0, %v3739
    %3741 = vmatprep.mubr.bf16.mxu0 0
    %3742 = vmatmul.mubr.bf16.gmra.mrb[0].mxu0 %v3539
    %v3743 = vpop.f32.mrb[0].mxu0
    %v3744 = vadd.f32 0.0, %v3743
    %v3745 = vpop.f32.mrb[0].mxu0
    %v3746 = vadd.f32 0.0, %v3745
    %v3747 = vpop.f32.mrb[0].mxu0
    %v3748 = vadd.f32 0.0, %v3747
    %v3749 = vpop.f32.mrb[0].mxu0
    %v3750 = vadd.f32 0.0, %v3749
    %3751 = vdwg.mxu0
    %v3752 = vadd.f32 %v3575, %v3585
    %v3753 = vadd.f32 %v3577, %v3587
    %v3754 = vadd.f32 %v3628, %v3638
    %v3755 = vadd.f32 %v3630, %v3640
    %v3756 = vadd.f32 %v3681, %v3691
    %v3757 = vadd.f32 %v3683, %v3693
    %v3758 = vadd.f32 %v3734, %v3744
    %v3759 = vadd.f32 %v3736, %v3746
    %v3760 = vadd.f32 %v3579, %v3589
    %v3761 = vadd.f32 %v3581, %v3591
    %v3762 = vadd.f32 %v3632, %v3642
    %v3763 = vadd.f32 %v3634, %v3644
    %v3764 = vadd.f32 %v3685, %v3695
    %v3765 = vadd.f32 %v3687, %v3697
    %v3766 = vadd.f32 %v3738, %v3748
    %v3767 = vadd.f32 %v3740, %v3750
    %v3768 = vmax.f32 %v3752, %v3753
    %v3769 = vmax.f32 %v3760, %v3761
    %v3770 = vmax.f32 %v3768, %v3754
    %v3771 = vmax.f32 %v3769, %v3762
    %v3772 = vmax.f32 %v3770, %v3755
    %v3773 = vmax.f32 %v3771, %v3763
    %v3774 = vmax.f32 %v3772, %v3756
    %v3775 = vmax.f32 %v3773, %v3764
    %v3776 = vmax.f32 %v3774, %v3757
    %v3777 = vmax.f32 %v3775, %v3765
    %v3778 = vmax.f32 %v3776, %v3758
    %v3779 = vmax.f32 %v3777, %v3766
    %v3780 = vmax.f32 %v3778, %v3759
    %v3781 = vmax.f32 %v3779, %v3767
    %3782 = vmatprep.subr.mxu0 0.0
    %v3783 = vand.u32 %v3780, 4294901760
    %3784 = vmatpush1.msra.mxu0 %v3783
    %3785 = vmatprep.subr.mxu0 0.0
    %v3786 = vand.u32 %v3781, 4294901760
    %3787 = vmatpush1.msra.mxu0 %v3786
    %3788 = vmatprep.subr.mxu0 0.0
    %3789 = vmatpush1.msra.mxu0 0.0
    %3790 = vmatprep.subr.mxu0 0.0
    %3791 = vmatpush1.msra.mxu0 0.0
    %3792 = vmatprep.subr.mxu0 0.0
    %3793 = vmatpush1.msra.mxu0 0.0
    %3794 = vmatprep.subr.mxu0 0.0
    %3795 = vmatpush1.msra.mxu0 0.0
    %3796 = vmatprep.subr.mxu0 0.0
    %3797 = vmatpush1.msra.mxu0 0.0
    %3798 = vmatprep.subr.mxu0 0.0
    %3799 = vmatpush1.msra.mxu0 0.0
    %3800 = vmatprep.subr.mxu0 0.0
    %3801 = vmatpush1.msra.mxu0 0.0
    %3802 = vmatprep.subr.mxu0 0.0
    %3803 = vmatpush1.msra.mxu0 0.0
    %3804 = vmatprep.subr.mxu0 0.0
    %3805 = vmatpush1.msra.mxu0 0.0
    %3806 = vmatprep.subr.mxu0 0.0
    %3807 = vmatpush1.msra.mxu0 0.0
    %3808 = vmatprep.subr.mxu0 0.0
    %3809 = vmatpush1.msra.mxu0 0.0
    %3810 = vmatprep.subr.mxu0 0.0
    %3811 = vmatpush1.msra.mxu0 0.0
    %3812 = vmatprep.subr.mxu0 0.0
    %3813 = vmatpush1.msra.mxu0 0.0
    %3814 = vmatprep.subr.mxu0 0.0
    %3815 = vmatpush1.msra.mxu0 0.0
    %3816 = vmatprep.subr.mxu0 0.0
    %3817 = vmatpush1.msra.mxu0 0.0
    %3818 = vmatprep.subr.mxu0 0.0
    %3819 = vmatpush1.msra.mxu0 0.0
    %3820 = vmatprep.subr.mxu0 0.0
    %3821 = vmatpush1.msra.mxu0 0.0
    %3822 = vmatprep.subr.mxu0 0.0
    %3823 = vmatpush1.msra.mxu0 0.0
    %3824 = vmatprep.subr.mxu0 0.0
    %3825 = vmatpush1.msra.mxu0 0.0
    %3826 = vmatprep.subr.mxu0 0.0
    %3827 = vmatpush1.msra.mxu0 0.0
    %3828 = vmatprep.subr.mxu0 0.0
    %3829 = vmatpush1.msra.mxu0 0.0
    %3830 = vmatprep.subr.mxu0 0.0
    %3831 = vmatpush1.msra.mxu0 0.0
    %3832 = vmatprep.subr.mxu0 0.0
    %3833 = vmatpush1.msra.mxu0 0.0
    %3834 = vmatprep.subr.mxu0 0.0
    %3835 = vmatpush1.msra.mxu0 0.0
    %3836 = vmatprep.subr.mxu0 0.0
    %3837 = vmatpush1.msra.mxu0 0.0
    %3838 = vmatprep.subr.mxu0 0.0
    %3839 = vmatpush1.msra.mxu0 0.0
    %3840 = vmatprep.subr.mxu0 0.0
    %3841 = vmatpush1.msra.mxu0 0.0
    %3842 = vmatprep.subr.mxu0 0.0
    %3843 = vmatpush1.msra.mxu0 0.0
    %3844 = vmatprep.subr.mxu0 0.0
    %3845 = vmatpush1.msra.mxu0 0.0
    %3846 = vmatprep.subr.mxu0 0.0
    %3847 = vmatpush1.msra.mxu0 0.0
    %3848 = vmatprep.mubr.f32.mxu0 0.0
    %v3849 = vand.u32 %v1314, 4294901760
    %v3850 = vsub.f32 %v1314, %v3849
    %v3851 = vand.u32 %v3850, 4294901760
    %v3852 = vsub.f32 %v3850, %v3851
    %v3853 = vand.u32 %v3852, 4294901760
    %3854 = vmatmul.mubr.f32.gmra.mrb[0].mxu0 %v3853
    %v3855 = vpop.f32.mrb[0].mxu0
    %v3856 = vadd.f32 0.0, %v3855
    %v3857 = vpop.f32.mrb[0].mxu0
    %3858 = vmatprep.mubr.f32.mxu0 0.0
    %v3859 = vand.u32 %v1317, 4294901760
    %v3860 = vsub.f32 %v1317, %v3859
    %v3861 = vand.u32 %v3860, 4294901760
    %v3862 = vsub.f32 %v3860, %v3861
    %v3863 = vand.u32 %v3862, 4294901760
    %3864 = vmatmul.mubr.f32.gmra.mrb[0].mxu0 %v3863
    %v3865 = vpop.f32.mrb[0].mxu0
    %v3866 = vadd.f32 0.0, %v3865
    %v3867 = vpop.f32.mrb[0].mxu0
    %3868 = vmatprep.mubr.f32.mxu0 0.0
    %v3869 = vand.u32 %v1320, 4294901760
    %v3870 = vsub.f32 %v1320, %v3869
    %v3871 = vand.u32 %v3870, 4294901760
    %v3872 = vsub.f32 %v3870, %v3871
    %v3873 = vand.u32 %v3872, 4294901760
    %3874 = vmatmul.mubr.f32.gmra.mrb[0].mxu0 %v3873
    %v3875 = vpop.f32.mrb[0].mxu0
    %v3876 = vadd.f32 0.0, %v3875
    %v3877 = vpop.f32.mrb[0].mxu0
    %3878 = vmatprep.mubr.f32.mxu0 0.0
    %v3879 = vand.u32 %v1323, 4294901760
    %v3880 = vsub.f32 %v1323, %v3879
    %v3881 = vand.u32 %v3880, 4294901760
    %v3882 = vsub.f32 %v3880, %v3881
    %v3883 = vand.u32 %v3882, 4294901760
    %3884 = vmatmul.mubr.f32.gmra.mrb[0].mxu0 %v3883
    %v3885 = vpop.f32.mrb[0].mxu0
    %v3886 = vadd.f32 0.0, %v3885
    %v3887 = vpop.f32.mrb[0].mxu0
    %3888 = vdwg.mxu0
    %3889 = vmatprep.subr.mxu0 0.0
    %v3890 = vand.u32 %v3780, 4294901760
    %v3891 = vsub.f32 %v3780, %v3890
    %v3892 = vand.u32 %v3891, 4294901760
    %v3893 = vsub.f32 %v3891, %v3892
    %v3894 = vand.u32 %v3893, 4294901760
    %3895 = vmatpush1.msra.mxu0 %v3894
    %3896 = vmatprep.subr.mxu0 0.0
    %v3897 = vand.u32 %v3781, 4294901760
    %v3898 = vsub.f32 %v3781, %v3897
    %v3899 = vand.u32 %v3898, 4294901760
    %v3900 = vsub.f32 %v3898, %v3899
    %v3901 = vand.u32 %v3900, 4294901760
    %3902 = vmatpush1.msra.mxu0 %v3901
    %3903 = vmatprep.subr.mxu0 0.0
    %3904 = vmatpush1.msra.mxu0 0.0
    %3905 = vmatprep.subr.mxu0 0.0
    %3906 = vmatpush1.msra.mxu0 0.0
    %3907 = vmatprep.subr.mxu0 0.0
    %3908 = vmatpush1.msra.mxu0 0.0
    %3909 = vmatprep.subr.mxu0 0.0
    %3910 = vmatpush1.msra.mxu0 0.0
    %3911 = vmatprep.subr.mxu0 0.0
    %3912 = vmatpush1.msra.mxu0 0.0
    %3913 = vmatprep.subr.mxu0 0.0
    %3914 = vmatpush1.msra.mxu0 0.0
    %3915 = vmatprep.subr.mxu0 0.0
    %3916 = vmatpush1.msra.mxu0 0.0
    %3917 = vmatprep.subr.mxu0 0.0
    %3918 = vmatpush1.msra.mxu0 0.0
    %3919 = vmatprep.subr.mxu0 0.0
    %3920 = vmatpush1.msra.mxu0 0.0
    %3921 = vmatprep.subr.mxu0 0.0
    %3922 = vmatpush1.msra.mxu0 0.0
    %3923 = vmatprep.subr.mxu0 0.0
    %3924 = vmatpush1.msra.mxu0 0.0
    %3925 = vmatprep.subr.mxu0 0.0
    %3926 = vmatpush1.msra.mxu0 0.0
    %3927 = vmatprep.subr.mxu0 0.0
    %3928 = vmatpush1.msra.mxu0 0.0
    %3929 = vmatprep.subr.mxu0 0.0
    %3930 = vmatpush1.msra.mxu0 0.0
    %3931 = vmatprep.subr.mxu0 0.0
    %3932 = vmatpush1.msra.mxu0 0.0
    %3933 = vmatprep.subr.mxu0 0.0
    %3934 = vmatpush1.msra.mxu0 0.0
    %3935 = vmatprep.subr.mxu0 0.0
    %3936 = vmatpush1.msra.mxu0 0.0
    %3937 = vmatprep.subr.mxu0 0.0
    %3938 = vmatpush1.msra.mxu0 0.0
    %3939 = vmatprep.subr.mxu0 0.0
    %3940 = vmatpush1.msra.mxu0 0.0
    %3941 = vmatprep.subr.mxu0 0.0
    %3942 = vmatpush1.msra.mxu0 0.0
    %3943 = vmatprep.subr.mxu0 0.0
    %3944 = vmatpush1.msra.mxu0 0.0
    %3945 = vmatprep.subr.mxu0 0.0
    %3946 = vmatpush1.msra.mxu0 0.0
    %3947 = vmatprep.subr.mxu0 0.0
    %3948 = vmatpush1.msra.mxu0 0.0
    %3949 = vmatprep.subr.mxu0 0.0
    %3950 = vmatpush1.msra.mxu0 0.0
    %3951 = vmatprep.subr.mxu0 0.0
    %3952 = vmatpush1.msra.mxu0 0.0
    %3953 = vmatprep.subr.mxu0 0.0
    %3954 = vmatpush1.msra.mxu0 0.0
    %3955 = vmatprep.subr.mxu0 0.0
    %3956 = vmatpush1.msra.mxu0 0.0
    %3957 = vmatprep.subr.mxu0 0.0
    %3958 = vmatpush1.msra.mxu0 0.0
    %3959 = vmatprep.subr.mxu0 0.0
    %3960 = vmatpush1.msra.mxu0 0.0
    %3961 = vmatprep.subr.mxu0 0.0
    %3962 = vmatpush1.msra.mxu0 0.0
    %3963 = vmatprep.mubr.f32.mxu0 0.0
    %v3964 = vand.u32 %v1314, 4294901760
    %3965 = vmatmul.mubr.f32.gmra.mrb[0].mxu0 %v3964
    %v3966 = vpop.f32.mrb[0].mxu0
    %v3967 = vadd.f32 %v3856, %v3966
    %v3968 = vpop.f32.mrb[0].mxu0
    %3969 = vmatprep.mubr.f32.mxu0 0.0
    %v3970 = vand.u32 %v1317, 4294901760
    %3971 = vmatmul.mubr.f32.gmra.mrb[0].mxu0 %v3970
    %v3972 = vpop.f32.mrb[0].mxu0
    %v3973 = vadd.f32 %v3866, %v3972
    %v3974 = vpop.f32.mrb[0].mxu0
    %3975 = vmatprep.mubr.f32.mxu0 0.0
    %v3976 = vand.u32 %v1320, 4294901760
    %3977 = vmatmul.mubr.f32.gmra.mrb[0].mxu0 %v3976
    %v3978 = vpop.f32.mrb[0].mxu0
    %v3979 = vadd.f32 %v3876, %v3978
    %v3980 = vpop.f32.mrb[0].mxu0
    %3981 = vmatprep.mubr.f32.mxu0 0.0
    %v3982 = vand.u32 %v1323, 4294901760
    %3983 = vmatmul.mubr.f32.gmra.mrb[0].mxu0 %v3982
    %v3984 = vpop.f32.mrb[0].mxu0
    %v3985 = vadd.f32 %v3886, %v3984
    %v3986 = vpop.f32.mrb[0].mxu0
    %3987 = vdwg.mxu0
    %3988 = vmatprep.subr.mxu0 0.0
    %v3989 = vand.u32 %v3780, 4294901760
    %v3990 = vsub.f32 %v3780, %v3989
    %3991 = vmatpush1.msra.mxu0 %v3990
    %3992 = vmatprep.subr.mxu0 0.0
    %v3993 = vand.u32 %v3781, 4294901760
    %v3994 = vsub.f32 %v3781, %v3993
    %3995 = vmatpush1.msra.mxu0 %v3994
    %3996 = vmatprep.subr.mxu0 0.0
    %3997 = vmatpush1.msra.mxu0 0.0
    %3998 = vmatprep.subr.mxu0 0.0
    %3999 = vmatpush1.msra.mxu0 0.0
    %4000 = vmatprep.subr.mxu0 0.0
    %4001 = vmatpush1.msra.mxu0 0.0
    %4002 = vmatprep.subr.mxu0 0.0
    %4003 = vmatpush1.msra.mxu0 0.0
    %4004 = vmatprep.subr.mxu0 0.0
    %4005 = vmatpush1.msra.mxu0 0.0
    %4006 = vmatprep.subr.mxu0 0.0
    %4007 = vmatpush1.msra.mxu0 0.0
    %4008 = vmatprep.subr.mxu0 0.0
    %4009 = vmatpush1.msra.mxu0 0.0
    %4010 = vmatprep.subr.mxu0 0.0
    %4011 = vmatpush1.msra.mxu0 0.0
    %4012 = vmatprep.subr.mxu0 0.0
    %4013 = vmatpush1.msra.mxu0 0.0
    %4014 = vmatprep.subr.mxu0 0.0
    %4015 = vmatpush1.msra.mxu0 0.0
    %4016 = vmatprep.subr.mxu0 0.0
    %4017 = vmatpush1.msra.mxu0 0.0
    %4018 = vmatprep.subr.mxu0 0.0
    %4019 = vmatpush1.msra.mxu0 0.0
    %4020 = vmatprep.subr.mxu0 0.0
    %4021 = vmatpush1.msra.mxu0 0.0
    %4022 = vmatprep.subr.mxu0 0.0
    %4023 = vmatpush1.msra.mxu0 0.0
    %4024 = vmatprep.subr.mxu0 0.0
    %4025 = vmatpush1.msra.mxu0 0.0
    %4026 = vmatprep.subr.mxu0 0.0
    %4027 = vmatpush1.msra.mxu0 0.0
    %4028 = vmatprep.subr.mxu0 0.0
    %4029 = vmatpush1.msra.mxu0 0.0
    %4030 = vmatprep.subr.mxu0 0.0
    %4031 = vmatpush1.msra.mxu0 0.0
    %4032 = vmatprep.subr.mxu0 0.0
    %4033 = vmatpush1.msra.mxu0 0.0
    %4034 = vmatprep.subr.mxu0 0.0
    %4035 = vmatpush1.msra.mxu0 0.0
    %4036 = vmatprep.subr.mxu0 0.0
    %4037 = vmatpush1.msra.mxu0 0.0
    %4038 = vmatprep.subr.mxu0 0.0
    %4039 = vmatpush1.msra.mxu0 0.0
    %4040 = vmatprep.subr.mxu0 0.0
    %4041 = vmatpush1.msra.mxu0 0.0
    %4042 = vmatprep.subr.mxu0 0.0
    %4043 = vmatpush1.msra.mxu0 0.0
    %4044 = vmatprep.subr.mxu0 0.0
    %4045 = vmatpush1.msra.mxu0 0.0
    %4046 = vmatprep.subr.mxu0 0.0
    %4047 = vmatpush1.msra.mxu0 0.0
    %4048 = vmatprep.subr.mxu0 0.0
    %4049 = vmatpush1.msra.mxu0 0.0
    %4050 = vmatprep.subr.mxu0 0.0
    %4051 = vmatpush1.msra.mxu0 0.0
    %4052 = vmatprep.subr.mxu0 0.0
    %4053 = vmatpush1.msra.mxu0 0.0
    %4054 = vmatprep.subr.mxu0 0.0
    %4055 = vmatpush1.msra.mxu0 0.0
    %4056 = vmatprep.mubr.f32.mxu0 0.0
    %v4057 = vand.u32 %v1314, 4294901760
    %v4058 = vsub.f32 %v1314, %v4057
    %4059 = vmatmul.mubr.f32.gmra.mrb[0].mxu0 %v4058
    %v4060 = vpop.f32.mrb[0].mxu0
    %v4061 = vadd.f32 %v3967, %v4060
    %v4062 = vpop.f32.mrb[0].mxu0
    %4063 = vmatprep.mubr.f32.mxu0 0.0
    %v4064 = vand.u32 %v1317, 4294901760
    %v4065 = vsub.f32 %v1317, %v4064
    %4066 = vmatmul.mubr.f32.gmra.mrb[0].mxu0 %v4065
    %v4067 = vpop.f32.mrb[0].mxu0
    %v4068 = vadd.f32 %v3973, %v4067
    %v4069 = vpop.f32.mrb[0].mxu0
    %4070 = vmatprep.mubr.f32.mxu0 0.0
    %v4071 = vand.u32 %v1320, 4294901760
    %v4072 = vsub.f32 %v1320, %v4071
    %4073 = vmatmul.mubr.f32.gmra.mrb[0].mxu0 %v4072
    %v4074 = vpop.f32.mrb[0].mxu0
    %v4075 = vadd.f32 %v3979, %v4074
    %v4076 = vpop.f32.mrb[0].mxu0
    %4077 = vmatprep.mubr.f32.mxu0 0.0
    %v4078 = vand.u32 %v1323, 4294901760
    %v4079 = vsub.f32 %v1323, %v4078
    %4080 = vmatmul.mubr.f32.gmra.mrb[0].mxu0 %v4079
    %v4081 = vpop.f32.mrb[0].mxu0
    %v4082 = vadd.f32 %v3985, %v4081
    %v4083 = vpop.f32.mrb[0].mxu0
    %4084 = vdwg.mxu0
    %4085 = vmatprep.subr.mxu0 0.0
    %v4086 = vand.u32 %v3780, 4294901760
    %4087 = vmatpush1.msra.mxu0 %v4086
    %4088 = vmatprep.subr.mxu0 0.0
    %v4089 = vand.u32 %v3781, 4294901760
    %4090 = vmatpush1.msra.mxu0 %v4089
    %4091 = vmatprep.subr.mxu0 0.0
    %4092 = vmatpush1.msra.mxu0 0.0
    %4093 = vmatprep.subr.mxu0 0.0
    %4094 = vmatpush1.msra.mxu0 0.0
    %4095 = vmatprep.subr.mxu0 0.0
    %4096 = vmatpush1.msra.mxu0 0.0
    %4097 = vmatprep.subr.mxu0 0.0
    %4098 = vmatpush1.msra.mxu0 0.0
    %4099 = vmatprep.subr.mxu0 0.0
    %4100 = vmatpush1.msra.mxu0 0.0
    %4101 = vmatprep.subr.mxu0 0.0
    %4102 = vmatpush1.msra.mxu0 0.0
    %4103 = vmatprep.subr.mxu0 0.0
    %4104 = vmatpush1.msra.mxu0 0.0
    %4105 = vmatprep.subr.mxu0 0.0
    %4106 = vmatpush1.msra.mxu0 0.0
    %4107 = vmatprep.subr.mxu0 0.0
    %4108 = vmatpush1.msra.mxu0 0.0
    %4109 = vmatprep.subr.mxu0 0.0
    %4110 = vmatpush1.msra.mxu0 0.0
    %4111 = vmatprep.subr.mxu0 0.0
    %4112 = vmatpush1.msra.mxu0 0.0
    %4113 = vmatprep.subr.mxu0 0.0
    %4114 = vmatpush1.msra.mxu0 0.0
    %4115 = vmatprep.subr.mxu0 0.0
    %4116 = vmatpush1.msra.mxu0 0.0
    %4117 = vmatprep.subr.mxu0 0.0
    %4118 = vmatpush1.msra.mxu0 0.0
    %4119 = vmatprep.subr.mxu0 0.0
    %4120 = vmatpush1.msra.mxu0 0.0
    %4121 = vmatprep.subr.mxu0 0.0
    %4122 = vmatpush1.msra.mxu0 0.0
    %4123 = vmatprep.subr.mxu0 0.0
    %4124 = vmatpush1.msra.mxu0 0.0
    %4125 = vmatprep.subr.mxu0 0.0
    %4126 = vmatpush1.msra.mxu0 0.0
    %4127 = vmatprep.subr.mxu0 0.0
    %4128 = vmatpush1.msra.mxu0 0.0
    %4129 = vmatprep.subr.mxu0 0.0
    %4130 = vmatpush1.msra.mxu0 0.0
    %4131 = vmatprep.subr.mxu0 0.0
    %4132 = vmatpush1.msra.mxu0 0.0
    %4133 = vmatprep.subr.mxu0 0.0
    %4134 = vmatpush1.msra.mxu0 0.0
    %4135 = vmatprep.subr.mxu0 0.0
    %4136 = vmatpush1.msra.mxu0 0.0
    %4137 = vmatprep.subr.mxu0 0.0
    %4138 = vmatpush1.msra.mxu0 0.0
    %4139 = vmatprep.subr.mxu0 0.0
    %4140 = vmatpush1.msra.mxu0 0.0
    %4141 = vmatprep.subr.mxu0 0.0
    %4142 = vmatpush1.msra.mxu0 0.0
    %4143 = vmatprep.subr.mxu0 0.0
    %4144 = vmatpush1.msra.mxu0 0.0
    %4145 = vmatprep.subr.mxu0 0.0
    %4146 = vmatpush1.msra.mxu0 0.0
    %4147 = vmatprep.subr.mxu0 0.0
    %4148 = vmatpush1.msra.mxu0 0.0
    %4149 = vmatprep.subr.mxu0 0.0
    %4150 = vmatpush1.msra.mxu0 0.0
    %4151 = vmatprep.mubr.f32.mxu0 0.0
    %v4152 = vand.u32 %v1314, 4294901760
    %v4153 = vsub.f32 %v1314, %v4152
    %v4154 = vand.u32 %v4153, 4294901760
    %4155 = vmatmul.mubr.f32.gmra.mrb[0].mxu0 %v4154
    %v4156 = vpop.f32.mrb[0].mxu0
    %v4157 = vadd.f32 %v4061, %v4156
    %v4158 = vpop.f32.mrb[0].mxu0
    %4159 = vmatprep.mubr.f32.mxu0 0.0
    %v4160 = vand.u32 %v1317, 4294901760
    %v4161 = vsub.f32 %v1317, %v4160
    %v4162 = vand.u32 %v4161, 4294901760
    %4163 = vmatmul.mubr.f32.gmra.mrb[0].mxu0 %v4162
    %v4164 = vpop.f32.mrb[0].mxu0
    %v4165 = vadd.f32 %v4068, %v4164
    %v4166 = vpop.f32.mrb[0].mxu0
    %4167 = vmatprep.mubr.f32.mxu0 0.0
    %v4168 = vand.u32 %v1320, 4294901760
    %v4169 = vsub.f32 %v1320, %v4168
    %v4170 = vand.u32 %v4169, 4294901760
    %4171 = vmatmul.mubr.f32.gmra.mrb[0].mxu0 %v4170
    %v4172 = vpop.f32.mrb[0].mxu0
    %v4173 = vadd.f32 %v4075, %v4172
    %v4174 = vpop.f32.mrb[0].mxu0
    %4175 = vmatprep.mubr.f32.mxu0 0.0
    %v4176 = vand.u32 %v1323, 4294901760
    %v4177 = vsub.f32 %v1323, %v4176
    %v4178 = vand.u32 %v4177, 4294901760
    %4179 = vmatmul.mubr.f32.gmra.mrb[0].mxu0 %v4178
    %v4180 = vpop.f32.mrb[0].mxu0
    %v4181 = vadd.f32 %v4082, %v4180
    %v4182 = vpop.f32.mrb[0].mxu0
    %4183 = vdwg.mxu0
    %4184 = vmatprep.subr.mxu0 0.0
    %v4185 = vand.u32 %v3780, 4294901760
    %v4186 = vsub.f32 %v3780, %v4185
    %v4187 = vand.u32 %v4186, 4294901760
    %4188 = vmatpush1.msra.mxu0 %v4187
    %4189 = vmatprep.subr.mxu0 0.0
    %v4190 = vand.u32 %v3781, 4294901760
    %v4191 = vsub.f32 %v3781, %v4190
    %v4192 = vand.u32 %v4191, 4294901760
    %4193 = vmatpush1.msra.mxu0 %v4192
    %4194 = vmatprep.subr.mxu0 0.0
    %4195 = vmatpush1.msra.mxu0 0.0
    %4196 = vmatprep.subr.mxu0 0.0
    %4197 = vmatpush1.msra.mxu0 0.0
    %4198 = vmatprep.subr.mxu0 0.0
    %4199 = vmatpush1.msra.mxu0 0.0
    %4200 = vmatprep.subr.mxu0 0.0
    %4201 = vmatpush1.msra.mxu0 0.0
    %4202 = vmatprep.subr.mxu0 0.0
    %4203 = vmatpush1.msra.mxu0 0.0
    %4204 = vmatprep.subr.mxu0 0.0
    %4205 = vmatpush1.msra.mxu0 0.0
    %4206 = vmatprep.subr.mxu0 0.0
    %4207 = vmatpush1.msra.mxu0 0.0
    %4208 = vmatprep.subr.mxu0 0.0
    %4209 = vmatpush1.msra.mxu0 0.0
    %4210 = vmatprep.subr.mxu0 0.0
    %4211 = vmatpush1.msra.mxu0 0.0
    %4212 = vmatprep.subr.mxu0 0.0
    %4213 = vmatpush1.msra.mxu0 0.0
    %4214 = vmatprep.subr.mxu0 0.0
    %4215 = vmatpush1.msra.mxu0 0.0
    %4216 = vmatprep.subr.mxu0 0.0
    %4217 = vmatpush1.msra.mxu0 0.0
    %4218 = vmatprep.subr.mxu0 0.0
    %4219 = vmatpush1.msra.mxu0 0.0
    %4220 = vmatprep.subr.mxu0 0.0
    %4221 = vmatpush1.msra.mxu0 0.0
    %4222 = vmatprep.subr.mxu0 0.0
    %4223 = vmatpush1.msra.mxu0 0.0
    %4224 = vmatprep.subr.mxu0 0.0
    %4225 = vmatpush1.msra.mxu0 0.0
    %4226 = vmatprep.subr.mxu0 0.0
    %4227 = vmatpush1.msra.mxu0 0.0
    %4228 = vmatprep.subr.mxu0 0.0
    %4229 = vmatpush1.msra.mxu0 0.0
    %4230 = vmatprep.subr.mxu0 0.0
    %4231 = vmatpush1.msra.mxu0 0.0
    %4232 = vmatprep.subr.mxu0 0.0
    %4233 = vmatpush1.msra.mxu0 0.0
    %4234 = vmatprep.subr.mxu0 0.0
    %4235 = vmatpush1.msra.mxu0 0.0
    %4236 = vmatprep.subr.mxu0 0.0
    %4237 = vmatpush1.msra.mxu0 0.0
    %4238 = vmatprep.subr.mxu0 0.0
    %4239 = vmatpush1.msra.mxu0 0.0
    %4240 = vmatprep.subr.mxu0 0.0
    %4241 = vmatpush1.msra.mxu0 0.0
    %4242 = vmatprep.subr.mxu0 0.0
    %4243 = vmatpush1.msra.mxu0 0.0
    %4244 = vmatprep.subr.mxu0 0.0
    %4245 = vmatpush1.msra.mxu0 0.0
    %4246 = vmatprep.subr.mxu0 0.0
    %4247 = vmatpush1.msra.mxu0 0.0
    %4248 = vmatprep.subr.mxu0 0.0
    %4249 = vmatpush1.msra.mxu0 0.0
    %4250 = vmatprep.subr.mxu0 0.0
    %4251 = vmatpush1.msra.mxu0 0.0
    %4252 = vmatprep.subr.mxu0 0.0
    %4253 = vmatpush1.msra.mxu0 0.0
    %4254 = vmatprep.mubr.f32.mxu0 0.0
    %v4255 = vand.u32 %v1314, 4294901760
    %4256 = vmatmul.mubr.f32.gmra.mrb[0].mxu0 %v4255
    %v4257 = vpop.f32.mrb[0].mxu0
    %v4258 = vadd.f32 %v4157, %v4257
    %v4259 = vpop.f32.mrb[0].mxu0
    %4260 = vmatprep.mubr.f32.mxu0 0.0
    %v4261 = vand.u32 %v1317, 4294901760
    %4262 = vmatmul.mubr.f32.gmra.mrb[0].mxu0 %v4261
    %v4263 = vpop.f32.mrb[0].mxu0
    %v4264 = vadd.f32 %v4165, %v4263
    %v4265 = vpop.f32.mrb[0].mxu0
    %4266 = vmatprep.mubr.f32.mxu0 0.0
    %v4267 = vand.u32 %v1320, 4294901760
    %4268 = vmatmul.mubr.f32.gmra.mrb[0].mxu0 %v4267
    %v4269 = vpop.f32.mrb[0].mxu0
    %v4270 = vadd.f32 %v4173, %v4269
    %v4271 = vpop.f32.mrb[0].mxu0
    %4272 = vmatprep.mubr.f32.mxu0 0.0
    %v4273 = vand.u32 %v1323, 4294901760
    %4274 = vmatmul.mubr.f32.gmra.mrb[0].mxu0 %v4273
    %v4275 = vpop.f32.mrb[0].mxu0
    %v4276 = vadd.f32 %v4181, %v4275
    %v4277 = vpop.f32.mrb[0].mxu0
    %4278 = vdwg.mxu0
    %4279 = vmatprep.subr.mxu0 0.0
    %v4280 = vand.u32 %v3780, 4294901760
    %4281 = vmatpush1.msra.mxu0 %v4280
    %4282 = vmatprep.subr.mxu0 0.0
    %v4283 = vand.u32 %v3781, 4294901760
    %4284 = vmatpush1.msra.mxu0 %v4283
    %4285 = vmatprep.subr.mxu0 0.0
    %4286 = vmatpush1.msra.mxu0 0.0
    %4287 = vmatprep.subr.mxu0 0.0
    %4288 = vmatpush1.msra.mxu0 0.0
    %4289 = vmatprep.subr.mxu0 0.0
    %4290 = vmatpush1.msra.mxu0 0.0
    %4291 = vmatprep.subr.mxu0 0.0
    %4292 = vmatpush1.msra.mxu0 0.0
    %4293 = vmatprep.subr.mxu0 0.0
    %4294 = vmatpush1.msra.mxu0 0.0
    %4295 = vmatprep.subr.mxu0 0.0
    %4296 = vmatpush1.msra.mxu0 0.0
    %4297 = vmatprep.subr.mxu0 0.0
    %4298 = vmatpush1.msra.mxu0 0.0
    %4299 = vmatprep.subr.mxu0 0.0
    %4300 = vmatpush1.msra.mxu0 0.0
    %4301 = vmatprep.subr.mxu0 0.0
    %4302 = vmatpush1.msra.mxu0 0.0
    %4303 = vmatprep.subr.mxu0 0.0
    %4304 = vmatpush1.msra.mxu0 0.0
    %4305 = vmatprep.subr.mxu0 0.0
    %4306 = vmatpush1.msra.mxu0 0.0
    %4307 = vmatprep.subr.mxu0 0.0
    %4308 = vmatpush1.msra.mxu0 0.0
    %4309 = vmatprep.subr.mxu0 0.0
    %4310 = vmatpush1.msra.mxu0 0.0
    %4311 = vmatprep.subr.mxu0 0.0
    %4312 = vmatpush1.msra.mxu0 0.0
    %4313 = vmatprep.subr.mxu0 0.0
    %4314 = vmatpush1.msra.mxu0 0.0
    %4315 = vmatprep.subr.mxu0 0.0
    %4316 = vmatpush1.msra.mxu0 0.0
    %4317 = vmatprep.subr.mxu0 0.0
    %4318 = vmatpush1.msra.mxu0 0.0
    %4319 = vmatprep.subr.mxu0 0.0
    %4320 = vmatpush1.msra.mxu0 0.0
    %4321 = vmatprep.subr.mxu0 0.0
    %4322 = vmatpush1.msra.mxu0 0.0
    %4323 = vmatprep.subr.mxu0 0.0
    %4324 = vmatpush1.msra.mxu0 0.0
    %4325 = vmatprep.subr.mxu0 0.0
    %4326 = vmatpush1.msra.mxu0 0.0
    %4327 = vmatprep.subr.mxu0 0.0
    %4328 = vmatpush1.msra.mxu0 0.0
    %4329 = vmatprep.subr.mxu0 0.0
    %4330 = vmatpush1.msra.mxu0 0.0
    %4331 = vmatprep.subr.mxu0 0.0
    %4332 = vmatpush1.msra.mxu0 0.0
    %4333 = vmatprep.subr.mxu0 0.0
    %4334 = vmatpush1.msra.mxu0 0.0
    %4335 = vmatprep.subr.mxu0 0.0
    %4336 = vmatpush1.msra.mxu0 0.0
    %4337 = vmatprep.subr.mxu0 0.0
    %4338 = vmatpush1.msra.mxu0 0.0
    %4339 = vmatprep.subr.mxu0 0.0
    %4340 = vmatpush1.msra.mxu0 0.0
    %4341 = vmatprep.subr.mxu0 0.0
    %4342 = vmatpush1.msra.mxu0 0.0
    %4343 = vmatprep.subr.mxu0 0.0
    %4344 = vmatpush1.msra.mxu0 0.0
    %4345 = vmatprep.mubr.f32.mxu0 0.0
    %v4346 = vand.u32 %v1314, 4294901760
    %4347 = vmatmul.mubr.f32.gmra.mrb[0].mxu0 %v4346
    %v4348 = vpop.f32.mrb[0].mxu0
    %v4349 = vadd.f32 %v4258, %v4348
    %v4350 = vpop.f32.mrb[0].mxu0
    %4351 = vmatprep.mubr.f32.mxu0 0.0
    %v4352 = vand.u32 %v1317, 4294901760
    %4353 = vmatmul.mubr.f32.gmra.mrb[0].mxu0 %v4352
    %v4354 = vpop.f32.mrb[0].mxu0
    %v4355 = vadd.f32 %v4264, %v4354
    %v4356 = vpop.f32.mrb[0].mxu0
    %4357 = vmatprep.mubr.f32.mxu0 0.0
    %v4358 = vand.u32 %v1320, 4294901760
    %4359 = vmatmul.mubr.f32.gmra.mrb[0].mxu0 %v4358
    %v4360 = vpop.f32.mrb[0].mxu0
    %v4361 = vadd.f32 %v4270, %v4360
    %v4362 = vpop.f32.mrb[0].mxu0
    %4363 = vmatprep.mubr.f32.mxu0 0.0
    %v4364 = vand.u32 %v1323, 4294901760
    %4365 = vmatmul.mubr.f32.gmra.mrb[0].mxu0 %v4364
    %v4366 = vpop.f32.mrb[0].mxu0
    %v4367 = vadd.f32 %v4276, %v4366
    %v4368 = vpop.f32.mrb[0].mxu0
    %4369 = vdwg.mxu0
    %4370 = vmatprep.subr.mxu0 0.0
    %v4371 = vand.u32 %v2546, 4294901760
    %4372 = vmatpush1.msra.mxu0 %v4371
    %4373 = vmatprep.subr.mxu0 0.0
    %v4374 = vand.u32 %v2547, 4294901760
    %4375 = vmatpush1.msra.mxu0 %v4374
    %4376 = vmatprep.subr.mxu0 0.0
    %4377 = vmatpush1.msra.mxu0 0.0
    %4378 = vmatprep.subr.mxu0 0.0
    %4379 = vmatpush1.msra.mxu0 0.0
    %4380 = vmatprep.subr.mxu0 0.0
    %4381 = vmatpush1.msra.mxu0 0.0
    %4382 = vmatprep.subr.mxu0 0.0
    %4383 = vmatpush1.msra.mxu0 0.0
    %4384 = vmatprep.subr.mxu0 0.0
    %4385 = vmatpush1.msra.mxu0 0.0
    %4386 = vmatprep.subr.mxu0 0.0
    %4387 = vmatpush1.msra.mxu0 0.0
    %4388 = vmatprep.subr.mxu0 0.0
    %4389 = vmatpush1.msra.mxu0 0.0
    %4390 = vmatprep.subr.mxu0 0.0
    %4391 = vmatpush1.msra.mxu0 0.0
    %4392 = vmatprep.subr.mxu0 0.0
    %4393 = vmatpush1.msra.mxu0 0.0
    %4394 = vmatprep.subr.mxu0 0.0
    %4395 = vmatpush1.msra.mxu0 0.0
    %4396 = vmatprep.subr.mxu0 0.0
    %4397 = vmatpush1.msra.mxu0 0.0
    %4398 = vmatprep.subr.mxu0 0.0
    %4399 = vmatpush1.msra.mxu0 0.0
    %4400 = vmatprep.subr.mxu0 0.0
    %4401 = vmatpush1.msra.mxu0 0.0
    %4402 = vmatprep.subr.mxu0 0.0
    %4403 = vmatpush1.msra.mxu0 0.0
    %4404 = vmatprep.subr.mxu0 0.0
    %4405 = vmatpush1.msra.mxu0 0.0
    %4406 = vmatprep.subr.mxu0 0.0
    %4407 = vmatpush1.msra.mxu0 0.0
    %4408 = vmatprep.subr.mxu0 0.0
    %4409 = vmatpush1.msra.mxu0 0.0
    %4410 = vmatprep.subr.mxu0 0.0
    %4411 = vmatpush1.msra.mxu0 0.0
    %4412 = vmatprep.subr.mxu0 0.0
    %4413 = vmatpush1.msra.mxu0 0.0
    %4414 = vmatprep.subr.mxu0 0.0
    %4415 = vmatpush1.msra.mxu0 0.0
    %4416 = vmatprep.subr.mxu0 0.0
    %4417 = vmatpush1.msra.mxu0 0.0
    %4418 = vmatprep.subr.mxu0 0.0
    %4419 = vmatpush1.msra.mxu0 0.0
    %4420 = vmatprep.subr.mxu0 0.0
    %4421 = vmatpush1.msra.mxu0 0.0
    %4422 = vmatprep.subr.mxu0 0.0
    %4423 = vmatpush1.msra.mxu0 0.0
    %4424 = vmatprep.subr.mxu0 0.0
    %4425 = vmatpush1.msra.mxu0 0.0
    %4426 = vmatprep.subr.mxu0 0.0
    %4427 = vmatpush1.msra.mxu0 0.0
    %4428 = vmatprep.subr.mxu0 0.0
    %4429 = vmatpush1.msra.mxu0 0.0
    %4430 = vmatprep.subr.mxu0 0.0
    %4431 = vmatpush1.msra.mxu0 0.0
    %4432 = vmatprep.subr.mxu0 0.0
    %4433 = vmatpush1.msra.mxu0 0.0
    %4434 = vmatprep.subr.mxu0 0.0
    %4435 = vmatpush1.msra.mxu0 0.0
    %4436 = vmatprep.mubr.f32.mxu0 0.0
    %v4437 = vand.u32 %v1914, 4294901760
    %v4438 = vsub.f32 %v1914, %v4437
    %v4439 = vand.u32 %v4438, 4294901760
    %v4440 = vsub.f32 %v4438, %v4439
    %v4441 = vand.u32 %v4440, 4294901760
    %4442 = vmatmul.mubr.f32.gmra.mrb[0].mxu0 %v4441
    %v4443 = vpop.f32.mrb[0].mxu0
    %v4444 = vadd.f32 %v4349, %v4443
    %v4445 = vpop.f32.mrb[0].mxu0
    %4446 = vmatprep.mubr.f32.mxu0 0.0
    %v4447 = vand.u32 %v1917, 4294901760
    %v4448 = vsub.f32 %v1917, %v4447
    %v4449 = vand.u32 %v4448, 4294901760
    %v4450 = vsub.f32 %v4448, %v4449
    %v4451 = vand.u32 %v4450, 4294901760
    %4452 = vmatmul.mubr.f32.gmra.mrb[0].mxu0 %v4451
    %v4453 = vpop.f32.mrb[0].mxu0
    %v4454 = vadd.f32 %v4355, %v4453
    %v4455 = vpop.f32.mrb[0].mxu0
    %4456 = vmatprep.mubr.f32.mxu0 0.0
    %v4457 = vand.u32 %v1920, 4294901760
    %v4458 = vsub.f32 %v1920, %v4457
    %v4459 = vand.u32 %v4458, 4294901760
    %v4460 = vsub.f32 %v4458, %v4459
    %v4461 = vand.u32 %v4460, 4294901760
    %4462 = vmatmul.mubr.f32.gmra.mrb[0].mxu0 %v4461
    %v4463 = vpop.f32.mrb[0].mxu0
    %v4464 = vadd.f32 %v4361, %v4463
    %v4465 = vpop.f32.mrb[0].mxu0
    %4466 = vmatprep.mubr.f32.mxu0 0.0
    %v4467 = vand.u32 %v1923, 4294901760
    %v4468 = vsub.f32 %v1923, %v4467
    %v4469 = vand.u32 %v4468, 4294901760
    %v4470 = vsub.f32 %v4468, %v4469
    %v4471 = vand.u32 %v4470, 4294901760
    %4472 = vmatmul.mubr.f32.gmra.mrb[0].mxu0 %v4471
    %v4473 = vpop.f32.mrb[0].mxu0
    %v4474 = vadd.f32 %v4367, %v4473
    %v4475 = vpop.f32.mrb[0].mxu0
    %4476 = vdwg.mxu0
    %4477 = vmatprep.subr.mxu0 0.0
    %v4478 = vand.u32 %v2546, 4294901760
    %v4479 = vsub.f32 %v2546, %v4478
    %v4480 = vand.u32 %v4479, 4294901760
    %v4481 = vsub.f32 %v4479, %v4480
    %v4482 = vand.u32 %v4481, 4294901760
    %4483 = vmatpush1.msra.mxu0 %v4482
    %4484 = vmatprep.subr.mxu0 0.0
    %v4485 = vand.u32 %v2547, 4294901760
    %v4486 = vsub.f32 %v2547, %v4485
    %v4487 = vand.u32 %v4486, 4294901760
    %v4488 = vsub.f32 %v4486, %v4487
    %v4489 = vand.u32 %v4488, 4294901760
    %4490 = vmatpush1.msra.mxu0 %v4489
    %4491 = vmatprep.subr.mxu0 0.0
    %4492 = vmatpush1.msra.mxu0 0.0
    %4493 = vmatprep.subr.mxu0 0.0
    %4494 = vmatpush1.msra.mxu0 0.0
    %4495 = vmatprep.subr.mxu0 0.0
    %4496 = vmatpush1.msra.mxu0 0.0
    %4497 = vmatprep.subr.mxu0 0.0
    %4498 = vmatpush1.msra.mxu0 0.0
    %4499 = vmatprep.subr.mxu0 0.0
    %4500 = vmatpush1.msra.mxu0 0.0
    %4501 = vmatprep.subr.mxu0 0.0
    %4502 = vmatpush1.msra.mxu0 0.0
    %4503 = vmatprep.subr.mxu0 0.0
    %4504 = vmatpush1.msra.mxu0 0.0
    %4505 = vmatprep.subr.mxu0 0.0
    %4506 = vmatpush1.msra.mxu0 0.0
    %4507 = vmatprep.subr.mxu0 0.0
    %4508 = vmatpush1.msra.mxu0 0.0
    %4509 = vmatprep.subr.mxu0 0.0
    %4510 = vmatpush1.msra.mxu0 0.0
    %4511 = vmatprep.subr.mxu0 0.0
    %4512 = vmatpush1.msra.mxu0 0.0
    %4513 = vmatprep.subr.mxu0 0.0
    %4514 = vmatpush1.msra.mxu0 0.0
    %4515 = vmatprep.subr.mxu0 0.0
    %4516 = vmatpush1.msra.mxu0 0.0
    %4517 = vmatprep.subr.mxu0 0.0
    %4518 = vmatpush1.msra.mxu0 0.0
    %4519 = vmatprep.subr.mxu0 0.0
    %4520 = vmatpush1.msra.mxu0 0.0
    %4521 = vmatprep.subr.mxu0 0.0
    %4522 = vmatpush1.msra.mxu0 0.0
    %4523 = vmatprep.subr.mxu0 0.0
    %4524 = vmatpush1.msra.mxu0 0.0
    %4525 = vmatprep.subr.mxu0 0.0
    %4526 = vmatpush1.msra.mxu0 0.0
    %4527 = vmatprep.subr.mxu0 0.0
    %4528 = vmatpush1.msra.mxu0 0.0
    %4529 = vmatprep.subr.mxu0 0.0
    %4530 = vmatpush1.msra.mxu0 0.0
    %4531 = vmatprep.subr.mxu0 0.0
    %4532 = vmatpush1.msra.mxu0 0.0
    %4533 = vmatprep.subr.mxu0 0.0
    %4534 = vmatpush1.msra.mxu0 0.0
    %4535 = vmatprep.subr.mxu0 0.0
    %4536 = vmatpush1.msra.mxu0 0.0
    %4537 = vmatprep.subr.mxu0 0.0
    %4538 = vmatpush1.msra.mxu0 0.0
    %4539 = vmatprep.subr.mxu0 0.0
    %4540 = vmatpush1.msra.mxu0 0.0
    %4541 = vmatprep.subr.mxu0 0.0
    %4542 = vmatpush1.msra.mxu0 0.0
    %4543 = vmatprep.subr.mxu0 0.0
    %4544 = vmatpush1.msra.mxu0 0.0
    %4545 = vmatprep.subr.mxu0 0.0
    %4546 = vmatpush1.msra.mxu0 0.0
    %4547 = vmatprep.subr.mxu0 0.0
    %4548 = vmatpush1.msra.mxu0 0.0
    %4549 = vmatprep.subr.mxu0 0.0
    %4550 = vmatpush1.msra.mxu0 0.0
    %4551 = vmatprep.mubr.f32.mxu0 0.0
    %v4552 = vand.u32 %v1914, 4294901760
    %4553 = vmatmul.mubr.f32.gmra.mrb[0].mxu0 %v4552
    %v4554 = vpop.f32.mrb[0].mxu0
    %v4555 = vadd.f32 %v4444, %v4554
    %v4556 = vpop.f32.mrb[0].mxu0
    %4557 = vmatprep.mubr.f32.mxu0 0.0
    %v4558 = vand.u32 %v1917, 4294901760
    %4559 = vmatmul.mubr.f32.gmra.mrb[0].mxu0 %v4558
    %v4560 = vpop.f32.mrb[0].mxu0
    %v4561 = vadd.f32 %v4454, %v4560
    %v4562 = vpop.f32.mrb[0].mxu0
    %4563 = vmatprep.mubr.f32.mxu0 0.0
    %v4564 = vand.u32 %v1920, 4294901760
    %4565 = vmatmul.mubr.f32.gmra.mrb[0].mxu0 %v4564
    %v4566 = vpop.f32.mrb[0].mxu0
    %v4567 = vadd.f32 %v4464, %v4566
    %v4568 = vpop.f32.mrb[0].mxu0
    %4569 = vmatprep.mubr.f32.mxu0 0.0
    %v4570 = vand.u32 %v1923, 4294901760
    %4571 = vmatmul.mubr.f32.gmra.mrb[0].mxu0 %v4570
    %v4572 = vpop.f32.mrb[0].mxu0
    %v4573 = vadd.f32 %v4474, %v4572
    %v4574 = vpop.f32.mrb[0].mxu0
    %4575 = vdwg.mxu0
    %4576 = vmatprep.subr.mxu0 0.0
    %v4577 = vand.u32 %v2546, 4294901760
    %v4578 = vsub.f32 %v2546, %v4577
    %4579 = vmatpush1.msra.mxu0 %v4578
    %4580 = vmatprep.subr.mxu0 0.0
    %v4581 = vand.u32 %v2547, 4294901760
    %v4582 = vsub.f32 %v2547, %v4581
    %4583 = vmatpush1.msra.mxu0 %v4582
    %4584 = vmatprep.subr.mxu0 0.0
    %4585 = vmatpush1.msra.mxu0 0.0
    %4586 = vmatprep.subr.mxu0 0.0
    %4587 = vmatpush1.msra.mxu0 0.0
    %4588 = vmatprep.subr.mxu0 0.0
    %4589 = vmatpush1.msra.mxu0 0.0
    %4590 = vmatprep.subr.mxu0 0.0
    %4591 = vmatpush1.msra.mxu0 0.0
    %4592 = vmatprep.subr.mxu0 0.0
    %4593 = vmatpush1.msra.mxu0 0.0
    %4594 = vmatprep.subr.mxu0 0.0
    %4595 = vmatpush1.msra.mxu0 0.0
    %4596 = vmatprep.subr.mxu0 0.0
    %4597 = vmatpush1.msra.mxu0 0.0
    %4598 = vmatprep.subr.mxu0 0.0
    %4599 = vmatpush1.msra.mxu0 0.0
    %4600 = vmatprep.subr.mxu0 0.0
    %4601 = vmatpush1.msra.mxu0 0.0
    %4602 = vmatprep.subr.mxu0 0.0
    %4603 = vmatpush1.msra.mxu0 0.0
    %4604 = vmatprep.subr.mxu0 0.0
    %4605 = vmatpush1.msra.mxu0 0.0
    %4606 = vmatprep.subr.mxu0 0.0
    %4607 = vmatpush1.msra.mxu0 0.0
    %4608 = vmatprep.subr.mxu0 0.0
    %4609 = vmatpush1.msra.mxu0 0.0
    %4610 = vmatprep.subr.mxu0 0.0
    %4611 = vmatpush1.msra.mxu0 0.0
    %4612 = vmatprep.subr.mxu0 0.0
    %4613 = vmatpush1.msra.mxu0 0.0
    %4614 = vmatprep.subr.mxu0 0.0
    %4615 = vmatpush1.msra.mxu0 0.0
    %4616 = vmatprep.subr.mxu0 0.0
    %4617 = vmatpush1.msra.mxu0 0.0
    %4618 = vmatprep.subr.mxu0 0.0
    %4619 = vmatpush1.msra.mxu0 0.0
    %4620 = vmatprep.subr.mxu0 0.0
    %4621 = vmatpush1.msra.mxu0 0.0
    %4622 = vmatprep.subr.mxu0 0.0
    %4623 = vmatpush1.msra.mxu0 0.0
    %4624 = vmatprep.subr.mxu0 0.0
    %4625 = vmatpush1.msra.mxu0 0.0
    %4626 = vmatprep.subr.mxu0 0.0
    %4627 = vmatpush1.msra.mxu0 0.0
    %4628 = vmatprep.subr.mxu0 0.0
    %4629 = vmatpush1.msra.mxu0 0.0
    %4630 = vmatprep.subr.mxu0 0.0
    %4631 = vmatpush1.msra.mxu0 0.0
    %4632 = vmatprep.subr.mxu0 0.0
    %4633 = vmatpush1.msra.mxu0 0.0
    %4634 = vmatprep.subr.mxu0 0.0
    %4635 = vmatpush1.msra.mxu0 0.0
    %4636 = vmatprep.subr.mxu0 0.0
    %4637 = vmatpush1.msra.mxu0 0.0
    %4638 = vmatprep.subr.mxu0 0.0
    %4639 = vmatpush1.msra.mxu0 0.0
    %4640 = vmatprep.subr.mxu0 0.0
    %4641 = vmatpush1.msra.mxu0 0.0
    %4642 = vmatprep.subr.mxu0 0.0
    %4643 = vmatpush1.msra.mxu0 0.0
    %4644 = vmatprep.mubr.f32.mxu0 0.0
    %v4645 = vand.u32 %v1914, 4294901760
    %v4646 = vsub.f32 %v1914, %v4645
    %4647 = vmatmul.mubr.f32.gmra.mrb[0].mxu0 %v4646
    %v4648 = vpop.f32.mrb[0].mxu0
    %v4649 = vadd.f32 %v4555, %v4648
    %v4650 = vpop.f32.mrb[0].mxu0
    %4651 = vmatprep.mubr.f32.mxu0 0.0
    %v4652 = vand.u32 %v1917, 4294901760
    %v4653 = vsub.f32 %v1917, %v4652
    %4654 = vmatmul.mubr.f32.gmra.mrb[0].mxu0 %v4653
    %v4655 = vpop.f32.mrb[0].mxu0
    %v4656 = vadd.f32 %v4561, %v4655
    %v4657 = vpop.f32.mrb[0].mxu0
    %4658 = vmatprep.mubr.f32.mxu0 0.0
    %v4659 = vand.u32 %v1920, 4294901760
    %v4660 = vsub.f32 %v1920, %v4659
    %4661 = vmatmul.mubr.f32.gmra.mrb[0].mxu0 %v4660
    %v4662 = vpop.f32.mrb[0].mxu0
    %v4663 = vadd.f32 %v4567, %v4662
    %v4664 = vpop.f32.mrb[0].mxu0
    %4665 = vmatprep.mubr.f32.mxu0 0.0
    %v4666 = vand.u32 %v1923, 4294901760
    %v4667 = vsub.f32 %v1923, %v4666
    %4668 = vmatmul.mubr.f32.gmra.mrb[0].mxu0 %v4667
    %v4669 = vpop.f32.mrb[0].mxu0
    %v4670 = vadd.f32 %v4573, %v4669
    %v4671 = vpop.f32.mrb[0].mxu0
    %4672 = vdwg.mxu0
    %4673 = vmatprep.subr.mxu0 0.0
    %v4674 = vand.u32 %v2546, 4294901760
    %4675 = vmatpush1.msra.mxu0 %v4674
    %4676 = vmatprep.subr.mxu0 0.0
    %v4677 = vand.u32 %v2547, 4294901760
    %4678 = vmatpush1.msra.mxu0 %v4677
    %4679 = vmatprep.subr.mxu0 0.0
    %4680 = vmatpush1.msra.mxu0 0.0
    %4681 = vmatprep.subr.mxu0 0.0
    %4682 = vmatpush1.msra.mxu0 0.0
    %4683 = vmatprep.subr.mxu0 0.0
    %4684 = vmatpush1.msra.mxu0 0.0
    %4685 = vmatprep.subr.mxu0 0.0
    %4686 = vmatpush1.msra.mxu0 0.0
    %4687 = vmatprep.subr.mxu0 0.0
    %4688 = vmatpush1.msra.mxu0 0.0
    %4689 = vmatprep.subr.mxu0 0.0
    %4690 = vmatpush1.msra.mxu0 0.0
    %4691 = vmatprep.subr.mxu0 0.0
    %4692 = vmatpush1.msra.mxu0 0.0
    %4693 = vmatprep.subr.mxu0 0.0
    %4694 = vmatpush1.msra.mxu0 0.0
    %4695 = vmatprep.subr.mxu0 0.0
    %4696 = vmatpush1.msra.mxu0 0.0
    %4697 = vmatprep.subr.mxu0 0.0
    %4698 = vmatpush1.msra.mxu0 0.0
    %4699 = vmatprep.subr.mxu0 0.0
    %4700 = vmatpush1.msra.mxu0 0.0
    %4701 = vmatprep.subr.mxu0 0.0
    %4702 = vmatpush1.msra.mxu0 0.0
    %4703 = vmatprep.subr.mxu0 0.0
    %4704 = vmatpush1.msra.mxu0 0.0
    %4705 = vmatprep.subr.mxu0 0.0
    %4706 = vmatpush1.msra.mxu0 0.0
    %4707 = vmatprep.subr.mxu0 0.0
    %4708 = vmatpush1.msra.mxu0 0.0
    %4709 = vmatprep.subr.mxu0 0.0
    %4710 = vmatpush1.msra.mxu0 0.0
    %4711 = vmatprep.subr.mxu0 0.0
    %4712 = vmatpush1.msra.mxu0 0.0
    %4713 = vmatprep.subr.mxu0 0.0
    %4714 = vmatpush1.msra.mxu0 0.0
    %4715 = vmatprep.subr.mxu0 0.0
    %4716 = vmatpush1.msra.mxu0 0.0
    %4717 = vmatprep.subr.mxu0 0.0
    %4718 = vmatpush1.msra.mxu0 0.0
    %4719 = vmatprep.subr.mxu0 0.0
    %4720 = vmatpush1.msra.mxu0 0.0
    %4721 = vmatprep.subr.mxu0 0.0
    %4722 = vmatpush1.msra.mxu0 0.0
    %4723 = vmatprep.subr.mxu0 0.0
    %4724 = vmatpush1.msra.mxu0 0.0
    %4725 = vmatprep.subr.mxu0 0.0
    %4726 = vmatpush1.msra.mxu0 0.0
    %4727 = vmatprep.subr.mxu0 0.0
    %4728 = vmatpush1.msra.mxu0 0.0
    %4729 = vmatprep.subr.mxu0 0.0
    %4730 = vmatpush1.msra.mxu0 0.0
    %4731 = vmatprep.subr.mxu0 0.0
    %4732 = vmatpush1.msra.mxu0 0.0
    %4733 = vmatprep.subr.mxu0 0.0
    %4734 = vmatpush1.msra.mxu0 0.0
    %4735 = vmatprep.subr.mxu0 0.0
    %4736 = vmatpush1.msra.mxu0 0.0
    %4737 = vmatprep.subr.mxu0 0.0
    %4738 = vmatpush1.msra.mxu0 0.0
    %4739 = vmatprep.mubr.f32.mxu0 0.0
    %v4740 = vand.u32 %v1914, 4294901760
    %v4741 = vsub.f32 %v1914, %v4740
    %v4742 = vand.u32 %v4741, 4294901760
    %4743 = vmatmul.mubr.f32.gmra.mrb[0].mxu0 %v4742
    %v4744 = vpop.f32.mrb[0].mxu0
    %v4745 = vadd.f32 %v4649, %v4744
    %v4746 = vpop.f32.mrb[0].mxu0
    %4747 = vmatprep.mubr.f32.mxu0 0.0
    %v4748 = vand.u32 %v1917, 4294901760
    %v4749 = vsub.f32 %v1917, %v4748
    %v4750 = vand.u32 %v4749, 4294901760
    %4751 = vmatmul.mubr.f32.gmra.mrb[0].mxu0 %v4750
    %v4752 = vpop.f32.mrb[0].mxu0
    %v4753 = vadd.f32 %v4656, %v4752
    %v4754 = vpop.f32.mrb[0].mxu0
    %4755 = vmatprep.mubr.f32.mxu0 0.0
    %v4756 = vand.u32 %v1920, 4294901760
    %v4757 = vsub.f32 %v1920, %v4756
    %v4758 = vand.u32 %v4757, 4294901760
    %4759 = vmatmul.mubr.f32.gmra.mrb[0].mxu0 %v4758
    %v4760 = vpop.f32.mrb[0].mxu0
    %v4761 = vadd.f32 %v4663, %v4760
    %v4762 = vpop.f32.mrb[0].mxu0
    %4763 = vmatprep.mubr.f32.mxu0 0.0
    %v4764 = vand.u32 %v1923, 4294901760
    %v4765 = vsub.f32 %v1923, %v4764
    %v4766 = vand.u32 %v4765, 4294901760
    %4767 = vmatmul.mubr.f32.gmra.mrb[0].mxu0 %v4766
    %v4768 = vpop.f32.mrb[0].mxu0
    %v4769 = vadd.f32 %v4670, %v4768
    %v4770 = vpop.f32.mrb[0].mxu0
    %4771 = vdwg.mxu0
    %4772 = vmatprep.subr.mxu0 0.0
    %v4773 = vand.u32 %v2546, 4294901760
    %v4774 = vsub.f32 %v2546, %v4773
    %v4775 = vand.u32 %v4774, 4294901760
    %4776 = vmatpush1.msra.mxu0 %v4775
    %4777 = vmatprep.subr.mxu0 0.0
    %v4778 = vand.u32 %v2547, 4294901760
    %v4779 = vsub.f32 %v2547, %v4778
    %v4780 = vand.u32 %v4779, 4294901760
    %4781 = vmatpush1.msra.mxu0 %v4780
    %4782 = vmatprep.subr.mxu0 0.0
    %4783 = vmatpush1.msra.mxu0 0.0
    %4784 = vmatprep.subr.mxu0 0.0
    %4785 = vmatpush1.msra.mxu0 0.0
    %4786 = vmatprep.subr.mxu0 0.0
    %4787 = vmatpush1.msra.mxu0 0.0
    %4788 = vmatprep.subr.mxu0 0.0
    %4789 = vmatpush1.msra.mxu0 0.0
    %4790 = vmatprep.subr.mxu0 0.0
    %4791 = vmatpush1.msra.mxu0 0.0
    %4792 = vmatprep.subr.mxu0 0.0
    %4793 = vmatpush1.msra.mxu0 0.0
    %4794 = vmatprep.subr.mxu0 0.0
    %4795 = vmatpush1.msra.mxu0 0.0
    %4796 = vmatprep.subr.mxu0 0.0
    %4797 = vmatpush1.msra.mxu0 0.0
    %4798 = vmatprep.subr.mxu0 0.0
    %4799 = vmatpush1.msra.mxu0 0.0
    %4800 = vmatprep.subr.mxu0 0.0
    %4801 = vmatpush1.msra.mxu0 0.0
    %4802 = vmatprep.subr.mxu0 0.0
    %4803 = vmatpush1.msra.mxu0 0.0
    %4804 = vmatprep.subr.mxu0 0.0
    %4805 = vmatpush1.msra.mxu0 0.0
    %4806 = vmatprep.subr.mxu0 0.0
    %4807 = vmatpush1.msra.mxu0 0.0
    %4808 = vmatprep.subr.mxu0 0.0
    %4809 = vmatpush1.msra.mxu0 0.0
    %4810 = vmatprep.subr.mxu0 0.0
    %4811 = vmatpush1.msra.mxu0 0.0
    %4812 = vmatprep.subr.mxu0 0.0
    %4813 = vmatpush1.msra.mxu0 0.0
    %4814 = vmatprep.subr.mxu0 0.0
    %4815 = vmatpush1.msra.mxu0 0.0
    %4816 = vmatprep.subr.mxu0 0.0
    %4817 = vmatpush1.msra.mxu0 0.0
    %4818 = vmatprep.subr.mxu0 0.0
    %4819 = vmatpush1.msra.mxu0 0.0
    %4820 = vmatprep.subr.mxu0 0.0
    %4821 = vmatpush1.msra.mxu0 0.0
    %4822 = vmatprep.subr.mxu0 0.0
    %4823 = vmatpush1.msra.mxu0 0.0
    %4824 = vmatprep.subr.mxu0 0.0
    %4825 = vmatpush1.msra.mxu0 0.0
    %4826 = vmatprep.subr.mxu0 0.0
    %4827 = vmatpush1.msra.mxu0 0.0
    %4828 = vmatprep.subr.mxu0 0.0
    %4829 = vmatpush1.msra.mxu0 0.0
    %4830 = vmatprep.subr.mxu0 0.0
    %4831 = vmatpush1.msra.mxu0 0.0
    %4832 = vmatprep.subr.mxu0 0.0
    %4833 = vmatpush1.msra.mxu0 0.0
    %4834 = vmatprep.subr.mxu0 0.0
    %4835 = vmatpush1.msra.mxu0 0.0
    %4836 = vmatprep.subr.mxu0 0.0
    %4837 = vmatpush1.msra.mxu0 0.0
    %4838 = vmatprep.subr.mxu0 0.0
    %4839 = vmatpush1.msra.mxu0 0.0
    %4840 = vmatprep.subr.mxu0 0.0
    %4841 = vmatpush1.msra.mxu0 0.0
    %4842 = vmatprep.mubr.f32.mxu0 0.0
    %v4843 = vand.u32 %v1914, 4294901760
    %4844 = vmatmul.mubr.f32.gmra.mrb[0].mxu0 %v4843
    %v4845 = vpop.f32.mrb[0].mxu0
    %v4846 = vadd.f32 %v4745, %v4845
    %v4847 = vpop.f32.mrb[0].mxu0
    %4848 = vmatprep.mubr.f32.mxu0 0.0
    %v4849 = vand.u32 %v1917, 4294901760
    %4850 = vmatmul.mubr.f32.gmra.mrb[0].mxu0 %v4849
    %v4851 = vpop.f32.mrb[0].mxu0
    %v4852 = vadd.f32 %v4753, %v4851
    %v4853 = vpop.f32.mrb[0].mxu0
    %4854 = vmatprep.mubr.f32.mxu0 0.0
    %v4855 = vand.u32 %v1920, 4294901760
    %4856 = vmatmul.mubr.f32.gmra.mrb[0].mxu0 %v4855
    %v4857 = vpop.f32.mrb[0].mxu0
    %v4858 = vadd.f32 %v4761, %v4857
    %v4859 = vpop.f32.mrb[0].mxu0
    %4860 = vmatprep.mubr.f32.mxu0 0.0
    %v4861 = vand.u32 %v1923, 4294901760
    %4862 = vmatmul.mubr.f32.gmra.mrb[0].mxu0 %v4861
    %v4863 = vpop.f32.mrb[0].mxu0
    %v4864 = vadd.f32 %v4769, %v4863
    %v4865 = vpop.f32.mrb[0].mxu0
    %4866 = vdwg.mxu0
    %4867 = vmatprep.subr.mxu0 0.0
    %v4868 = vand.u32 %v2546, 4294901760
    %4869 = vmatpush1.msra.mxu0 %v4868
    %4870 = vmatprep.subr.mxu0 0.0
    %v4871 = vand.u32 %v2547, 4294901760
    %4872 = vmatpush1.msra.mxu0 %v4871
    %4873 = vmatprep.subr.mxu0 0.0
    %4874 = vmatpush1.msra.mxu0 0.0
    %4875 = vmatprep.subr.mxu0 0.0
    %4876 = vmatpush1.msra.mxu0 0.0
    %4877 = vmatprep.subr.mxu0 0.0
    %4878 = vmatpush1.msra.mxu0 0.0
    %4879 = vmatprep.subr.mxu0 0.0
    %4880 = vmatpush1.msra.mxu0 0.0
    %4881 = vmatprep.subr.mxu0 0.0
    %4882 = vmatpush1.msra.mxu0 0.0
    %4883 = vmatprep.subr.mxu0 0.0
    %4884 = vmatpush1.msra.mxu0 0.0
    %4885 = vmatprep.subr.mxu0 0.0
    %4886 = vmatpush1.msra.mxu0 0.0
    %4887 = vmatprep.subr.mxu0 0.0
    %4888 = vmatpush1.msra.mxu0 0.0
    %4889 = vmatprep.subr.mxu0 0.0
    %4890 = vmatpush1.msra.mxu0 0.0
    %4891 = vmatprep.subr.mxu0 0.0
    %4892 = vmatpush1.msra.mxu0 0.0
    %4893 = vmatprep.subr.mxu0 0.0
    %4894 = vmatpush1.msra.mxu0 0.0
    %4895 = vmatprep.subr.mxu0 0.0
    %4896 = vmatpush1.msra.mxu0 0.0
    %4897 = vmatprep.subr.mxu0 0.0
    %4898 = vmatpush1.msra.mxu0 0.0
    %4899 = vmatprep.subr.mxu0 0.0
    %4900 = vmatpush1.msra.mxu0 0.0
    %4901 = vmatprep.subr.mxu0 0.0
    %4902 = vmatpush1.msra.mxu0 0.0
    %4903 = vmatprep.subr.mxu0 0.0
    %4904 = vmatpush1.msra.mxu0 0.0
    %4905 = vmatprep.subr.mxu0 0.0
    %4906 = vmatpush1.msra.mxu0 0.0
    %4907 = vmatprep.subr.mxu0 0.0
    %4908 = vmatpush1.msra.mxu0 0.0
    %4909 = vmatprep.subr.mxu0 0.0
    %4910 = vmatpush1.msra.mxu0 0.0
    %4911 = vmatprep.subr.mxu0 0.0
    %4912 = vmatpush1.msra.mxu0 0.0
    %4913 = vmatprep.subr.mxu0 0.0
    %4914 = vmatpush1.msra.mxu0 0.0
    %4915 = vmatprep.subr.mxu0 0.0
    %4916 = vmatpush1.msra.mxu0 0.0
    %4917 = vmatprep.subr.mxu0 0.0
    %4918 = vmatpush1.msra.mxu0 0.0
    %4919 = vmatprep.subr.mxu0 0.0
    %4920 = vmatpush1.msra.mxu0 0.0
    %4921 = vmatprep.subr.mxu0 0.0
    %4922 = vmatpush1.msra.mxu0 0.0
    %4923 = vmatprep.subr.mxu0 0.0
    %4924 = vmatpush1.msra.mxu0 0.0
    %4925 = vmatprep.subr.mxu0 0.0
    %4926 = vmatpush1.msra.mxu0 0.0
    %4927 = vmatprep.subr.mxu0 0.0
    %4928 = vmatpush1.msra.mxu0 0.0
    %4929 = vmatprep.subr.mxu0 0.0
    %4930 = vmatpush1.msra.mxu0 0.0
    %4931 = vmatprep.subr.mxu0 0.0
    %4932 = vmatpush1.msra.mxu0 0.0
    %4933 = vmatprep.mubr.f32.mxu0 0.0
    %v4934 = vand.u32 %v1914, 4294901760
    %4935 = vmatmul.mubr.f32.gmra.mrb[0].mxu0 %v4934
    %v4936 = vpop.f32.mrb[0].mxu0
    %v4937 = vadd.f32 %v4846, %v4936
    %v4938 = vpop.f32.mrb[0].mxu0
    %4939 = vmatprep.mubr.f32.mxu0 0.0
    %v4940 = vand.u32 %v1917, 4294901760
    %4941 = vmatmul.mubr.f32.gmra.mrb[0].mxu0 %v4940
    %v4942 = vpop.f32.mrb[0].mxu0
    %v4943 = vadd.f32 %v4852, %v4942
    %v4944 = vpop.f32.mrb[0].mxu0
    %4945 = vmatprep.mubr.f32.mxu0 0.0
    %v4946 = vand.u32 %v1920, 4294901760
    %4947 = vmatmul.mubr.f32.gmra.mrb[0].mxu0 %v4946
    %v4948 = vpop.f32.mrb[0].mxu0
    %v4949 = vadd.f32 %v4858, %v4948
    %v4950 = vpop.f32.mrb[0].mxu0
    %4951 = vmatprep.mubr.f32.mxu0 0.0
    %v4952 = vand.u32 %v1923, 4294901760
    %4953 = vmatmul.mubr.f32.gmra.mrb[0].mxu0 %v4952
    %v4954 = vpop.f32.mrb[0].mxu0
    %v4955 = vadd.f32 %v4864, %v4954
    %v4956 = vpop.f32.mrb[0].mxu0
    %4957 = vdwg.mxu0
    %v4958 = vadd.f32 %v4937, %v2516
    %v4959 = vadd.f32 %v4943, %v2521
    %v4960 = vadd.f32 %v4949, %v2526
    %v4961 = vadd.f32 %v4955, %v2531
    %v4962 = vmax.f32 %v4958, 0.0
    %v4963 = vmax.f32 %v4959, 0.0
    %v4964 = vmax.f32 %v4960, 0.0
    %v4965 = vmax.f32 %v4961, 0.0
    %s4966 = scalar_lea.vmem [#allocation2], 32
    %4967 = vst [vmem:[%s4966] sm:$0xff] %v4962
    %4968 = vst [vmem:[%s4966 + $0x8] sm:$0xff] %v4963
    %4969 = vst [vmem:[%s4966 + $0x10] sm:$0xff] %v4964
    %4970 = vst [vmem:[%s4966 + $0x18] sm:$0xff] %v4965
    // Predicated region
    $region30: #{tpu_custom_call.1} parent=1 // pred_check
      _
    $region31: #{tpu_custom_call.1} parent=1 // pred_check_branch
      %4972 = sbr.rel (0) target = $region33
    $region32: #{tpu_custom_call.1} parent=1 // pred_region
      %s4974 = ssub.s32 1024, 1024
      %4975 = vsyncadd [#allocation3], %s4974
      %s4976 = sshll.u32 [#allocation2], 4
      %s4977 = int_to_ptr.vmem [resolvable:$true] %s4976
      %4982 = dma.vmem_to_hbm [thread:$0]  %s4977, 1024, %s7, [#allocation3], 128, 128, 8
    $region33: #{tpu_custom_call.1} parent=1 // pred_fallthru
      _
    // Predicated region
    $region34: #{tpu_custom_call.1} parent=1 // pred_check
      _
    $region35: #{tpu_custom_call.1} parent=1 // pred_check_branch
      %4984 = sbr.rel (0) target = $region37
    $region36: #{tpu_custom_call.1} parent=1 // pred_region
      %4985 = dma.done [#allocation3], 1024
    $region37: #{tpu_custom_call.1} parent=1 // pred_fallthru
      _
    %4986 = vsyncpa [#allocation3], 1

</llo_original>
